<compile_context>
chip_gen: v7x
topology: tpu7x:2x2x1
jax: 0.10.0
libtpu: 0.0.40
codegen_flags: <defaults>
</compile_context>

<pallas_src>
import functools

import jax
import jax.numpy as jnp
from jax.experimental import pallas as pl
from jax.experimental.pallas import tpu as pltpu

N_DY = 7                         # continuous features
N_CAT = 5                        # categorical index columns
N_FEAT = N_DY + N_CAT            # 12
HIDDEN = 32
LEAKY_SLOPE = 0.01               # nn.LeakyReLU default

VOCABS = (31, 106, 226, 20, 20)          # sw1, sw2, sw3, value, share
OFFSETS = (0, 31, 137, 363, 383)         # row offsets of each vocab in fused table
V_TOTAL = sum(VOCABS)                    # 403
V_PAD = 512                              # next multiple of 128
K_PAD = 8                                # padded K for the two tiny matmuls


def stock_encoder_kernel(xc_ref, ip_ref, seg_ref, w_dy_ref, th_ref, tl_ref,
                         b_ref, o_ref):
    # Continuous part: [TB, 8] @ [8, 32] (lane 7 of xc and row 7 of w_dy are zero).
    y = jnp.dot(xc_ref[...], w_dy_ref[...], preferred_element_type=jnp.float32)

    # Categorical part. One tiny MXU matmul builds, per lane j,
    #   target[:, j] = (idx_seg(j) + offset_seg(j)) - j     (or -j on pad lanes >= 403)
    # so the [TB, 512] multi-hot is one threshold compare instead of iota + 5 cmp + 4 or.
    target = jnp.dot(ip_ref[...], seg_ref[...],
                     preferred_element_type=jnp.float32)          # [TB, 512]
    hit = jnp.abs(target) < 0.5                                   # exact integers => robust
    multihot = jnp.where(hit, 1.0, 0.0).astype(jnp.bfloat16)      # 0/1, exact in bf16

    # Fused-table lookup as native bf16 matmuls; hi + residual split keeps ~f32 accuracy.
    y = y + jnp.dot(multihot, th_ref[...], preferred_element_type=jnp.float32)
    y = y + jnp.dot(multihot, tl_ref[...], preferred_element_type=jnp.float32)

    y = y + b_ref[...]
    # LeakyReLU(negative_slope=0.01)
    o_ref[...] = jnp.where(y > 0.0, y, LEAKY_SLOPE * y).astype(o_ref.dtype)


def prepare_params(params):
    """One-time fusion of Linear(95->32) into the embedding tables + constants.

    Done OUTSIDE the per-call jitted forward (perf-review item): returns device
    arrays that are reused across every forward call.
    """
    w = params["w"].astype(jnp.float32)                           # [95, 32]
    w_dy = jnp.concatenate(
        [w[:N_DY], jnp.zeros((1, HIDDEN), jnp.float32)], axis=0)  # [8, 32], row 7 zero

    tables = (params["sw1"], params["sw2"], params["sw3"],
              params["value"], params["share"])
    segs, col = [], N_DY
    for t in tables:
        d = t.shape[1]
        segs.append(t.astype(jnp.float32) @ w[col:col + d])       # [V_k, 32]
        col += d
    fused = jnp.concatenate(segs, axis=0)                         # [403, 32]
    fused = jnp.pad(fused, ((0, V_PAD - V_TOTAL), (0, 0)))        # [512, 32]
    tab_hi = fused.astype(jnp.bfloat16)                           # bf16 hi part
    tab_lo = (fused - tab_hi.astype(jnp.float32)).astype(jnp.bfloat16)  # bf16 residual

    # Segment-broadcast matrix S [8, 512]:
    #   rows 0..4: 1.0 over that vocab's lane range; row 5: -lane_index; rows 6,7: 0.
    lanes = jnp.arange(V_PAD, dtype=jnp.int32)
    rows = []
    for k in range(N_CAT):
        rows.append(((lanes >= OFFSETS[k]) &
                     (lanes < OFFSETS[k] + VOCABS[k])).astype(jnp.float32))
    rows.append(-lanes.astype(jnp.float32))
    rows.append(jnp.zeros((V_PAD,), jnp.float32))
    rows.append(jnp.zeros((V_PAD,), jnp.float32))
    seg_mat = jnp.stack(rows, axis=0)                             # [8, 512]

    bias = params["b"].astype(jnp.float32).reshape(1, HIDDEN)
    return {"w_dy": w_dy, "seg": seg_mat, "tab_hi": tab_hi,
            "tab_lo": tab_lo, "bias": bias}


def _round_up(n, m):
    return ((n + m - 1) // m) * m


@functools.partial(jax.jit, static_argnames=("block_b",))
def stock_encoder(x, prepared, *, block_b=1024):
    b = x.shape[0]

    # Continuous slab [B, 8] (lane 7 zero) and index slab [B, 8] with offsets folded
    # in and a constant 1.0 column (pairs with S row 5 = -lane_index).
    xc = jnp.pad(x[:, :N_DY].astype(jnp.float32), ((0, 0), (0, 1)))     # [B, 8]
    idx = x[:, N_DY:N_FEAT].astype(jnp.int32)          # truncation == torch .int()
    offs = jnp.asarray(OFFSETS, jnp.int32)
    ip = jnp.concatenate(
        [(idx + offs[None, :]).astype(jnp.float32),
         jnp.ones((b, 1), jnp.float32),
         jnp.zeros((b, 2), jnp.float32)], axis=1)                       # [B, 8]

    # Tile selection: sublane-aligned, capped so there are >= 2 grid steps
    # (lets "parallel" shard across v7x's two TensorCores; harmless on v5e/v6e).
    tb = max(8, min(block_b, _round_up((b + 1) // 2, 8)))
    b_pad = _round_up(b, tb)
    if b_pad != b:
        # Pad rows produce harmless finite garbage and are sliced away below.
        xc = jnp.pad(xc, ((0, b_pad - b), (0, 0)))
        ip = jnp.pad(ip, ((0, b_pad - b), (0, 0)))

    grid_spec = pltpu.PrefetchScalarGridSpec(
        num_scalar_prefetch=0,
        grid=(b_pad // tb,),
        in_specs=[
            pl.BlockSpec((tb, K_PAD), lambda i: (i, 0)),          # xc: tiled over B
            pl.BlockSpec((tb, K_PAD), lambda i: (i, 0)),          # ip: tiled over B
            pl.BlockSpec((K_PAD, V_PAD), lambda i: (0, 0)),       # S: resident
            pl.BlockSpec((K_PAD, HIDDEN), lambda i: (0, 0)),      # W_dy: resident
            pl.BlockSpec((V_PAD, HIDDEN), lambda i: (0, 0)),      # fused table hi
            pl.BlockSpec((V_PAD, HIDDEN), lambda i: (0, 0)),      # fused table lo
            pl.BlockSpec((1, HIDDEN), lambda i: (0, 0)),          # bias: resident
        ],
        out_specs=pl.BlockSpec((tb, HIDDEN), lambda i: (i, 0)),
    )
    out = pl.pallas_call(
        stock_encoder_kernel,
        out_shape=jax.ShapeDtypeStruct((b_pad, HIDDEN), jnp.float32),
        grid_spec=grid_spec,
        compiler_params=pltpu.CompilerParams(
            dimension_semantics=("parallel",)),
    )(xc, ip, prepared["seg"], prepared["w_dy"], prepared["tab_hi"],
      prepared["tab_lo"], prepared["bias"])
    return out[:b]


def init_params(key):
    """Deterministic synthetic parameters matching StockEncoder.__init__ shapes."""
    ks = jax.random.split(key, 7)
    return {
        "sw1":   jax.random.normal(ks[0], (31, 32),  jnp.float32) * 0.1,
        "sw2":   jax.random.normal(ks[1], (106, 16), jnp.float32) * 0.1,
        "sw3":   jax.random.normal(ks[2], (226, 8),  jnp.float32) * 0.1,
        "value": jax.random.normal(ks[3], (20, 16),  jnp.float32) * 0.1,
        "share": jax.random.normal(ks[4], (20, 16),  jnp.float32) * 0.1,
        # PyTorch Linear(95, 32) stores weight as [32, 95]; kept pre-transposed [95, 32].
        "w":     jax.random.normal(ks[5], (95, HIDDEN), jnp.float32) * 0.05,
        "b":     jax.random.normal(ks[6], (1, HIDDEN),  jnp.float32) * 0.05,
    }


def reference(x, params):
    """Pure-JAX reference of the PyTorch forward (gather-based, unfused)."""
    xf = x.astype(jnp.float32)
    dy = xf[:, :N_DY]
    idx = x[:, N_DY:].astype(jnp.int32)
    sw1 = params["sw1"][idx[:, 0]]
    sw2 = params["sw2"][idx[:, 1]]
    sw3 = params["sw3"][idx[:, 2]]
    mv = params["value"][idx[:, 3]]
    ms = params["share"][idx[:, 4]]
    stock = jnp.concatenate([dy, sw1, sw2, sw3, mv, ms], axis=1)
    y = stock @ params["w"] + params["b"]
    return jnp.where(y > 0, y, LEAKY_SLOPE * y)


if __name__ == "__main__":
    key = jax.random.PRNGKey(0)
    pkey, dkey, i1, i2, i3, i4, i5 = jax.random.split(key, 7)
    params = init_params(pkey)
    prepared = prepare_params(params)   # one-time fusion, reused across calls

    B = 1000   # not a tile multiple: exercises padding + a 2-step grid
    cont = jax.random.normal(dkey, (B, N_DY), jnp.float32)
    ids = [
        jax.random.randint(i1, (B, 1), 0, 31),
        jax.random.randint(i2, (B, 1), 0, 106),
        jax.random.randint(i3, (B, 1), 0, 226),
        jax.random.randint(i4, (B, 1), 0, 20),
        jax.random.randint(i5, (B, 1), 0, 20),
    ]
    x = jnp.concatenate([cont] + [c.astype(jnp.float32) for c in ids], axis=1)  # [B, 12]

    out = jax.block_until_ready(stock_encoder(x, prepared))
    ref = reference(x, params)
    assert out.shape == (B, HIDDEN)
    max_err = float(jnp.max(jnp.abs(out - ref)))
    assert jnp.allclose(out, ref, atol=2e-5, rtol=2e-5), (
        "mismatch vs reference, max abs err = %g" % max_err)
    print("KERNEL_OK")
</pallas_src>

<mosaic_0001>
module attributes {stable_mosaic.version = 11 : i64} {
  func.func @stock_encoder_kernel(%arg0: i32, %arg1: memref<504x8xf32, #tpu.memory_space<vmem>>, %arg2: memref<504x8xf32, #tpu.memory_space<vmem>>, %arg3: memref<8x512xf32, #tpu.memory_space<vmem>>, %arg4: memref<8x32xf32, #tpu.memory_space<vmem>>, %arg5: memref<512x32xbf16, #tpu.memory_space<vmem>>, %arg6: memref<512x32xbf16, #tpu.memory_space<vmem>>, %arg7: memref<1x32xf32, #tpu.memory_space<vmem>>, %arg8: memref<504x32xf32, #tpu.memory_space<vmem>>) attributes {dimension_semantics = [#tpu.dimension_semantics<parallel>], iteration_bounds = array<i64: 2>, scalar_prefetch = 0 : i64, scratch_operands = 0 : i64, tpu.core_type = #tpu.core_type<tc>, window_params = [{transform_indices = @transform_0, window_bounds = array<i64: 504, 8>}, {transform_indices = @transform_1, window_bounds = array<i64: 504, 8>}, {pipeline_mode = #tpu.pipeline_mode<synchronous>, transform_indices = @transform_2, window_bounds = array<i64: 8, 512>}, {pipeline_mode = #tpu.pipeline_mode<synchronous>, transform_indices = @transform_3, window_bounds = array<i64: 8, 32>}, {pipeline_mode = #tpu.pipeline_mode<synchronous>, transform_indices = @transform_4, window_bounds = array<i64: 512, 32>}, {pipeline_mode = #tpu.pipeline_mode<synchronous>, transform_indices = @transform_5, window_bounds = array<i64: 512, 32>}, {pipeline_mode = #tpu.pipeline_mode<synchronous>, transform_indices = @transform_6, window_bounds = array<i64: 1, 32>}, {transform_indices = @transform_7, window_bounds = array<i64: 504, 32>}]} {
    %c0 = arith.constant 0 : index
    %c0_0 = arith.constant 0 : index
    %0 = vector.load %arg1[%c0, %c0_0] : memref<504x8xf32, #tpu.memory_space<vmem>>, vector<504x8xf32>
    %c0_1 = arith.constant 0 : index
    %c0_2 = arith.constant 0 : index
    %1 = vector.load %arg4[%c0_1, %c0_2] : memref<8x32xf32, #tpu.memory_space<vmem>>, vector<8x32xf32>
    %cst = arith.constant dense<0.000000e+00> : vector<504x32xf32>
    %2 = tpu.matmul %0, %1, %cst {dimension_numbers = #tpu.dot_dimension_numbers<[1], [0], [0], [1], [0, 0, 1, 1], [], []>} : vector<504x8xf32>, vector<8x32xf32>, vector<504x32xf32> -> vector<504x32xf32>
    %c0_3 = arith.constant 0 : index
    %c0_4 = arith.constant 0 : index
    %3 = vector.load %arg2[%c0_3, %c0_4] : memref<504x8xf32, #tpu.memory_space<vmem>>, vector<504x8xf32>
    %c0_5 = arith.constant 0 : index
    %c0_6 = arith.constant 0 : index
    %4 = vector.load %arg3[%c0_5, %c0_6] : memref<8x512xf32, #tpu.memory_space<vmem>>, vector<8x512xf32>
    %cst_7 = arith.constant dense<0.000000e+00> : vector<504x512xf32>
    %5 = tpu.matmul %3, %4, %cst_7 {dimension_numbers = #tpu.dot_dimension_numbers<[1], [0], [0], [1], [0, 0, 1, 1], [], []>} : vector<504x8xf32>, vector<8x512xf32>, vector<504x512xf32> -> vector<504x512xf32>
    %6 = math.absf %5 : vector<504x512xf32>
    %cst_8 = arith.constant 5.000000e-01 : f32
    %7 = vector.broadcast %cst_8 : f32 to vector<504x512xf32>
    %8 = arith.cmpf olt, %6, %7 : vector<504x512xf32>
    %cst_9 = arith.constant 1.000000e+00 : f32
    %cst_10 = arith.constant 0.000000e+00 : f32
    %9 = vector.broadcast %cst_9 : f32 to vector<504x512xf32>
    %10 = vector.broadcast %cst_10 : f32 to vector<504x512xf32>
    %11 = arith.select %8, %9, %10 : vector<504x512xi1>, vector<504x512xf32>
    %12 = arith.truncf %11 : vector<504x512xf32> to vector<504x512xbf16>
    %c0_11 = arith.constant 0 : index
    %c0_12 = arith.constant 0 : index
    %13 = vector.load %arg5[%c0_11, %c0_12] : memref<512x32xbf16, #tpu.memory_space<vmem>>, vector<512x32xbf16>
    %cst_13 = arith.constant dense<0.000000e+00> : vector<504x32xf32>
    %14 = tpu.matmul %12, %13, %cst_13 {dimension_numbers = #tpu.dot_dimension_numbers<[1], [0], [0], [1], [0, 0, 1, 1], [], []>} : vector<504x512xbf16>, vector<512x32xbf16>, vector<504x32xf32> -> vector<504x32xf32>
    %15 = arith.addf %2, %14 : vector<504x32xf32>
    %c0_14 = arith.constant 0 : index
    %c0_15 = arith.constant 0 : index
    %16 = vector.load %arg6[%c0_14, %c0_15] : memref<512x32xbf16, #tpu.memory_space<vmem>>, vector<512x32xbf16>
    %cst_16 = arith.constant dense<0.000000e+00> : vector<504x32xf32>
    %17 = tpu.matmul %12, %16, %cst_16 {dimension_numbers = #tpu.dot_dimension_numbers<[1], [0], [0], [1], [0, 0, 1, 1], [], []>} : vector<504x512xbf16>, vector<512x32xbf16>, vector<504x32xf32> -> vector<504x32xf32>
    %18 = arith.addf %15, %17 : vector<504x32xf32>
    %c0_17 = arith.constant 0 : index
    %c0_18 = arith.constant 0 : index
    %19 = vector.load %arg7[%c0_17, %c0_18] : memref<1x32xf32, #tpu.memory_space<vmem>>, vector<1x32xf32>
    %20 = vector.broadcast %19 : vector<1x32xf32> to vector<504x32xf32>
    %21 = arith.addf %18, %20 : vector<504x32xf32>
    %cst_19 = arith.constant 0.000000e+00 : f32
    %22 = vector.broadcast %cst_19 : f32 to vector<504x32xf32>
    %23 = arith.cmpf ogt, %21, %22 : vector<504x32xf32>
    %cst_20 = arith.constant 0.00999999977 : f32
    %24 = vector.broadcast %cst_20 : f32 to vector<504x32xf32>
    %25 = arith.mulf %24, %21 : vector<504x32xf32>
    %26 = arith.select %23, %21, %25 : vector<504x32xi1>, vector<504x32xf32>
    %c0_21 = arith.constant 0 : index
    %c0_22 = arith.constant 0 : index
    %27 = vector.load %arg8[%c0_21, %c0_22] : memref<504x32xf32, #tpu.memory_space<vmem>>, vector<504x32xf32>
    tpu.vector_store %arg8[%c0_21, %c0_22], %26 {strides = array<i32>} : memref<504x32xf32, #tpu.memory_space<vmem>>, vector<504x32xf32>,
    return
  }
  func.func @transform_0(%arg0: i32) -> (i32, i32) {
    %c0_i32 = arith.constant 0 : i32
    %c0_i32_0 = arith.constant 0 : i32
    return %arg0, %c0_i32 : i32, i32
  }
  func.func @transform_1(%arg0: i32) -> (i32, i32) {
    %c0_i32 = arith.constant 0 : i32
    %c0_i32_0 = arith.constant 0 : i32
    return %arg0, %c0_i32 : i32, i32
  }
  func.func @transform_2(%arg0: i32) -> (i32, i32) {
    %c0_i32 = arith.constant 0 : i32
    %c0_i32_0 = arith.constant 0 : i32
    %c0_i32_1 = arith.constant 0 : i32
    return %c0_i32, %c0_i32_0 : i32, i32
  }
  func.func @transform_3(%arg0: i32) -> (i32, i32) {
    %c0_i32 = arith.constant 0 : i32
    %c0_i32_0 = arith.constant 0 : i32
    %c0_i32_1 = arith.constant 0 : i32
    return %c0_i32, %c0_i32_0 : i32, i32
  }
  func.func @transform_4(%arg0: i32) -> (i32, i32) {
    %c0_i32 = arith.constant 0 : i32
    %c0_i32_0 = arith.constant 0 : i32
    %c0_i32_1 = arith.constant 0 : i32
    return %c0_i32, %c0_i32_0 : i32, i32
  }
  func.func @transform_5(%arg0: i32) -> (i32, i32) {
    %c0_i32 = arith.constant 0 : i32
    %c0_i32_0 = arith.constant 0 : i32
    %c0_i32_1 = arith.constant 0 : i32
    return %c0_i32, %c0_i32_0 : i32, i32
  }
  func.func @transform_6(%arg0: i32) -> (i32, i32) {
    %c0_i32 = arith.constant 0 : i32
    %c0_i32_0 = arith.constant 0 : i32
    %c0_i32_1 = arith.constant 0 : i32
    return %c0_i32, %c0_i32_0 : i32, i32
  }
  func.func @transform_7(%arg0: i32) -> (i32, i32) {
    %c0_i32 = arith.constant 0 : i32
    %c0_i32_0 = arith.constant 0 : i32
    return %arg0, %c0_i32 : i32, i32
  }
}

</mosaic_0001>

<llo_original>
// kernel: stock_encoder.1
$region0: #{stock_encoder.1}
  #allocation0 [shape = 'u32[]', space=smem, size = 0x4, offset = 0x4, fixed_abs, tag = 'smem constant byte address 0x4 - core index']
  #allocation1 [shape = 'u32[144,128]{1,0:T(1,128)}', space=vmem, size = 0x12000, scoped, tag = 'internal scratch']
  %s0 = inlined_call_operand.vmem [shape: f32[1008,8], index: 0, kind: input, shape index: {}]
  %s1 = inlined_call_operand.vmem [shape: f32[1008,8], index: 1, kind: input, shape index: {}]
  %s2 = inlined_call_operand.vmem [shape: f32[8,512], index: 2, kind: input, shape index: {}]
  %s3 = inlined_call_operand.vmem [shape: f32[8,32], index: 3, kind: input, shape index: {}]
  %s4 = inlined_call_operand.vmem [shape: bf16[512,32], index: 4, kind: input, shape index: {}]
  %s5 = inlined_call_operand.vmem [shape: bf16[512,32], index: 5, kind: input, shape index: {}]
  %s6 = inlined_call_operand.vmem [shape: f32[1,32], index: 6, kind: input, shape index: {}]
  %s7 = inlined_call_operand.vmem [shape: f32[1008,32], index: 7, kind: output, shape index: {}]
  %s8 = sld [smem:[#allocation0]]
  $region61: #{stock_encoder.1} parent=0
    _
  %s10 = ssub.s32 1, %s8
  %s11 = scalar_select 0, %s10, %s8
  loop: start=0, step=1, limit=4
  $region2: #{stock_encoder.1} parent=0 // loop_pre_header
    _
  $region3: #{stock_encoder.1} parent=0 // loop_header
    %s13 = sphi 0, %s17
    %p14 = scmp.ge.s32.totalorder %s13, 4
    %s23 = sphi 0, %s25
    %s26 = sphi 0, %s23
    %s27 = sphi 0, %s26
    %s43 = sphi 0, %s27
    %s49 = sphi 0, %s51
    %s52 = sphi 0, %s49
    %s53 = sphi 0, %s52
    %s69 = sphi 0, %s53
    %s73 = sphi 0, %s73
    %s75 = sphi 0, %s73
    %s76 = sphi 0, %s75
    %s90 = sphi 0, %s76
    %s94 = sphi 0, %s94
    %s96 = sphi 0, %s94
    %s97 = sphi 0, %s96
    %s111 = sphi 0, %s97
    %s115 = sphi 0, %s115
    %s117 = sphi 0, %s115
    %s118 = sphi 0, %s117
    %s132 = sphi 0, %s118
    %s136 = sphi 0, %s136
    %s138 = sphi 0, %s136
    %s139 = sphi 0, %s138
    %s153 = sphi 0, %s139
    %s157 = sphi 0, %s157
    %s159 = sphi 0, %s157
    %s160 = sphi 0, %s159
    %s174 = sphi 0, %s160
    %s180 = sphi 0, %s182
    %s183 = sphi 0, %s180
    %s184 = sphi 0, %s183
    %s200 = sphi 0, %s184
  $region4: #{stock_encoder.1} parent=0 // loop_header_branch
    %16 = sbr.rel (%p14) target = $region8
  $region5: #{stock_encoder.1} parent=0 // loop_body
    %s18 = ssub.s32 %s13, 1
    %s19 = ssub.s32 %s13, 2
    %s20 = sadd.s32 %s13, 1
    %s21 = ssub.s32 %s13, %s20
    %p22 = scmp.eq.s32.totalorder %s21, 0
    %s24 = sadd.s32 %s23, 1
    %s25 = scalar_select %p22, %s23, %s24
    %p28 = pneg %p22
    %p29 = scmp.eq.s32.totalorder %s13, 1
    %p30 = por %p28, %p29
    %p31 = scmp.ne.s32.totalorder %s23, %s26
    %p32 = scmp.eq.s32.totalorder %s13, 0
    %p33 = por %p31, %p32
    %p34 = scmp.ne.s32.totalorder %s23, %s26
    %p35 = scmp.eq.s32.totalorder %s18, 1
    %p36 = por %p34, %p35
    %p37 = scmp.ne.s32.totalorder %s26, %s27
    %p38 = scmp.eq.s32.totalorder %s18, 0
    %p39 = por %p37, %p38
    %p40 = scmp.ne.s32.totalorder %s26, %s27
    %p41 = scmp.eq.s32.totalorder %s19, 1
    %p42 = por %p40, %p41
    %p44 = scmp.ne.s32.totalorder %s27, %s43
    %p45 = scmp.eq.s32.totalorder %s19, 0
    %p46 = por %p44, %p45
    %s47 = ssub.s32 %s13, %s20
    %p48 = scmp.eq.s32.totalorder %s47, 0
    %s50 = sadd.s32 %s49, 1
    %s51 = scalar_select %p48, %s49, %s50
    %p54 = pneg %p48
    %p55 = scmp.eq.s32.totalorder %s13, 1
    %p56 = por %p54, %p55
    %p57 = scmp.ne.s32.totalorder %s49, %s52
    %p58 = scmp.eq.s32.totalorder %s13, 0
    %p59 = por %p57, %p58
    %p60 = scmp.ne.s32.totalorder %s49, %s52
    %p61 = scmp.eq.s32.totalorder %s18, 1
    %p62 = por %p60, %p61
    %p63 = scmp.ne.s32.totalorder %s52, %s53
    %p64 = scmp.eq.s32.totalorder %s18, 0
    %p65 = por %p63, %p64
    %p66 = scmp.ne.s32.totalorder %s52, %s53
    %p67 = scmp.eq.s32.totalorder %s19, 1
    %p68 = por %p66, %p67
    %p70 = scmp.ne.s32.totalorder %s53, %s69
    %p71 = scmp.eq.s32.totalorder %s19, 0
    %p72 = por %p70, %p71
    %s74 = sadd.s32 %s73, 1
    %p77 = scmp.eq.s32.totalorder %s13, 1
    %p78 = scmp.ne.s32.totalorder %s73, %s75
    %p79 = scmp.eq.s32.totalorder %s13, 0
    %p80 = por %p78, %p79
    %p81 = scmp.ne.s32.totalorder %s73, %s75
    %p82 = scmp.eq.s32.totalorder %s18, 1
    %p83 = por %p81, %p82
    %p84 = scmp.ne.s32.totalorder %s75, %s76
    %p85 = scmp.eq.s32.totalorder %s18, 0
    %p86 = por %p84, %p85
    %p87 = scmp.ne.s32.totalorder %s75, %s76
    %p88 = scmp.eq.s32.totalorder %s19, 1
    %p89 = por %p87, %p88
    %p91 = scmp.ne.s32.totalorder %s76, %s90
    %p92 = scmp.eq.s32.totalorder %s19, 0
    %p93 = por %p91, %p92
    %s95 = sadd.s32 %s94, 1
    %p98 = scmp.eq.s32.totalorder %s13, 1
    %p99 = scmp.ne.s32.totalorder %s94, %s96
    %p100 = scmp.eq.s32.totalorder %s13, 0
    %p101 = por %p99, %p100
    %p102 = scmp.ne.s32.totalorder %s94, %s96
    %p103 = scmp.eq.s32.totalorder %s18, 1
    %p104 = por %p102, %p103
    %p105 = scmp.ne.s32.totalorder %s96, %s97
    %p106 = scmp.eq.s32.totalorder %s18, 0
    %p107 = por %p105, %p106
    %p108 = scmp.ne.s32.totalorder %s96, %s97
    %p109 = scmp.eq.s32.totalorder %s19, 1
    %p110 = por %p108, %p109
    %p112 = scmp.ne.s32.totalorder %s97, %s111
    %p113 = scmp.eq.s32.totalorder %s19, 0
    %p114 = por %p112, %p113
    %s116 = sadd.s32 %s115, 1
    %p119 = scmp.eq.s32.totalorder %s13, 1
    %p120 = scmp.ne.s32.totalorder %s115, %s117
    %p121 = scmp.eq.s32.totalorder %s13, 0
    %p122 = por %p120, %p121
    %p123 = scmp.ne.s32.totalorder %s115, %s117
    %p124 = scmp.eq.s32.totalorder %s18, 1
    %p125 = por %p123, %p124
    %p126 = scmp.ne.s32.totalorder %s117, %s118
    %p127 = scmp.eq.s32.totalorder %s18, 0
    %p128 = por %p126, %p127
    %p129 = scmp.ne.s32.totalorder %s117, %s118
    %p130 = scmp.eq.s32.totalorder %s19, 1
    %p131 = por %p129, %p130
    %p133 = scmp.ne.s32.totalorder %s118, %s132
    %p134 = scmp.eq.s32.totalorder %s19, 0
    %p135 = por %p133, %p134
    %s137 = sadd.s32 %s136, 1
    %p140 = scmp.eq.s32.totalorder %s13, 1
    %p141 = scmp.ne.s32.totalorder %s136, %s138
    %p142 = scmp.eq.s32.totalorder %s13, 0
    %p143 = por %p141, %p142
    %p144 = scmp.ne.s32.totalorder %s136, %s138
    %p145 = scmp.eq.s32.totalorder %s18, 1
    %p146 = por %p144, %p145
    %p147 = scmp.ne.s32.totalorder %s138, %s139
    %p148 = scmp.eq.s32.totalorder %s18, 0
    %p149 = por %p147, %p148
    %p150 = scmp.ne.s32.totalorder %s138, %s139
    %p151 = scmp.eq.s32.totalorder %s19, 1
    %p152 = por %p150, %p151
    %p154 = scmp.ne.s32.totalorder %s139, %s153
    %p155 = scmp.eq.s32.totalorder %s19, 0
    %p156 = por %p154, %p155
    %s158 = sadd.s32 %s157, 1
    %p161 = scmp.eq.s32.totalorder %s13, 1
    %p162 = scmp.ne.s32.totalorder %s157, %s159
    %p163 = scmp.eq.s32.totalorder %s13, 0
    %p164 = por %p162, %p163
    %p165 = scmp.ne.s32.totalorder %s157, %s159
    %p166 = scmp.eq.s32.totalorder %s18, 1
    %p167 = por %p165, %p166
    %p168 = scmp.ne.s32.totalorder %s159, %s160
    %p169 = scmp.eq.s32.totalorder %s18, 0
    %p170 = por %p168, %p169
    %p171 = scmp.ne.s32.totalorder %s159, %s160
    %p172 = scmp.eq.s32.totalorder %s19, 1
    %p173 = por %p171, %p172
    %p175 = scmp.ne.s32.totalorder %s160, %s174
    %p176 = scmp.eq.s32.totalorder %s19, 0
    %p177 = por %p175, %p176
    %s178 = ssub.s32 %s13, %s20
    %p179 = scmp.eq.s32.totalorder %s178, 0
    %s181 = sadd.s32 %s180, 1
    %s182 = scalar_select %p179, %s180, %s181
    %p185 = pneg %p179
    %p186 = scmp.eq.s32.totalorder %s13, 1
    %p187 = por %p185, %p186
    %p188 = scmp.ne.s32.totalorder %s180, %s183
    %p189 = scmp.eq.s32.totalorder %s13, 0
    %p190 = por %p188, %p189
    %p191 = scmp.ne.s32.totalorder %s180, %s183
    %p192 = scmp.eq.s32.totalorder %s18, 1
    %p193 = por %p191, %p192
    %p194 = scmp.ne.s32.totalorder %s183, %s184
    %p195 = scmp.eq.s32.totalorder %s18, 0
    %p196 = por %p194, %p195
    %p197 = scmp.ne.s32.totalorder %s183, %s184
    %p198 = scmp.eq.s32.totalorder %s19, 1
    %p199 = por %p197, %p198
    %p201 = scmp.ne.s32.totalorder %s184, %s200
    %p202 = scmp.eq.s32.totalorder %s19, 0
    %p203 = por %p201, %p202
    %p204 = scmp.le.s32.totalorder 1, %s13
    %p205 = scmp.lt.s32.totalorder %s13, 3
    %p206 = pnand %p204, %p205
    %p207 = pneg %p206
    // Predicated region
    $region9: #{stock_encoder.1} parent=5 // pred_check
      _
    $region10: #{stock_encoder.1} parent=5 // pred_check_branch
      %209 = sbr.rel (%p206) target = $region12
    $region11: #{stock_encoder.1} parent=5 // pred_region
      %s210 = ssub.s32 %s13, 1
      // Predicated region
      $region13: #{stock_encoder.1} parent=11 // pred_check
        %p211 = pneg %p86
      $region14: #{stock_encoder.1} parent=11 // pred_check_branch
        %213 = sbr.rel (%p211) target = $region16
      $region15: #{stock_encoder.1} parent=11 // pred_region
        _
      $region16: #{stock_encoder.1} parent=11 // pred_fallthru
        _
      // Predicated region
      $region17: #{stock_encoder.1} parent=11 // pred_check
        %p214 = pneg %p107
      $region18: #{stock_encoder.1} parent=11 // pred_check_branch
        %216 = sbr.rel (%p214) target = $region20
      $region19: #{stock_encoder.1} parent=11 // pred_region
        _
      $region20: #{stock_encoder.1} parent=11 // pred_fallthru
        _
      // Predicated region
      $region21: #{stock_encoder.1} parent=11 // pred_check
        %p217 = pneg %p128
      $region22: #{stock_encoder.1} parent=11 // pred_check_branch
        %219 = sbr.rel (%p217) target = $region24
      $region23: #{stock_encoder.1} parent=11 // pred_region
        _
      $region24: #{stock_encoder.1} parent=11 // pred_fallthru
        _
      // Predicated region
      $region25: #{stock_encoder.1} parent=11 // pred_check
        %p220 = pneg %p149
      $region26: #{stock_encoder.1} parent=11 // pred_check_branch
        %222 = sbr.rel (%p220) target = $region28
      $region27: #{stock_encoder.1} parent=11 // pred_region
        _
      $region28: #{stock_encoder.1} parent=11 // pred_fallthru
        _
      // Predicated region
      $region29: #{stock_encoder.1} parent=11 // pred_check
        %p223 = pneg %p170
      $region30: #{stock_encoder.1} parent=11 // pred_check_branch
        %225 = sbr.rel (%p223) target = $region32
      $region31: #{stock_encoder.1} parent=11 // pred_region
        _
      $region32: #{stock_encoder.1} parent=11 // pred_fallthru
        _
    $region12: #{stock_encoder.1} parent=5 // pred_fallthru
      _
    %p226 = scmp.lt.s32.totalorder %s13, 2
    // Predicated region
    $region33: #{stock_encoder.1} parent=5 // pred_check
      %p227 = pneg %p226
    $region34: #{stock_encoder.1} parent=5 // pred_check_branch
      %229 = sbr.rel (%p227) target = $region36
    $region35: #{stock_encoder.1} parent=5 // pred_region
      // Predicated region
      $region37: #{stock_encoder.1} parent=35 // pred_check
        %p230 = pneg %p33
      $region38: #{stock_encoder.1} parent=35 // pred_check_branch
        %232 = sbr.rel (%p230) target = $region40
      $region39: #{stock_encoder.1} parent=35 // pred_region
        %s233 = smul.u32 63, %s13
        %p234 = scmp.lt.s32.totalorder %s233, 125
        %s235 = scalar_select %p234, %s233, 125
        %s236 = smul.addr %s235, 8
        %s237 = scalar_lea.vmem %s0, %s236
        %s238 = smul.u32 63, %s13
      $region40: #{stock_encoder.1} parent=35 // pred_fallthru
        _
      // Predicated region
      $region41: #{stock_encoder.1} parent=35 // pred_check
        %p239 = pneg %p59
      $region42: #{stock_encoder.1} parent=35 // pred_check_branch
        %241 = sbr.rel (%p239) target = $region44
      $region43: #{stock_encoder.1} parent=35 // pred_region
        %s242 = smul.u32 63, %s13
        %p243 = scmp.lt.s32.totalorder %s242, 125
        %s244 = scalar_select %p243, %s242, 125
        %s245 = smul.addr %s244, 8
        %s246 = scalar_lea.vmem %s1, %s245
        %s247 = smul.u32 63, %s13
      $region44: #{stock_encoder.1} parent=35 // pred_fallthru
        _
    $region36: #{stock_encoder.1} parent=5 // pred_fallthru
      _
    %p248 = scmp.le.s32.totalorder 1, %s13
    %p249 = scmp.lt.s32.totalorder %s13, 3
    %p250 = pnand %p248, %p249
    %p251 = pneg %p250
    // Predicated region
    $region45: #{stock_encoder.1} parent=5 // pred_check
      _
    $region46: #{stock_encoder.1} parent=5 // pred_check_branch
      %253 = sbr.rel (%p250) target = $region48
    $region47: #{stock_encoder.1} parent=5 // pred_region
      %s254 = ssub.s32 %s13, 1
      %s255 = smul.u32 63, %s18
      %p256 = scmp.lt.s32.totalorder %s255, 125
      %s257 = scalar_select %p256, %s255, 125
      %s258 = smul.addr %s257, 8
      %s259 = scalar_lea.vmem %s0, %s258
      %p260 = pneg %p39
      %p261 = pneg %p36
      %s262 = smul.u32 63, %s18
      %p263 = scmp.lt.s32.totalorder %s262, 125
      %s264 = scalar_select %p263, %s262, 125
      %s265 = smul.addr %s264, 8
      %s266 = scalar_lea.vmem %s1, %s265
      %p267 = pneg %p65
      %p268 = pneg %p62
      %p269 = pneg %p86
      %p270 = pneg %p83
      %p271 = pneg %p107
      %p272 = pneg %p104
      %p273 = pneg %p128
      %p274 = pneg %p125
      %p275 = pneg %p149
      %p276 = pneg %p146
      %p277 = pneg %p170
      %p278 = pneg %p167
      %p279 = pneg %p196
      %p280 = pneg %p193
      %s281 = smul.u32 63, %s18
      %p282 = scmp.lt.s32.totalorder %s281, 125
      %s283 = scalar_select %p282, %s281, 125
      %s284 = smul.addr %s283, 8
      %s285 = scalar_lea.vmem %s7, %s284
      %s286 = smul.u32 63, %s18
      %p287 = scmp.lt.s32.totalorder %s286, 125
      %s288 = scalar_select %p287, %s286, 125
      %s289 = smul.addr %s288, 8
      %s290 = scalar_lea.vmem %s0, %s289
      %s291 = smul.u32 63, %s18
      %s292 = smul.u32 63, %s18
      %p293 = scmp.lt.s32.totalorder %s292, 125
      %s294 = scalar_select %p293, %s292, 125
      %s295 = smul.addr %s294, 8
      %s296 = scalar_lea.vmem %s1, %s295
      %s297 = smul.u32 63, %s18
      %s298 = smul.u32 63, %s18
      %p299 = scmp.lt.s32.totalorder %s298, 125
      %s300 = scalar_select %p299, %s298, 125
      %s301 = smul.addr %s300, 8
      %s302 = scalar_lea.vmem %s7, %s301
      %s303 = smul.u32 63, %s18
      %v305 = vld [vmem:[%s290] sm:$0xff]
      %v306 = vld [vmem:[%s290 + $0x8] sm:$0xff]
      %v307 = vld [vmem:[%s290 + $0x10] sm:$0xff]
      %v308 = vld [vmem:[%s290 + $0x18] sm:$0xff]
      %v309 = vld [vmem:[%s290 + $0x20] sm:$0xff]
      %v310 = vld [vmem:[%s290 + $0x28] sm:$0xff]
      %v311 = vld [vmem:[%s290 + $0x30] sm:$0xff]
      %v312 = vld [vmem:[%s290 + $0x38] sm:$0xff]
      %v313 = vld [vmem:[%s290 + $0x40] sm:$0xff]
      %v314 = vld [vmem:[%s290 + $0x48] sm:$0xff]
      %v315 = vld [vmem:[%s290 + $0x50] sm:$0xff]
      %v316 = vld [vmem:[%s290 + $0x58] sm:$0xff]
      %v317 = vld [vmem:[%s290 + $0x60] sm:$0xff]
      %v318 = vld [vmem:[%s290 + $0x68] sm:$0xff]
      %v319 = vld [vmem:[%s290 + $0x70] sm:$0xff]
      %v320 = vld [vmem:[%s290 + $0x78] sm:$0xff]
      %v321 = vld [vmem:[%s290 + $0x80] sm:$0xff]
      %v322 = vld [vmem:[%s290 + $0x88] sm:$0xff]
      %v323 = vld [vmem:[%s290 + $0x90] sm:$0xff]
      %v324 = vld [vmem:[%s290 + $0x98] sm:$0xff]
      %v325 = vld [vmem:[%s290 + $0xa0] sm:$0xff]
      %v326 = vld [vmem:[%s290 + $0xa8] sm:$0xff]
      %v327 = vld [vmem:[%s290 + $0xb0] sm:$0xff]
      %v328 = vld [vmem:[%s290 + $0xb8] sm:$0xff]
      %v329 = vld [vmem:[%s290 + $0xc0] sm:$0xff]
      %v330 = vld [vmem:[%s290 + $0xc8] sm:$0xff]
      %v331 = vld [vmem:[%s290 + $0xd0] sm:$0xff]
      %v332 = vld [vmem:[%s290 + $0xd8] sm:$0xff]
      %v333 = vld [vmem:[%s290 + $0xe0] sm:$0xff]
      %v334 = vld [vmem:[%s290 + $0xe8] sm:$0xff]
      %v335 = vld [vmem:[%s290 + $0xf0] sm:$0xff]
      %v336 = vld [vmem:[%s290 + $0xf8] sm:$0xff]
      %v337 = vld [vmem:[%s290 + $0x100] sm:$0xff]
      %v338 = vld [vmem:[%s290 + $0x108] sm:$0xff]
      %v339 = vld [vmem:[%s290 + $0x110] sm:$0xff]
      %v340 = vld [vmem:[%s290 + $0x118] sm:$0xff]
      %v341 = vld [vmem:[%s290 + $0x120] sm:$0xff]
      %v342 = vld [vmem:[%s290 + $0x128] sm:$0xff]
      %v343 = vld [vmem:[%s290 + $0x130] sm:$0xff]
      %v344 = vld [vmem:[%s290 + $0x138] sm:$0xff]
      %v345 = vld [vmem:[%s290 + $0x140] sm:$0xff]
      %v346 = vld [vmem:[%s290 + $0x148] sm:$0xff]
      %v347 = vld [vmem:[%s290 + $0x150] sm:$0xff]
      %v348 = vld [vmem:[%s290 + $0x158] sm:$0xff]
      %v349 = vld [vmem:[%s290 + $0x160] sm:$0xff]
      %v350 = vld [vmem:[%s290 + $0x168] sm:$0xff]
      %v351 = vld [vmem:[%s290 + $0x170] sm:$0xff]
      %v352 = vld [vmem:[%s290 + $0x178] sm:$0xff]
      %v353 = vld [vmem:[%s290 + $0x180] sm:$0xff]
      %v354 = vld [vmem:[%s290 + $0x188] sm:$0xff]
      %v355 = vld [vmem:[%s290 + $0x190] sm:$0xff]
      %v356 = vld [vmem:[%s290 + $0x198] sm:$0xff]
      %v357 = vld [vmem:[%s290 + $0x1a0] sm:$0xff]
      %v358 = vld [vmem:[%s290 + $0x1a8] sm:$0xff]
      %v359 = vld [vmem:[%s290 + $0x1b0] sm:$0xff]
      %v360 = vld [vmem:[%s290 + $0x1b8] sm:$0xff]
      %v361 = vld [vmem:[%s290 + $0x1c0] sm:$0xff]
      %v362 = vld [vmem:[%s290 + $0x1c8] sm:$0xff]
      %v363 = vld [vmem:[%s290 + $0x1d0] sm:$0xff]
      %v364 = vld [vmem:[%s290 + $0x1d8] sm:$0xff]
      %v365 = vld [vmem:[%s290 + $0x1e0] sm:$0xff]
      %v366 = vld [vmem:[%s290 + $0x1e8] sm:$0xff]
      %v367 = vld [vmem:[%s290 + $0x1f0] sm:$0xff]
      %v368 = vld [vmem:[%s3] sm:$0xff]
      %v369 = vld [vmem:[%s296] sm:$0xff]
      %v370 = vld [vmem:[%s296 + $0x8] sm:$0xff]
      %v371 = vld [vmem:[%s296 + $0x10] sm:$0xff]
      %v372 = vld [vmem:[%s296 + $0x18] sm:$0xff]
      %v373 = vld [vmem:[%s296 + $0x20] sm:$0xff]
      %v374 = vld [vmem:[%s296 + $0x28] sm:$0xff]
      %v375 = vld [vmem:[%s296 + $0x30] sm:$0xff]
      %v376 = vld [vmem:[%s296 + $0x38] sm:$0xff]
      %v377 = vld [vmem:[%s296 + $0x40] sm:$0xff]
      %v378 = vld [vmem:[%s296 + $0x48] sm:$0xff]
      %v379 = vld [vmem:[%s296 + $0x50] sm:$0xff]
      %v380 = vld [vmem:[%s296 + $0x58] sm:$0xff]
      %v381 = vld [vmem:[%s296 + $0x60] sm:$0xff]
      %v382 = vld [vmem:[%s296 + $0x68] sm:$0xff]
      %v383 = vld [vmem:[%s296 + $0x70] sm:$0xff]
      %v384 = vld [vmem:[%s296 + $0x78] sm:$0xff]
      %v385 = vld [vmem:[%s296 + $0x80] sm:$0xff]
      %v386 = vld [vmem:[%s296 + $0x88] sm:$0xff]
      %v387 = vld [vmem:[%s296 + $0x90] sm:$0xff]
      %v388 = vld [vmem:[%s296 + $0x98] sm:$0xff]
      %v389 = vld [vmem:[%s296 + $0xa0] sm:$0xff]
      %v390 = vld [vmem:[%s296 + $0xa8] sm:$0xff]
      %v391 = vld [vmem:[%s296 + $0xb0] sm:$0xff]
      %v392 = vld [vmem:[%s296 + $0xb8] sm:$0xff]
      %v393 = vld [vmem:[%s296 + $0xc0] sm:$0xff]
      %v394 = vld [vmem:[%s296 + $0xc8] sm:$0xff]
      %v395 = vld [vmem:[%s296 + $0xd0] sm:$0xff]
      %v396 = vld [vmem:[%s296 + $0xd8] sm:$0xff]
      %v397 = vld [vmem:[%s296 + $0xe0] sm:$0xff]
      %v398 = vld [vmem:[%s296 + $0xe8] sm:$0xff]
      %v399 = vld [vmem:[%s296 + $0xf0] sm:$0xff]
      %v400 = vld [vmem:[%s296 + $0xf8] sm:$0xff]
      %v401 = vld [vmem:[%s296 + $0x100] sm:$0xff]
      %v402 = vld [vmem:[%s296 + $0x108] sm:$0xff]
      %v403 = vld [vmem:[%s296 + $0x110] sm:$0xff]
      %v404 = vld [vmem:[%s296 + $0x118] sm:$0xff]
      %v405 = vld [vmem:[%s296 + $0x120] sm:$0xff]
      %v406 = vld [vmem:[%s296 + $0x128] sm:$0xff]
      %v407 = vld [vmem:[%s296 + $0x130] sm:$0xff]
      %v408 = vld [vmem:[%s296 + $0x138] sm:$0xff]
      %v409 = vld [vmem:[%s296 + $0x140] sm:$0xff]
      %v410 = vld [vmem:[%s296 + $0x148] sm:$0xff]
      %v411 = vld [vmem:[%s296 + $0x150] sm:$0xff]
      %v412 = vld [vmem:[%s296 + $0x158] sm:$0xff]
      %v413 = vld [vmem:[%s296 + $0x160] sm:$0xff]
      %v414 = vld [vmem:[%s296 + $0x168] sm:$0xff]
      %v415 = vld [vmem:[%s296 + $0x170] sm:$0xff]
      %v416 = vld [vmem:[%s296 + $0x178] sm:$0xff]
      %v417 = vld [vmem:[%s296 + $0x180] sm:$0xff]
      %v418 = vld [vmem:[%s296 + $0x188] sm:$0xff]
      %v419 = vld [vmem:[%s296 + $0x190] sm:$0xff]
      %v420 = vld [vmem:[%s296 + $0x198] sm:$0xff]
      %v421 = vld [vmem:[%s296 + $0x1a0] sm:$0xff]
      %v422 = vld [vmem:[%s296 + $0x1a8] sm:$0xff]
      %v423 = vld [vmem:[%s296 + $0x1b0] sm:$0xff]
      %v424 = vld [vmem:[%s296 + $0x1b8] sm:$0xff]
      %v425 = vld [vmem:[%s296 + $0x1c0] sm:$0xff]
      %v426 = vld [vmem:[%s296 + $0x1c8] sm:$0xff]
      %v427 = vld [vmem:[%s296 + $0x1d0] sm:$0xff]
      %v428 = vld [vmem:[%s296 + $0x1d8] sm:$0xff]
      %v429 = vld [vmem:[%s296 + $0x1e0] sm:$0xff]
      %v430 = vld [vmem:[%s296 + $0x1e8] sm:$0xff]
      %v431 = vld [vmem:[%s296 + $0x1f0] sm:$0xff]
      %v432 = vld [vmem:[%s2] sm:$0xff]
      %v433 = vld [vmem:[%s2 + $0x8] sm:$0xff]
      %v434 = vld [vmem:[%s2 + $0x10] sm:$0xff]
      %v435 = vld [vmem:[%s2 + $0x18] sm:$0xff]
      %vm436 = vcmask 64512
      %v438 = vsel %vm436, %v369, 0
      %v441 = vsel %vm436, %v370, 0
      %v444 = vsel %vm436, %v371, 0
      %v447 = vsel %vm436, %v372, 0
      %v450 = vsel %vm436, %v373, 0
      %v453 = vsel %vm436, %v374, 0
      %v456 = vsel %vm436, %v375, 0
      %v459 = vsel %vm436, %v376, 0
      %v462 = vsel %vm436, %v377, 0
      %v465 = vsel %vm436, %v378, 0
      %v468 = vsel %vm436, %v379, 0
      %v471 = vsel %vm436, %v380, 0
      %v474 = vsel %vm436, %v381, 0
      %v477 = vsel %vm436, %v382, 0
      %v480 = vsel %vm436, %v383, 0
      %v483 = vsel %vm436, %v384, 0
      %v486 = vsel %vm436, %v385, 0
      %v489 = vsel %vm436, %v386, 0
      %v492 = vsel %vm436, %v387, 0
      %v495 = vsel %vm436, %v388, 0
      %v498 = vsel %vm436, %v389, 0
      %v501 = vsel %vm436, %v390, 0
      %v504 = vsel %vm436, %v391, 0
      %v507 = vsel %vm436, %v392, 0
      %v510 = vsel %vm436, %v393, 0
      %v513 = vsel %vm436, %v394, 0
      %v516 = vsel %vm436, %v395, 0
      %v519 = vsel %vm436, %v396, 0
      %v522 = vsel %vm436, %v397, 0
      %v525 = vsel %vm436, %v398, 0
      %v528 = vsel %vm436, %v399, 0
      %v531 = vsel %vm436, %v400, 0
      %v534 = vsel %vm436, %v401, 0
      %v537 = vsel %vm436, %v402, 0
      %v540 = vsel %vm436, %v403, 0
      %v543 = vsel %vm436, %v404, 0
      %v546 = vsel %vm436, %v405, 0
      %v549 = vsel %vm436, %v406, 0
      %v552 = vsel %vm436, %v407, 0
      %v555 = vsel %vm436, %v408, 0
      %v558 = vsel %vm436, %v409, 0
      %v561 = vsel %vm436, %v410, 0
      %v564 = vsel %vm436, %v411, 0
      %v567 = vsel %vm436, %v412, 0
      %v570 = vsel %vm436, %v413, 0
      %v573 = vsel %vm436, %v414, 0
      %v576 = vsel %vm436, %v415, 0
      %v579 = vsel %vm436, %v416, 0
      %v582 = vsel %vm436, %v417, 0
      %v585 = vsel %vm436, %v418, 0
      %v588 = vsel %vm436, %v419, 0
      %v591 = vsel %vm436, %v420, 0
      %v594 = vsel %vm436, %v421, 0
      %v597 = vsel %vm436, %v422, 0
      %v600 = vsel %vm436, %v423, 0
      %v603 = vsel %vm436, %v424, 0
      %v606 = vsel %vm436, %v425, 0
      %v609 = vsel %vm436, %v426, 0
      %v612 = vsel %vm436, %v427, 0
      %v615 = vsel %vm436, %v428, 0
      %v618 = vsel %vm436, %v429, 0
      %v621 = vsel %vm436, %v430, 0
      %v624 = vsel %vm436, %v431, 0
      %626 = vmatprep.subr.mxu0 %v433
      %627 = vmatpush1.msra.mxu0 %v432
      %628 = vmatprep.subr.mxu0 0.0
      %629 = vmatpush1.msra.mxu0 0.0
      %630 = vmatprep.subr.mxu0 0.0
      %631 = vmatpush1.msra.mxu0 0.0
      %632 = vmatprep.subr.mxu0 0.0
      %633 = vmatpush1.msra.mxu0 0.0
      %634 = vmatprep.subr.mxu0 0.0
      %635 = vmatpush1.msra.mxu0 0.0
      %636 = vmatprep.subr.mxu0 0.0
      %637 = vmatpush1.msra.mxu0 0.0
      %638 = vmatprep.subr.mxu0 0.0
      %639 = vmatpush1.msra.mxu0 0.0
      %640 = vmatprep.subr.mxu0 0.0
      %641 = vmatpush1.msra.mxu0 0.0
      %642 = vmatprep.subr.mxu0 0.0
      %643 = vmatpush1.msra.mxu0 0.0
      %644 = vmatprep.subr.mxu0 0.0
      %645 = vmatpush1.msra.mxu0 0.0
      %646 = vmatprep.subr.mxu0 0.0
      %647 = vmatpush1.msra.mxu0 0.0
      %648 = vmatprep.subr.mxu0 0.0
      %649 = vmatpush1.msra.mxu0 0.0
      %650 = vmatprep.subr.mxu0 0.0
      %651 = vmatpush1.msra.mxu0 0.0
      %652 = vmatprep.subr.mxu0 0.0
      %653 = vmatpush1.msra.mxu0 0.0
      %654 = vmatprep.subr.mxu0 0.0
      %655 = vmatpush1.msra.mxu0 0.0
      %656 = vmatprep.subr.mxu0 0.0
      %657 = vmatpush1.msra.mxu0 0.0
      %658 = vmatprep.subr.mxu0 0.0
      %659 = vmatpush1.msra.mxu0 0.0
      %660 = vmatprep.subr.mxu0 0.0
      %661 = vmatpush1.msra.mxu0 0.0
      %662 = vmatprep.subr.mxu0 0.0
      %663 = vmatpush1.msra.mxu0 0.0
      %664 = vmatprep.subr.mxu0 0.0
      %665 = vmatpush1.msra.mxu0 0.0
      %666 = vmatprep.subr.mxu0 0.0
      %667 = vmatpush1.msra.mxu0 0.0
      %668 = vmatprep.subr.mxu0 0.0
      %669 = vmatpush1.msra.mxu0 0.0
      %670 = vmatprep.subr.mxu0 0.0
      %671 = vmatpush1.msra.mxu0 0.0
      %672 = vmatprep.subr.mxu0 0.0
      %673 = vmatpush1.msra.mxu0 0.0
      %674 = vmatprep.subr.mxu0 0.0
      %675 = vmatpush1.msra.mxu0 0.0
      %676 = vmatprep.subr.mxu0 0.0
      %677 = vmatpush1.msra.mxu0 0.0
      %678 = vmatprep.subr.mxu0 0.0
      %679 = vmatpush1.msra.mxu0 0.0
      %680 = vmatprep.subr.mxu0 0.0
      %681 = vmatpush1.msra.mxu0 0.0
      %682 = vmatprep.subr.mxu0 0.0
      %683 = vmatpush1.msra.mxu0 0.0
      %684 = vmatprep.subr.mxu0 0.0
      %685 = vmatpush1.msra.mxu0 0.0
      %686 = vmatprep.subr.mxu0 0.0
      %687 = vmatpush1.msra.mxu0 0.0
      %688 = vmatprep.subr.mxu0 0.0
      %689 = vmatpush1.msra.mxu0 0.0
      %690 = vmatprep.mubr.f32.mxu0 0.0
      %691 = vmatmul.mubr.f32.gmra.mrb[0].mxu0 %v438
      %v692 = vpop.f32.mrb[0].mxu0
      %v693 = vadd.f32 0.0, %v692
      %v694 = vpop.f32.mrb[0].mxu0
      %v695 = vadd.f32 0.0, %v694
      %696 = vmatprep.mubr.f32.mxu0 0.0
      %697 = vmatmul.mubr.f32.gmra.mrb[0].mxu0 %v441
      %v698 = vpop.f32.mrb[0].mxu0
      %v699 = vadd.f32 0.0, %v698
      %v700 = vpop.f32.mrb[0].mxu0
      %v701 = vadd.f32 0.0, %v700
      %702 = vmatprep.mubr.f32.mxu0 0.0
      %703 = vmatmul.mubr.f32.gmra.mrb[0].mxu0 %v444
      %v704 = vpop.f32.mrb[0].mxu0
      %v705 = vadd.f32 0.0, %v704
      %v706 = vpop.f32.mrb[0].mxu0
      %v707 = vadd.f32 0.0, %v706
      %708 = vmatprep.mubr.f32.mxu0 0.0
      %709 = vmatmul.mubr.f32.gmra.mrb[0].mxu0 %v447
      %v710 = vpop.f32.mrb[0].mxu0
      %v711 = vadd.f32 0.0, %v710
      %v712 = vpop.f32.mrb[0].mxu0
      %v713 = vadd.f32 0.0, %v712
      %714 = vmatprep.mubr.f32.mxu0 0.0
      %715 = vmatmul.mubr.f32.gmra.mrb[0].mxu0 %v450
      %v716 = vpop.f32.mrb[0].mxu0
      %v717 = vadd.f32 0.0, %v716
      %v718 = vpop.f32.mrb[0].mxu0
      %v719 = vadd.f32 0.0, %v718
      %720 = vmatprep.mubr.f32.mxu0 0.0
      %721 = vmatmul.mubr.f32.gmra.mrb[0].mxu0 %v453
      %v722 = vpop.f32.mrb[0].mxu0
      %v723 = vadd.f32 0.0, %v722
      %v724 = vpop.f32.mrb[0].mxu0
      %v725 = vadd.f32 0.0, %v724
      %726 = vmatprep.mubr.f32.mxu0 0.0
      %727 = vmatmul.mubr.f32.gmra.mrb[0].mxu0 %v456
      %v728 = vpop.f32.mrb[0].mxu0
      %v729 = vadd.f32 0.0, %v728
      %v730 = vpop.f32.mrb[0].mxu0
      %v731 = vadd.f32 0.0, %v730
      %732 = vmatprep.mubr.f32.mxu0 0.0
      %733 = vmatmul.mubr.f32.gmra.mrb[0].mxu0 %v459
      %v734 = vpop.f32.mrb[0].mxu0
      %v735 = vadd.f32 0.0, %v734
      %v736 = vpop.f32.mrb[0].mxu0
      %v737 = vadd.f32 0.0, %v736
      %738 = vmatprep.mubr.f32.mxu0 0.0
      %739 = vmatmul.mubr.f32.gmra.mrb[0].mxu0 %v462
      %v740 = vpop.f32.mrb[0].mxu0
      %v741 = vadd.f32 0.0, %v740
      %v742 = vpop.f32.mrb[0].mxu0
      %v743 = vadd.f32 0.0, %v742
      %744 = vmatprep.mubr.f32.mxu0 0.0
      %745 = vmatmul.mubr.f32.gmra.mrb[0].mxu0 %v465
      %v746 = vpop.f32.mrb[0].mxu0
      %v747 = vadd.f32 0.0, %v746
      %v748 = vpop.f32.mrb[0].mxu0
      %v749 = vadd.f32 0.0, %v748
      %750 = vmatprep.mubr.f32.mxu0 0.0
      %751 = vmatmul.mubr.f32.gmra.mrb[0].mxu0 %v468
      %v752 = vpop.f32.mrb[0].mxu0
      %v753 = vadd.f32 0.0, %v752
      %v754 = vpop.f32.mrb[0].mxu0
      %v755 = vadd.f32 0.0, %v754
      %756 = vmatprep.mubr.f32.mxu0 0.0
      %757 = vmatmul.mubr.f32.gmra.mrb[0].mxu0 %v471
      %v758 = vpop.f32.mrb[0].mxu0
      %v759 = vadd.f32 0.0, %v758
      %v760 = vpop.f32.mrb[0].mxu0
      %v761 = vadd.f32 0.0, %v760
      %762 = vmatprep.mubr.f32.mxu0 0.0
      %763 = vmatmul.mubr.f32.gmra.mrb[0].mxu0 %v474
      %v764 = vpop.f32.mrb[0].mxu0
      %v765 = vadd.f32 0.0, %v764
      %v766 = vpop.f32.mrb[0].mxu0
      %v767 = vadd.f32 0.0, %v766
      %768 = vmatprep.mubr.f32.mxu0 0.0
      %769 = vmatmul.mubr.f32.gmra.mrb[0].mxu0 %v477
      %v770 = vpop.f32.mrb[0].mxu0
      %v771 = vadd.f32 0.0, %v770
      %v772 = vpop.f32.mrb[0].mxu0
      %v773 = vadd.f32 0.0, %v772
      %774 = vmatprep.mubr.f32.mxu0 0.0
      %775 = vmatmul.mubr.f32.gmra.mrb[0].mxu0 %v480
      %v776 = vpop.f32.mrb[0].mxu0
      %v777 = vadd.f32 0.0, %v776
      %v778 = vpop.f32.mrb[0].mxu0
      %v779 = vadd.f32 0.0, %v778
      %780 = vmatprep.mubr.f32.mxu0 0.0
      %781 = vmatmul.mubr.f32.gmra.mrb[0].mxu0 %v483
      %v782 = vpop.f32.mrb[0].mxu0
      %v783 = vadd.f32 0.0, %v782
      %v784 = vpop.f32.mrb[0].mxu0
      %v785 = vadd.f32 0.0, %v784
      %786 = vmatprep.mubr.f32.mxu0 0.0
      %787 = vmatmul.mubr.f32.gmra.mrb[0].mxu0 %v486
      %v788 = vpop.f32.mrb[0].mxu0
      %v789 = vadd.f32 0.0, %v788
      %v790 = vpop.f32.mrb[0].mxu0
      %v791 = vadd.f32 0.0, %v790
      %792 = vmatprep.mubr.f32.mxu0 0.0
      %793 = vmatmul.mubr.f32.gmra.mrb[0].mxu0 %v489
      %v794 = vpop.f32.mrb[0].mxu0
      %v795 = vadd.f32 0.0, %v794
      %v796 = vpop.f32.mrb[0].mxu0
      %v797 = vadd.f32 0.0, %v796
      %798 = vmatprep.mubr.f32.mxu0 0.0
      %799 = vmatmul.mubr.f32.gmra.mrb[0].mxu0 %v492
      %v800 = vpop.f32.mrb[0].mxu0
      %v801 = vadd.f32 0.0, %v800
      %v802 = vpop.f32.mrb[0].mxu0
      %v803 = vadd.f32 0.0, %v802
      %804 = vmatprep.mubr.f32.mxu0 0.0
      %805 = vmatmul.mubr.f32.gmra.mrb[0].mxu0 %v495
      %v806 = vpop.f32.mrb[0].mxu0
      %v807 = vadd.f32 0.0, %v806
      %v808 = vpop.f32.mrb[0].mxu0
      %v809 = vadd.f32 0.0, %v808
      %810 = vmatprep.mubr.f32.mxu0 0.0
      %811 = vmatmul.mubr.f32.gmra.mrb[0].mxu0 %v498
      %v812 = vpop.f32.mrb[0].mxu0
      %v813 = vadd.f32 0.0, %v812
      %v814 = vpop.f32.mrb[0].mxu0
      %v815 = vadd.f32 0.0, %v814
      %816 = vmatprep.mubr.f32.mxu0 0.0
      %817 = vmatmul.mubr.f32.gmra.mrb[0].mxu0 %v501
      %v818 = vpop.f32.mrb[0].mxu0
      %v819 = vadd.f32 0.0, %v818
      %v820 = vpop.f32.mrb[0].mxu0
      %v821 = vadd.f32 0.0, %v820
      %822 = vmatprep.mubr.f32.mxu0 0.0
      %823 = vmatmul.mubr.f32.gmra.mrb[0].mxu0 %v504
      %v824 = vpop.f32.mrb[0].mxu0
      %v825 = vadd.f32 0.0, %v824
      %v826 = vpop.f32.mrb[0].mxu0
      %v827 = vadd.f32 0.0, %v826
      %828 = vmatprep.mubr.f32.mxu0 0.0
      %829 = vmatmul.mubr.f32.gmra.mrb[0].mxu0 %v507
      %v830 = vpop.f32.mrb[0].mxu0
      %v831 = vadd.f32 0.0, %v830
      %v832 = vpop.f32.mrb[0].mxu0
      %v833 = vadd.f32 0.0, %v832
      %834 = vmatprep.mubr.f32.mxu0 0.0
      %835 = vmatmul.mubr.f32.gmra.mrb[0].mxu0 %v510
      %v836 = vpop.f32.mrb[0].mxu0
      %v837 = vadd.f32 0.0, %v836
      %v838 = vpop.f32.mrb[0].mxu0
      %v839 = vadd.f32 0.0, %v838
      %840 = vmatprep.mubr.f32.mxu0 0.0
      %841 = vmatmul.mubr.f32.gmra.mrb[0].mxu0 %v513
      %v842 = vpop.f32.mrb[0].mxu0
      %v843 = vadd.f32 0.0, %v842
      %v844 = vpop.f32.mrb[0].mxu0
      %v845 = vadd.f32 0.0, %v844
      %846 = vmatprep.mubr.f32.mxu0 0.0
      %847 = vmatmul.mubr.f32.gmra.mrb[0].mxu0 %v516
      %v848 = vpop.f32.mrb[0].mxu0
      %v849 = vadd.f32 0.0, %v848
      %v850 = vpop.f32.mrb[0].mxu0
      %v851 = vadd.f32 0.0, %v850
      %852 = vmatprep.mubr.f32.mxu0 0.0
      %853 = vmatmul.mubr.f32.gmra.mrb[0].mxu0 %v519
      %v854 = vpop.f32.mrb[0].mxu0
      %v855 = vadd.f32 0.0, %v854
      %v856 = vpop.f32.mrb[0].mxu0
      %v857 = vadd.f32 0.0, %v856
      %858 = vmatprep.mubr.f32.mxu0 0.0
      %859 = vmatmul.mubr.f32.gmra.mrb[0].mxu0 %v522
      %v860 = vpop.f32.mrb[0].mxu0
      %v861 = vadd.f32 0.0, %v860
      %v862 = vpop.f32.mrb[0].mxu0
      %v863 = vadd.f32 0.0, %v862
      %864 = vmatprep.mubr.f32.mxu0 0.0
      %865 = vmatmul.mubr.f32.gmra.mrb[0].mxu0 %v525
      %v866 = vpop.f32.mrb[0].mxu0
      %v867 = vadd.f32 0.0, %v866
      %v868 = vpop.f32.mrb[0].mxu0
      %v869 = vadd.f32 0.0, %v868
      %870 = vmatprep.mubr.f32.mxu0 0.0
      %871 = vmatmul.mubr.f32.gmra.mrb[0].mxu0 %v528
      %v872 = vpop.f32.mrb[0].mxu0
      %v873 = vadd.f32 0.0, %v872
      %v874 = vpop.f32.mrb[0].mxu0
      %v875 = vadd.f32 0.0, %v874
      %876 = vmatprep.mubr.f32.mxu0 0.0
      %877 = vmatmul.mubr.f32.gmra.mrb[0].mxu0 %v531
      %v878 = vpop.f32.mrb[0].mxu0
      %v879 = vadd.f32 0.0, %v878
      %v880 = vpop.f32.mrb[0].mxu0
      %v881 = vadd.f32 0.0, %v880
      %882 = vmatprep.mubr.f32.mxu0 0.0
      %883 = vmatmul.mubr.f32.gmra.mrb[0].mxu0 %v534
      %v884 = vpop.f32.mrb[0].mxu0
      %v885 = vadd.f32 0.0, %v884
      %v886 = vpop.f32.mrb[0].mxu0
      %v887 = vadd.f32 0.0, %v886
      %888 = vmatprep.mubr.f32.mxu0 0.0
      %889 = vmatmul.mubr.f32.gmra.mrb[0].mxu0 %v537
      %v890 = vpop.f32.mrb[0].mxu0
      %v891 = vadd.f32 0.0, %v890
      %v892 = vpop.f32.mrb[0].mxu0
      %v893 = vadd.f32 0.0, %v892
      %894 = vmatprep.mubr.f32.mxu0 0.0
      %895 = vmatmul.mubr.f32.gmra.mrb[0].mxu0 %v540
      %v896 = vpop.f32.mrb[0].mxu0
      %v897 = vadd.f32 0.0, %v896
      %v898 = vpop.f32.mrb[0].mxu0
      %v899 = vadd.f32 0.0, %v898
      %900 = vmatprep.mubr.f32.mxu0 0.0
      %901 = vmatmul.mubr.f32.gmra.mrb[0].mxu0 %v543
      %v902 = vpop.f32.mrb[0].mxu0
      %v903 = vadd.f32 0.0, %v902
      %v904 = vpop.f32.mrb[0].mxu0
      %v905 = vadd.f32 0.0, %v904
      %906 = vmatprep.mubr.f32.mxu0 0.0
      %907 = vmatmul.mubr.f32.gmra.mrb[0].mxu0 %v546
      %v908 = vpop.f32.mrb[0].mxu0
      %v909 = vadd.f32 0.0, %v908
      %v910 = vpop.f32.mrb[0].mxu0
      %v911 = vadd.f32 0.0, %v910
      %912 = vmatprep.mubr.f32.mxu0 0.0
      %913 = vmatmul.mubr.f32.gmra.mrb[0].mxu0 %v549
      %v914 = vpop.f32.mrb[0].mxu0
      %v915 = vadd.f32 0.0, %v914
      %v916 = vpop.f32.mrb[0].mxu0
      %v917 = vadd.f32 0.0, %v916
      %918 = vmatprep.mubr.f32.mxu0 0.0
      %919 = vmatmul.mubr.f32.gmra.mrb[0].mxu0 %v552
      %v920 = vpop.f32.mrb[0].mxu0
      %v921 = vadd.f32 0.0, %v920
      %v922 = vpop.f32.mrb[0].mxu0
      %v923 = vadd.f32 0.0, %v922
      %924 = vmatprep.mubr.f32.mxu0 0.0
      %925 = vmatmul.mubr.f32.gmra.mrb[0].mxu0 %v555
      %v926 = vpop.f32.mrb[0].mxu0
      %v927 = vadd.f32 0.0, %v926
      %v928 = vpop.f32.mrb[0].mxu0
      %v929 = vadd.f32 0.0, %v928
      %930 = vmatprep.mubr.f32.mxu0 0.0
      %931 = vmatmul.mubr.f32.gmra.mrb[0].mxu0 %v558
      %v932 = vpop.f32.mrb[0].mxu0
      %v933 = vadd.f32 0.0, %v932
      %v934 = vpop.f32.mrb[0].mxu0
      %v935 = vadd.f32 0.0, %v934
      %936 = vmatprep.mubr.f32.mxu0 0.0
      %937 = vmatmul.mubr.f32.gmra.mrb[0].mxu0 %v561
      %v938 = vpop.f32.mrb[0].mxu0
      %v939 = vadd.f32 0.0, %v938
      %v940 = vpop.f32.mrb[0].mxu0
      %v941 = vadd.f32 0.0, %v940
      %942 = vmatprep.mubr.f32.mxu0 0.0
      %943 = vmatmul.mubr.f32.gmra.mrb[0].mxu0 %v564
      %v944 = vpop.f32.mrb[0].mxu0
      %v945 = vadd.f32 0.0, %v944
      %v946 = vpop.f32.mrb[0].mxu0
      %v947 = vadd.f32 0.0, %v946
      %948 = vmatprep.mubr.f32.mxu0 0.0
      %949 = vmatmul.mubr.f32.gmra.mrb[0].mxu0 %v567
      %v950 = vpop.f32.mrb[0].mxu0
      %v951 = vadd.f32 0.0, %v950
      %v952 = vpop.f32.mrb[0].mxu0
      %v953 = vadd.f32 0.0, %v952
      %954 = vmatprep.mubr.f32.mxu0 0.0
      %955 = vmatmul.mubr.f32.gmra.mrb[0].mxu0 %v570
      %v956 = vpop.f32.mrb[0].mxu0
      %v957 = vadd.f32 0.0, %v956
      %v958 = vpop.f32.mrb[0].mxu0
      %v959 = vadd.f32 0.0, %v958
      %960 = vmatprep.mubr.f32.mxu0 0.0
      %961 = vmatmul.mubr.f32.gmra.mrb[0].mxu0 %v573
      %v962 = vpop.f32.mrb[0].mxu0
      %v963 = vadd.f32 0.0, %v962
      %v964 = vpop.f32.mrb[0].mxu0
      %v965 = vadd.f32 0.0, %v964
      %966 = vmatprep.mubr.f32.mxu0 0.0
      %967 = vmatmul.mubr.f32.gmra.mrb[0].mxu0 %v576
      %v968 = vpop.f32.mrb[0].mxu0
      %v969 = vadd.f32 0.0, %v968
      %v970 = vpop.f32.mrb[0].mxu0
      %v971 = vadd.f32 0.0, %v970
      %972 = vmatprep.mubr.f32.mxu0 0.0
      %973 = vmatmul.mubr.f32.gmra.mrb[0].mxu0 %v579
      %v974 = vpop.f32.mrb[0].mxu0
      %v975 = vadd.f32 0.0, %v974
      %v976 = vpop.f32.mrb[0].mxu0
      %v977 = vadd.f32 0.0, %v976
      %978 = vmatprep.mubr.f32.mxu0 0.0
      %979 = vmatmul.mubr.f32.gmra.mrb[0].mxu0 %v582
      %v980 = vpop.f32.mrb[0].mxu0
      %v981 = vadd.f32 0.0, %v980
      %v982 = vpop.f32.mrb[0].mxu0
      %v983 = vadd.f32 0.0, %v982
      %984 = vmatprep.mubr.f32.mxu0 0.0
      %985 = vmatmul.mubr.f32.gmra.mrb[0].mxu0 %v585
      %v986 = vpop.f32.mrb[0].mxu0
      %v987 = vadd.f32 0.0, %v986
      %v988 = vpop.f32.mrb[0].mxu0
      %v989 = vadd.f32 0.0, %v988
      %990 = vmatprep.mubr.f32.mxu0 0.0
      %991 = vmatmul.mubr.f32.gmra.mrb[0].mxu0 %v588
      %v992 = vpop.f32.mrb[0].mxu0
      %v993 = vadd.f32 0.0, %v992
      %v994 = vpop.f32.mrb[0].mxu0
      %v995 = vadd.f32 0.0, %v994
      %996 = vmatprep.mubr.f32.mxu0 0.0
      %997 = vmatmul.mubr.f32.gmra.mrb[0].mxu0 %v591
      %v998 = vpop.f32.mrb[0].mxu0
      %v999 = vadd.f32 0.0, %v998
      %v1000 = vpop.f32.mrb[0].mxu0
      %v1001 = vadd.f32 0.0, %v1000
      %1002 = vmatprep.mubr.f32.mxu0 0.0
      %1003 = vmatmul.mubr.f32.gmra.mrb[0].mxu0 %v594
      %v1004 = vpop.f32.mrb[0].mxu0
      %v1005 = vadd.f32 0.0, %v1004
      %v1006 = vpop.f32.mrb[0].mxu0
      %v1007 = vadd.f32 0.0, %v1006
      %1008 = vmatprep.mubr.f32.mxu0 0.0
      %1009 = vmatmul.mubr.f32.gmra.mrb[0].mxu0 %v597
      %v1010 = vpop.f32.mrb[0].mxu0
      %v1011 = vadd.f32 0.0, %v1010
      %v1012 = vpop.f32.mrb[0].mxu0
      %v1013 = vadd.f32 0.0, %v1012
      %1014 = vmatprep.mubr.f32.mxu0 0.0
      %1015 = vmatmul.mubr.f32.gmra.mrb[0].mxu0 %v600
      %v1016 = vpop.f32.mrb[0].mxu0
      %v1017 = vadd.f32 0.0, %v1016
      %v1018 = vpop.f32.mrb[0].mxu0
      %v1019 = vadd.f32 0.0, %v1018
      %1020 = vmatprep.mubr.f32.mxu0 0.0
      %1021 = vmatmul.mubr.f32.gmra.mrb[0].mxu0 %v603
      %v1022 = vpop.f32.mrb[0].mxu0
      %v1023 = vadd.f32 0.0, %v1022
      %v1024 = vpop.f32.mrb[0].mxu0
      %v1025 = vadd.f32 0.0, %v1024
      %1026 = vmatprep.mubr.f32.mxu0 0.0
      %1027 = vmatmul.mubr.f32.gmra.mrb[0].mxu0 %v606
      %v1028 = vpop.f32.mrb[0].mxu0
      %v1029 = vadd.f32 0.0, %v1028
      %v1030 = vpop.f32.mrb[0].mxu0
      %v1031 = vadd.f32 0.0, %v1030
      %1032 = vmatprep.mubr.f32.mxu0 0.0
      %1033 = vmatmul.mubr.f32.gmra.mrb[0].mxu0 %v609
      %v1034 = vpop.f32.mrb[0].mxu0
      %v1035 = vadd.f32 0.0, %v1034
      %v1036 = vpop.f32.mrb[0].mxu0
      %v1037 = vadd.f32 0.0, %v1036
      %1038 = vmatprep.mubr.f32.mxu0 0.0
      %1039 = vmatmul.mubr.f32.gmra.mrb[0].mxu0 %v612
      %v1040 = vpop.f32.mrb[0].mxu0
      %v1041 = vadd.f32 0.0, %v1040
      %v1042 = vpop.f32.mrb[0].mxu0
      %v1043 = vadd.f32 0.0, %v1042
      %1044 = vmatprep.mubr.f32.mxu0 0.0
      %1045 = vmatmul.mubr.f32.gmra.mrb[0].mxu0 %v615
      %v1046 = vpop.f32.mrb[0].mxu0
      %v1047 = vadd.f32 0.0, %v1046
      %v1048 = vpop.f32.mrb[0].mxu0
      %v1049 = vadd.f32 0.0, %v1048
      %1050 = vmatprep.mubr.f32.mxu0 0.0
      %1051 = vmatmul.mubr.f32.gmra.mrb[0].mxu0 %v618
      %v1052 = vpop.f32.mrb[0].mxu0
      %v1053 = vadd.f32 0.0, %v1052
      %v1054 = vpop.f32.mrb[0].mxu0
      %v1055 = vadd.f32 0.0, %v1054
      %1056 = vmatprep.mubr.f32.mxu0 0.0
      %1057 = vmatmul.mubr.f32.gmra.mrb[0].mxu0 %v621
      %v1058 = vpop.f32.mrb[0].mxu0
      %v1059 = vadd.f32 0.0, %v1058
      %v1060 = vpop.f32.mrb[0].mxu0
      %v1061 = vadd.f32 0.0, %v1060
      %1062 = vmatprep.mubr.f32.mxu0 0.0
      %1063 = vmatmul.mubr.f32.gmra.mrb[0].mxu0 %v624
      %v1064 = vpop.f32.mrb[0].mxu0
      %v1065 = vadd.f32 0.0, %v1064
      %v1066 = vpop.f32.mrb[0].mxu0
      %v1067 = vadd.f32 0.0, %v1066
      %1068 = vdwg.mxu0
      %1069 = vmatprep.subr.mxu0 %v435
      %1070 = vmatpush1.msra.mxu0 %v434
      %1071 = vmatprep.subr.mxu0 0.0
      %1072 = vmatpush1.msra.mxu0 0.0
      %1073 = vmatprep.subr.mxu0 0.0
      %1074 = vmatpush1.msra.mxu0 0.0
      %1075 = vmatprep.subr.mxu0 0.0
      %1076 = vmatpush1.msra.mxu0 0.0
      %1077 = vmatprep.subr.mxu0 0.0
      %1078 = vmatpush1.msra.mxu0 0.0
      %1079 = vmatprep.subr.mxu0 0.0
      %1080 = vmatpush1.msra.mxu0 0.0
      %1081 = vmatprep.subr.mxu0 0.0
      %1082 = vmatpush1.msra.mxu0 0.0
      %1083 = vmatprep.subr.mxu0 0.0
      %1084 = vmatpush1.msra.mxu0 0.0
      %1085 = vmatprep.subr.mxu0 0.0
      %1086 = vmatpush1.msra.mxu0 0.0
      %1087 = vmatprep.subr.mxu0 0.0
      %1088 = vmatpush1.msra.mxu0 0.0
      %1089 = vmatprep.subr.mxu0 0.0
      %1090 = vmatpush1.msra.mxu0 0.0
      %1091 = vmatprep.subr.mxu0 0.0
      %1092 = vmatpush1.msra.mxu0 0.0
      %1093 = vmatprep.subr.mxu0 0.0
      %1094 = vmatpush1.msra.mxu0 0.0
      %1095 = vmatprep.subr.mxu0 0.0
      %1096 = vmatpush1.msra.mxu0 0.0
      %1097 = vmatprep.subr.mxu0 0.0
      %1098 = vmatpush1.msra.mxu0 0.0
      %1099 = vmatprep.subr.mxu0 0.0
      %1100 = vmatpush1.msra.mxu0 0.0
      %1101 = vmatprep.subr.mxu0 0.0
      %1102 = vmatpush1.msra.mxu0 0.0
      %1103 = vmatprep.subr.mxu0 0.0
      %1104 = vmatpush1.msra.mxu0 0.0
      %1105 = vmatprep.subr.mxu0 0.0
      %1106 = vmatpush1.msra.mxu0 0.0
      %1107 = vmatprep.subr.mxu0 0.0
      %1108 = vmatpush1.msra.mxu0 0.0
      %1109 = vmatprep.subr.mxu0 0.0
      %1110 = vmatpush1.msra.mxu0 0.0
      %1111 = vmatprep.subr.mxu0 0.0
      %1112 = vmatpush1.msra.mxu0 0.0
      %1113 = vmatprep.subr.mxu0 0.0
      %1114 = vmatpush1.msra.mxu0 0.0
      %1115 = vmatprep.subr.mxu0 0.0
      %1116 = vmatpush1.msra.mxu0 0.0
      %1117 = vmatprep.subr.mxu0 0.0
      %1118 = vmatpush1.msra.mxu0 0.0
      %1119 = vmatprep.subr.mxu0 0.0
      %1120 = vmatpush1.msra.mxu0 0.0
      %1121 = vmatprep.subr.mxu0 0.0
      %1122 = vmatpush1.msra.mxu0 0.0
      %1123 = vmatprep.subr.mxu0 0.0
      %1124 = vmatpush1.msra.mxu0 0.0
      %1125 = vmatprep.subr.mxu0 0.0
      %1126 = vmatpush1.msra.mxu0 0.0
      %1127 = vmatprep.subr.mxu0 0.0
      %1128 = vmatpush1.msra.mxu0 0.0
      %1129 = vmatprep.subr.mxu0 0.0
      %1130 = vmatpush1.msra.mxu0 0.0
      %1131 = vmatprep.subr.mxu0 0.0
      %1132 = vmatpush1.msra.mxu0 0.0
      %1133 = vmatprep.mubr.f32.mxu0 0.0
      %1134 = vmatmul.mubr.f32.gmra.mrb[0].mxu0 %v438
      %v1135 = vpop.f32.mrb[0].mxu0
      %v1136 = vadd.f32 0.0, %v1135
      %v1137 = vpop.f32.mrb[0].mxu0
      %v1138 = vadd.f32 0.0, %v1137
      %1139 = vmatprep.mubr.f32.mxu0 0.0
      %1140 = vmatmul.mubr.f32.gmra.mrb[0].mxu0 %v441
      %v1141 = vpop.f32.mrb[0].mxu0
      %v1142 = vadd.f32 0.0, %v1141
      %v1143 = vpop.f32.mrb[0].mxu0
      %v1144 = vadd.f32 0.0, %v1143
      %1145 = vmatprep.mubr.f32.mxu0 0.0
      %1146 = vmatmul.mubr.f32.gmra.mrb[0].mxu0 %v444
      %v1147 = vpop.f32.mrb[0].mxu0
      %v1148 = vadd.f32 0.0, %v1147
      %v1149 = vpop.f32.mrb[0].mxu0
      %v1150 = vadd.f32 0.0, %v1149
      %1151 = vmatprep.mubr.f32.mxu0 0.0
      %1152 = vmatmul.mubr.f32.gmra.mrb[0].mxu0 %v447
      %v1153 = vpop.f32.mrb[0].mxu0
      %v1154 = vadd.f32 0.0, %v1153
      %v1155 = vpop.f32.mrb[0].mxu0
      %v1156 = vadd.f32 0.0, %v1155
      %1157 = vmatprep.mubr.f32.mxu0 0.0
      %1158 = vmatmul.mubr.f32.gmra.mrb[0].mxu0 %v450
      %v1159 = vpop.f32.mrb[0].mxu0
      %v1160 = vadd.f32 0.0, %v1159
      %v1161 = vpop.f32.mrb[0].mxu0
      %v1162 = vadd.f32 0.0, %v1161
      %1163 = vmatprep.mubr.f32.mxu0 0.0
      %1164 = vmatmul.mubr.f32.gmra.mrb[0].mxu0 %v453
      %v1165 = vpop.f32.mrb[0].mxu0
      %v1166 = vadd.f32 0.0, %v1165
      %v1167 = vpop.f32.mrb[0].mxu0
      %v1168 = vadd.f32 0.0, %v1167
      %1169 = vmatprep.mubr.f32.mxu0 0.0
      %1170 = vmatmul.mubr.f32.gmra.mrb[0].mxu0 %v456
      %v1171 = vpop.f32.mrb[0].mxu0
      %v1172 = vadd.f32 0.0, %v1171
      %v1173 = vpop.f32.mrb[0].mxu0
      %v1174 = vadd.f32 0.0, %v1173
      %1175 = vmatprep.mubr.f32.mxu0 0.0
      %1176 = vmatmul.mubr.f32.gmra.mrb[0].mxu0 %v459
      %v1177 = vpop.f32.mrb[0].mxu0
      %v1178 = vadd.f32 0.0, %v1177
      %v1179 = vpop.f32.mrb[0].mxu0
      %v1180 = vadd.f32 0.0, %v1179
      %1181 = vmatprep.mubr.f32.mxu0 0.0
      %1182 = vmatmul.mubr.f32.gmra.mrb[0].mxu0 %v462
      %v1183 = vpop.f32.mrb[0].mxu0
      %v1184 = vadd.f32 0.0, %v1183
      %v1185 = vpop.f32.mrb[0].mxu0
      %v1186 = vadd.f32 0.0, %v1185
      %1187 = vmatprep.mubr.f32.mxu0 0.0
      %1188 = vmatmul.mubr.f32.gmra.mrb[0].mxu0 %v465
      %v1189 = vpop.f32.mrb[0].mxu0
      %v1190 = vadd.f32 0.0, %v1189
      %v1191 = vpop.f32.mrb[0].mxu0
      %v1192 = vadd.f32 0.0, %v1191
      %1193 = vmatprep.mubr.f32.mxu0 0.0
      %1194 = vmatmul.mubr.f32.gmra.mrb[0].mxu0 %v468
      %v1195 = vpop.f32.mrb[0].mxu0
      %v1196 = vadd.f32 0.0, %v1195
      %v1197 = vpop.f32.mrb[0].mxu0
      %v1198 = vadd.f32 0.0, %v1197
      %1199 = vmatprep.mubr.f32.mxu0 0.0
      %1200 = vmatmul.mubr.f32.gmra.mrb[0].mxu0 %v471
      %v1201 = vpop.f32.mrb[0].mxu0
      %v1202 = vadd.f32 0.0, %v1201
      %v1203 = vpop.f32.mrb[0].mxu0
      %v1204 = vadd.f32 0.0, %v1203
      %1205 = vmatprep.mubr.f32.mxu0 0.0
      %1206 = vmatmul.mubr.f32.gmra.mrb[0].mxu0 %v474
      %v1207 = vpop.f32.mrb[0].mxu0
      %v1208 = vadd.f32 0.0, %v1207
      %v1209 = vpop.f32.mrb[0].mxu0
      %v1210 = vadd.f32 0.0, %v1209
      %1211 = vmatprep.mubr.f32.mxu0 0.0
      %1212 = vmatmul.mubr.f32.gmra.mrb[0].mxu0 %v477
      %v1213 = vpop.f32.mrb[0].mxu0
      %v1214 = vadd.f32 0.0, %v1213
      %v1215 = vpop.f32.mrb[0].mxu0
      %v1216 = vadd.f32 0.0, %v1215
      %1217 = vmatprep.mubr.f32.mxu0 0.0
      %1218 = vmatmul.mubr.f32.gmra.mrb[0].mxu0 %v480
      %v1219 = vpop.f32.mrb[0].mxu0
      %v1220 = vadd.f32 0.0, %v1219
      %v1221 = vpop.f32.mrb[0].mxu0
      %v1222 = vadd.f32 0.0, %v1221
      %1223 = vmatprep.mubr.f32.mxu0 0.0
      %1224 = vmatmul.mubr.f32.gmra.mrb[0].mxu0 %v483
      %v1225 = vpop.f32.mrb[0].mxu0
      %v1226 = vadd.f32 0.0, %v1225
      %v1227 = vpop.f32.mrb[0].mxu0
      %v1228 = vadd.f32 0.0, %v1227
      %1229 = vmatprep.mubr.f32.mxu0 0.0
      %1230 = vmatmul.mubr.f32.gmra.mrb[0].mxu0 %v486
      %v1231 = vpop.f32.mrb[0].mxu0
      %v1232 = vadd.f32 0.0, %v1231
      %v1233 = vpop.f32.mrb[0].mxu0
      %v1234 = vadd.f32 0.0, %v1233
      %1235 = vmatprep.mubr.f32.mxu0 0.0
      %1236 = vmatmul.mubr.f32.gmra.mrb[0].mxu0 %v489
      %v1237 = vpop.f32.mrb[0].mxu0
      %v1238 = vadd.f32 0.0, %v1237
      %v1239 = vpop.f32.mrb[0].mxu0
      %v1240 = vadd.f32 0.0, %v1239
      %1241 = vmatprep.mubr.f32.mxu0 0.0
      %1242 = vmatmul.mubr.f32.gmra.mrb[0].mxu0 %v492
      %v1243 = vpop.f32.mrb[0].mxu0
      %v1244 = vadd.f32 0.0, %v1243
      %v1245 = vpop.f32.mrb[0].mxu0
      %v1246 = vadd.f32 0.0, %v1245
      %1247 = vmatprep.mubr.f32.mxu0 0.0
      %1248 = vmatmul.mubr.f32.gmra.mrb[0].mxu0 %v495
      %v1249 = vpop.f32.mrb[0].mxu0
      %v1250 = vadd.f32 0.0, %v1249
      %v1251 = vpop.f32.mrb[0].mxu0
      %v1252 = vadd.f32 0.0, %v1251
      %1253 = vmatprep.mubr.f32.mxu0 0.0
      %1254 = vmatmul.mubr.f32.gmra.mrb[0].mxu0 %v498
      %v1255 = vpop.f32.mrb[0].mxu0
      %v1256 = vadd.f32 0.0, %v1255
      %v1257 = vpop.f32.mrb[0].mxu0
      %v1258 = vadd.f32 0.0, %v1257
      %1259 = vmatprep.mubr.f32.mxu0 0.0
      %1260 = vmatmul.mubr.f32.gmra.mrb[0].mxu0 %v501
      %v1261 = vpop.f32.mrb[0].mxu0
      %v1262 = vadd.f32 0.0, %v1261
      %v1263 = vpop.f32.mrb[0].mxu0
      %v1264 = vadd.f32 0.0, %v1263
      %1265 = vmatprep.mubr.f32.mxu0 0.0
      %1266 = vmatmul.mubr.f32.gmra.mrb[0].mxu0 %v504
      %v1267 = vpop.f32.mrb[0].mxu0
      %v1268 = vadd.f32 0.0, %v1267
      %v1269 = vpop.f32.mrb[0].mxu0
      %v1270 = vadd.f32 0.0, %v1269
      %1271 = vmatprep.mubr.f32.mxu0 0.0
      %1272 = vmatmul.mubr.f32.gmra.mrb[0].mxu0 %v507
      %v1273 = vpop.f32.mrb[0].mxu0
      %v1274 = vadd.f32 0.0, %v1273
      %v1275 = vpop.f32.mrb[0].mxu0
      %v1276 = vadd.f32 0.0, %v1275
      %1277 = vmatprep.mubr.f32.mxu0 0.0
      %1278 = vmatmul.mubr.f32.gmra.mrb[0].mxu0 %v510
      %v1279 = vpop.f32.mrb[0].mxu0
      %v1280 = vadd.f32 0.0, %v1279
      %v1281 = vpop.f32.mrb[0].mxu0
      %v1282 = vadd.f32 0.0, %v1281
      %1283 = vmatprep.mubr.f32.mxu0 0.0
      %1284 = vmatmul.mubr.f32.gmra.mrb[0].mxu0 %v513
      %v1285 = vpop.f32.mrb[0].mxu0
      %v1286 = vadd.f32 0.0, %v1285
      %v1287 = vpop.f32.mrb[0].mxu0
      %v1288 = vadd.f32 0.0, %v1287
      %1289 = vmatprep.mubr.f32.mxu0 0.0
      %1290 = vmatmul.mubr.f32.gmra.mrb[0].mxu0 %v516
      %v1291 = vpop.f32.mrb[0].mxu0
      %v1292 = vadd.f32 0.0, %v1291
      %v1293 = vpop.f32.mrb[0].mxu0
      %v1294 = vadd.f32 0.0, %v1293
      %1295 = vmatprep.mubr.f32.mxu0 0.0
      %1296 = vmatmul.mubr.f32.gmra.mrb[0].mxu0 %v519
      %v1297 = vpop.f32.mrb[0].mxu0
      %v1298 = vadd.f32 0.0, %v1297
      %v1299 = vpop.f32.mrb[0].mxu0
      %v1300 = vadd.f32 0.0, %v1299
      %1301 = vmatprep.mubr.f32.mxu0 0.0
      %1302 = vmatmul.mubr.f32.gmra.mrb[0].mxu0 %v522
      %v1303 = vpop.f32.mrb[0].mxu0
      %v1304 = vadd.f32 0.0, %v1303
      %v1305 = vpop.f32.mrb[0].mxu0
      %v1306 = vadd.f32 0.0, %v1305
      %1307 = vmatprep.mubr.f32.mxu0 0.0
      %1308 = vmatmul.mubr.f32.gmra.mrb[0].mxu0 %v525
      %v1309 = vpop.f32.mrb[0].mxu0
      %v1310 = vadd.f32 0.0, %v1309
      %v1311 = vpop.f32.mrb[0].mxu0
      %v1312 = vadd.f32 0.0, %v1311
      %1313 = vmatprep.mubr.f32.mxu0 0.0
      %1314 = vmatmul.mubr.f32.gmra.mrb[0].mxu0 %v528
      %v1315 = vpop.f32.mrb[0].mxu0
      %v1316 = vadd.f32 0.0, %v1315
      %v1317 = vpop.f32.mrb[0].mxu0
      %v1318 = vadd.f32 0.0, %v1317
      %1319 = vmatprep.mubr.f32.mxu0 0.0
      %1320 = vmatmul.mubr.f32.gmra.mrb[0].mxu0 %v531
      %v1321 = vpop.f32.mrb[0].mxu0
      %v1322 = vadd.f32 0.0, %v1321
      %v1323 = vpop.f32.mrb[0].mxu0
      %v1324 = vadd.f32 0.0, %v1323
      %1325 = vmatprep.mubr.f32.mxu0 0.0
      %1326 = vmatmul.mubr.f32.gmra.mrb[0].mxu0 %v534
      %v1327 = vpop.f32.mrb[0].mxu0
      %v1328 = vadd.f32 0.0, %v1327
      %v1329 = vpop.f32.mrb[0].mxu0
      %v1330 = vadd.f32 0.0, %v1329
      %1331 = vmatprep.mubr.f32.mxu0 0.0
      %1332 = vmatmul.mubr.f32.gmra.mrb[0].mxu0 %v537
      %v1333 = vpop.f32.mrb[0].mxu0
      %v1334 = vadd.f32 0.0, %v1333
      %v1335 = vpop.f32.mrb[0].mxu0
      %v1336 = vadd.f32 0.0, %v1335
      %1337 = vmatprep.mubr.f32.mxu0 0.0
      %1338 = vmatmul.mubr.f32.gmra.mrb[0].mxu0 %v540
      %v1339 = vpop.f32.mrb[0].mxu0
      %v1340 = vadd.f32 0.0, %v1339
      %v1341 = vpop.f32.mrb[0].mxu0
      %v1342 = vadd.f32 0.0, %v1341
      %1343 = vmatprep.mubr.f32.mxu0 0.0
      %1344 = vmatmul.mubr.f32.gmra.mrb[0].mxu0 %v543
      %v1345 = vpop.f32.mrb[0].mxu0
      %v1346 = vadd.f32 0.0, %v1345
      %v1347 = vpop.f32.mrb[0].mxu0
      %v1348 = vadd.f32 0.0, %v1347
      %1349 = vmatprep.mubr.f32.mxu0 0.0
      %1350 = vmatmul.mubr.f32.gmra.mrb[0].mxu0 %v546
      %v1351 = vpop.f32.mrb[0].mxu0
      %v1352 = vadd.f32 0.0, %v1351
      %v1353 = vpop.f32.mrb[0].mxu0
      %v1354 = vadd.f32 0.0, %v1353
      %1355 = vmatprep.mubr.f32.mxu0 0.0
      %1356 = vmatmul.mubr.f32.gmra.mrb[0].mxu0 %v549
      %v1357 = vpop.f32.mrb[0].mxu0
      %v1358 = vadd.f32 0.0, %v1357
      %v1359 = vpop.f32.mrb[0].mxu0
      %v1360 = vadd.f32 0.0, %v1359
      %1361 = vmatprep.mubr.f32.mxu0 0.0
      %1362 = vmatmul.mubr.f32.gmra.mrb[0].mxu0 %v552
      %v1363 = vpop.f32.mrb[0].mxu0
      %v1364 = vadd.f32 0.0, %v1363
      %v1365 = vpop.f32.mrb[0].mxu0
      %v1366 = vadd.f32 0.0, %v1365
      %1367 = vmatprep.mubr.f32.mxu0 0.0
      %1368 = vmatmul.mubr.f32.gmra.mrb[0].mxu0 %v555
      %v1369 = vpop.f32.mrb[0].mxu0
      %v1370 = vadd.f32 0.0, %v1369
      %v1371 = vpop.f32.mrb[0].mxu0
      %v1372 = vadd.f32 0.0, %v1371
      %1373 = vmatprep.mubr.f32.mxu0 0.0
      %1374 = vmatmul.mubr.f32.gmra.mrb[0].mxu0 %v558
      %v1375 = vpop.f32.mrb[0].mxu0
      %v1376 = vadd.f32 0.0, %v1375
      %v1377 = vpop.f32.mrb[0].mxu0
      %v1378 = vadd.f32 0.0, %v1377
      %1379 = vmatprep.mubr.f32.mxu0 0.0
      %1380 = vmatmul.mubr.f32.gmra.mrb[0].mxu0 %v561
      %v1381 = vpop.f32.mrb[0].mxu0
      %v1382 = vadd.f32 0.0, %v1381
      %v1383 = vpop.f32.mrb[0].mxu0
      %v1384 = vadd.f32 0.0, %v1383
      %1385 = vmatprep.mubr.f32.mxu0 0.0
      %1386 = vmatmul.mubr.f32.gmra.mrb[0].mxu0 %v564
      %v1387 = vpop.f32.mrb[0].mxu0
      %v1388 = vadd.f32 0.0, %v1387
      %v1389 = vpop.f32.mrb[0].mxu0
      %v1390 = vadd.f32 0.0, %v1389
      %1391 = vmatprep.mubr.f32.mxu0 0.0
      %1392 = vmatmul.mubr.f32.gmra.mrb[0].mxu0 %v567
      %v1393 = vpop.f32.mrb[0].mxu0
      %v1394 = vadd.f32 0.0, %v1393
      %v1395 = vpop.f32.mrb[0].mxu0
      %v1396 = vadd.f32 0.0, %v1395
      %1397 = vmatprep.mubr.f32.mxu0 0.0
      %1398 = vmatmul.mubr.f32.gmra.mrb[0].mxu0 %v570
      %v1399 = vpop.f32.mrb[0].mxu0
      %v1400 = vadd.f32 0.0, %v1399
      %v1401 = vpop.f32.mrb[0].mxu0
      %v1402 = vadd.f32 0.0, %v1401
      %1403 = vmatprep.mubr.f32.mxu0 0.0
      %1404 = vmatmul.mubr.f32.gmra.mrb[0].mxu0 %v573
      %v1405 = vpop.f32.mrb[0].mxu0
      %v1406 = vadd.f32 0.0, %v1405
      %v1407 = vpop.f32.mrb[0].mxu0
      %v1408 = vadd.f32 0.0, %v1407
      %1409 = vmatprep.mubr.f32.mxu0 0.0
      %1410 = vmatmul.mubr.f32.gmra.mrb[0].mxu0 %v576
      %v1411 = vpop.f32.mrb[0].mxu0
      %v1412 = vadd.f32 0.0, %v1411
      %v1413 = vpop.f32.mrb[0].mxu0
      %v1414 = vadd.f32 0.0, %v1413
      %1415 = vmatprep.mubr.f32.mxu0 0.0
      %1416 = vmatmul.mubr.f32.gmra.mrb[0].mxu0 %v579
      %v1417 = vpop.f32.mrb[0].mxu0
      %v1418 = vadd.f32 0.0, %v1417
      %v1419 = vpop.f32.mrb[0].mxu0
      %v1420 = vadd.f32 0.0, %v1419
      %1421 = vmatprep.mubr.f32.mxu0 0.0
      %1422 = vmatmul.mubr.f32.gmra.mrb[0].mxu0 %v582
      %v1423 = vpop.f32.mrb[0].mxu0
      %v1424 = vadd.f32 0.0, %v1423
      %v1425 = vpop.f32.mrb[0].mxu0
      %v1426 = vadd.f32 0.0, %v1425
      %1427 = vmatprep.mubr.f32.mxu0 0.0
      %1428 = vmatmul.mubr.f32.gmra.mrb[0].mxu0 %v585
      %v1429 = vpop.f32.mrb[0].mxu0
      %v1430 = vadd.f32 0.0, %v1429
      %v1431 = vpop.f32.mrb[0].mxu0
      %v1432 = vadd.f32 0.0, %v1431
      %1433 = vmatprep.mubr.f32.mxu0 0.0
      %1434 = vmatmul.mubr.f32.gmra.mrb[0].mxu0 %v588
      %v1435 = vpop.f32.mrb[0].mxu0
      %v1436 = vadd.f32 0.0, %v1435
      %v1437 = vpop.f32.mrb[0].mxu0
      %v1438 = vadd.f32 0.0, %v1437
      %1439 = vmatprep.mubr.f32.mxu0 0.0
      %1440 = vmatmul.mubr.f32.gmra.mrb[0].mxu0 %v591
      %v1441 = vpop.f32.mrb[0].mxu0
      %v1442 = vadd.f32 0.0, %v1441
      %v1443 = vpop.f32.mrb[0].mxu0
      %v1444 = vadd.f32 0.0, %v1443
      %1445 = vmatprep.mubr.f32.mxu0 0.0
      %1446 = vmatmul.mubr.f32.gmra.mrb[0].mxu0 %v594
      %v1447 = vpop.f32.mrb[0].mxu0
      %v1448 = vadd.f32 0.0, %v1447
      %v1449 = vpop.f32.mrb[0].mxu0
      %v1450 = vadd.f32 0.0, %v1449
      %1451 = vmatprep.mubr.f32.mxu0 0.0
      %1452 = vmatmul.mubr.f32.gmra.mrb[0].mxu0 %v597
      %v1453 = vpop.f32.mrb[0].mxu0
      %v1454 = vadd.f32 0.0, %v1453
      %v1455 = vpop.f32.mrb[0].mxu0
      %v1456 = vadd.f32 0.0, %v1455
      %1457 = vmatprep.mubr.f32.mxu0 0.0
      %1458 = vmatmul.mubr.f32.gmra.mrb[0].mxu0 %v600
      %v1459 = vpop.f32.mrb[0].mxu0
      %v1460 = vadd.f32 0.0, %v1459
      %v1461 = vpop.f32.mrb[0].mxu0
      %v1462 = vadd.f32 0.0, %v1461
      %1463 = vmatprep.mubr.f32.mxu0 0.0
      %1464 = vmatmul.mubr.f32.gmra.mrb[0].mxu0 %v603
      %v1465 = vpop.f32.mrb[0].mxu0
      %v1466 = vadd.f32 0.0, %v1465
      %v1467 = vpop.f32.mrb[0].mxu0
      %v1468 = vadd.f32 0.0, %v1467
      %1469 = vmatprep.mubr.f32.mxu0 0.0
      %1470 = vmatmul.mubr.f32.gmra.mrb[0].mxu0 %v606
      %v1471 = vpop.f32.mrb[0].mxu0
      %v1472 = vadd.f32 0.0, %v1471
      %v1473 = vpop.f32.mrb[0].mxu0
      %v1474 = vadd.f32 0.0, %v1473
      %1475 = vmatprep.mubr.f32.mxu0 0.0
      %1476 = vmatmul.mubr.f32.gmra.mrb[0].mxu0 %v609
      %v1477 = vpop.f32.mrb[0].mxu0
      %v1478 = vadd.f32 0.0, %v1477
      %v1479 = vpop.f32.mrb[0].mxu0
      %v1480 = vadd.f32 0.0, %v1479
      %1481 = vmatprep.mubr.f32.mxu0 0.0
      %1482 = vmatmul.mubr.f32.gmra.mrb[0].mxu0 %v612
      %v1483 = vpop.f32.mrb[0].mxu0
      %v1484 = vadd.f32 0.0, %v1483
      %v1485 = vpop.f32.mrb[0].mxu0
      %v1486 = vadd.f32 0.0, %v1485
      %1487 = vmatprep.mubr.f32.mxu0 0.0
      %1488 = vmatmul.mubr.f32.gmra.mrb[0].mxu0 %v615
      %v1489 = vpop.f32.mrb[0].mxu0
      %v1490 = vadd.f32 0.0, %v1489
      %v1491 = vpop.f32.mrb[0].mxu0
      %v1492 = vadd.f32 0.0, %v1491
      %1493 = vmatprep.mubr.f32.mxu0 0.0
      %1494 = vmatmul.mubr.f32.gmra.mrb[0].mxu0 %v618
      %v1495 = vpop.f32.mrb[0].mxu0
      %v1496 = vadd.f32 0.0, %v1495
      %v1497 = vpop.f32.mrb[0].mxu0
      %v1498 = vadd.f32 0.0, %v1497
      %1499 = vmatprep.mubr.f32.mxu0 0.0
      %1500 = vmatmul.mubr.f32.gmra.mrb[0].mxu0 %v621
      %v1501 = vpop.f32.mrb[0].mxu0
      %v1502 = vadd.f32 0.0, %v1501
      %v1503 = vpop.f32.mrb[0].mxu0
      %v1504 = vadd.f32 0.0, %v1503
      %1505 = vmatprep.mubr.f32.mxu0 0.0
      %1506 = vmatmul.mubr.f32.gmra.mrb[0].mxu0 %v624
      %v1507 = vpop.f32.mrb[0].mxu0
      %v1508 = vadd.f32 0.0, %v1507
      %v1509 = vpop.f32.mrb[0].mxu0
      %v1510 = vadd.f32 0.0, %v1509
      %1511 = vdwg.mxu0
      %v1512 = vand.u32 2147483647, %v693
      %v1513 = vand.u32 2147483647, %v695
      %v1514 = vand.u32 2147483647, %v1136
      %v1515 = vand.u32 2147483647, %v1138
      %v1516 = vand.u32 2147483647, %v699
      %v1517 = vand.u32 2147483647, %v701
      %v1518 = vand.u32 2147483647, %v1142
      %v1519 = vand.u32 2147483647, %v1144
      %v1520 = vand.u32 2147483647, %v705
      %v1521 = vand.u32 2147483647, %v707
      %v1522 = vand.u32 2147483647, %v1148
      %v1523 = vand.u32 2147483647, %v1150
      %v1524 = vand.u32 2147483647, %v711
      %v1525 = vand.u32 2147483647, %v713
      %v1526 = vand.u32 2147483647, %v1154
      %v1527 = vand.u32 2147483647, %v1156
      %v1528 = vand.u32 2147483647, %v717
      %v1529 = vand.u32 2147483647, %v719
      %v1530 = vand.u32 2147483647, %v1160
      %v1531 = vand.u32 2147483647, %v1162
      %v1532 = vand.u32 2147483647, %v723
      %v1533 = vand.u32 2147483647, %v725
      %v1534 = vand.u32 2147483647, %v1166
      %v1535 = vand.u32 2147483647, %v1168
      %v1536 = vand.u32 2147483647, %v729
      %v1537 = vand.u32 2147483647, %v731
      %v1538 = vand.u32 2147483647, %v1172
      %v1539 = vand.u32 2147483647, %v1174
      %v1540 = vand.u32 2147483647, %v735
      %v1541 = vand.u32 2147483647, %v737
      %v1542 = vand.u32 2147483647, %v1178
      %v1543 = vand.u32 2147483647, %v1180
      %v1544 = vand.u32 2147483647, %v741
      %v1545 = vand.u32 2147483647, %v743
      %v1546 = vand.u32 2147483647, %v1184
      %v1547 = vand.u32 2147483647, %v1186
      %v1548 = vand.u32 2147483647, %v747
      %v1549 = vand.u32 2147483647, %v749
      %v1550 = vand.u32 2147483647, %v1190
      %v1551 = vand.u32 2147483647, %v1192
      %v1552 = vand.u32 2147483647, %v753
      %v1553 = vand.u32 2147483647, %v755
      %v1554 = vand.u32 2147483647, %v1196
      %v1555 = vand.u32 2147483647, %v1198
      %v1556 = vand.u32 2147483647, %v759
      %v1557 = vand.u32 2147483647, %v761
      %v1558 = vand.u32 2147483647, %v1202
      %v1559 = vand.u32 2147483647, %v1204
      %v1560 = vand.u32 2147483647, %v765
      %v1561 = vand.u32 2147483647, %v767
      %v1562 = vand.u32 2147483647, %v1208
      %v1563 = vand.u32 2147483647, %v1210
      %v1564 = vand.u32 2147483647, %v771
      %v1565 = vand.u32 2147483647, %v773
      %v1566 = vand.u32 2147483647, %v1214
      %v1567 = vand.u32 2147483647, %v1216
      %v1568 = vand.u32 2147483647, %v777
      %v1569 = vand.u32 2147483647, %v779
      %v1570 = vand.u32 2147483647, %v1220
      %v1571 = vand.u32 2147483647, %v1222
      %v1572 = vand.u32 2147483647, %v783
      %v1573 = vand.u32 2147483647, %v785
      %v1574 = vand.u32 2147483647, %v1226
      %v1575 = vand.u32 2147483647, %v1228
      %v1576 = vand.u32 2147483647, %v789
      %v1577 = vand.u32 2147483647, %v791
      %v1578 = vand.u32 2147483647, %v1232
      %v1579 = vand.u32 2147483647, %v1234
      %v1580 = vand.u32 2147483647, %v795
      %v1581 = vand.u32 2147483647, %v797
      %v1582 = vand.u32 2147483647, %v1238
      %v1583 = vand.u32 2147483647, %v1240
      %v1584 = vand.u32 2147483647, %v801
      %v1585 = vand.u32 2147483647, %v803
      %v1586 = vand.u32 2147483647, %v1244
      %v1587 = vand.u32 2147483647, %v1246
      %v1588 = vand.u32 2147483647, %v807
      %v1589 = vand.u32 2147483647, %v809
      %v1590 = vand.u32 2147483647, %v1250
      %v1591 = vand.u32 2147483647, %v1252
      %v1592 = vand.u32 2147483647, %v813
      %v1593 = vand.u32 2147483647, %v815
      %v1594 = vand.u32 2147483647, %v1256
      %v1595 = vand.u32 2147483647, %v1258
      %v1596 = vand.u32 2147483647, %v819
      %v1597 = vand.u32 2147483647, %v821
      %v1598 = vand.u32 2147483647, %v1262
      %v1599 = vand.u32 2147483647, %v1264
      %v1600 = vand.u32 2147483647, %v825
      %v1601 = vand.u32 2147483647, %v827
      %v1602 = vand.u32 2147483647, %v1268
      %v1603 = vand.u32 2147483647, %v1270
      %v1604 = vand.u32 2147483647, %v831
      %v1605 = vand.u32 2147483647, %v833
      %v1606 = vand.u32 2147483647, %v1274
      %v1607 = vand.u32 2147483647, %v1276
      %v1608 = vand.u32 2147483647, %v837
      %v1609 = vand.u32 2147483647, %v839
      %v1610 = vand.u32 2147483647, %v1280
      %v1611 = vand.u32 2147483647, %v1282
      %v1612 = vand.u32 2147483647, %v843
      %v1613 = vand.u32 2147483647, %v845
      %v1614 = vand.u32 2147483647, %v1286
      %v1615 = vand.u32 2147483647, %v1288
      %v1616 = vand.u32 2147483647, %v849
      %v1617 = vand.u32 2147483647, %v851
      %v1618 = vand.u32 2147483647, %v1292
      %v1619 = vand.u32 2147483647, %v1294
      %v1620 = vand.u32 2147483647, %v855
      %v1621 = vand.u32 2147483647, %v857
      %v1622 = vand.u32 2147483647, %v1298
      %v1623 = vand.u32 2147483647, %v1300
      %v1624 = vand.u32 2147483647, %v861
      %v1625 = vand.u32 2147483647, %v863
      %v1626 = vand.u32 2147483647, %v1304
      %v1627 = vand.u32 2147483647, %v1306
      %v1628 = vand.u32 2147483647, %v867
      %v1629 = vand.u32 2147483647, %v869
      %v1630 = vand.u32 2147483647, %v1310
      %v1631 = vand.u32 2147483647, %v1312
      %v1632 = vand.u32 2147483647, %v873
      %v1633 = vand.u32 2147483647, %v875
      %v1634 = vand.u32 2147483647, %v1316
      %v1635 = vand.u32 2147483647, %v1318
      %v1636 = vand.u32 2147483647, %v879
      %v1637 = vand.u32 2147483647, %v881
      %v1638 = vand.u32 2147483647, %v1322
      %v1639 = vand.u32 2147483647, %v1324
      %v1640 = vand.u32 2147483647, %v885
      %v1641 = vand.u32 2147483647, %v887
      %v1642 = vand.u32 2147483647, %v1328
      %v1643 = vand.u32 2147483647, %v1330
      %v1644 = vand.u32 2147483647, %v891
      %v1645 = vand.u32 2147483647, %v893
      %v1646 = vand.u32 2147483647, %v1334
      %v1647 = vand.u32 2147483647, %v1336
      %v1648 = vand.u32 2147483647, %v897
      %v1649 = vand.u32 2147483647, %v899
      %v1650 = vand.u32 2147483647, %v1340
      %v1651 = vand.u32 2147483647, %v1342
      %v1652 = vand.u32 2147483647, %v903
      %v1653 = vand.u32 2147483647, %v905
      %v1654 = vand.u32 2147483647, %v1346
      %v1655 = vand.u32 2147483647, %v1348
      %v1656 = vand.u32 2147483647, %v909
      %v1657 = vand.u32 2147483647, %v911
      %v1658 = vand.u32 2147483647, %v1352
      %v1659 = vand.u32 2147483647, %v1354
      %v1660 = vand.u32 2147483647, %v915
      %v1661 = vand.u32 2147483647, %v917
      %v1662 = vand.u32 2147483647, %v1358
      %v1663 = vand.u32 2147483647, %v1360
      %v1664 = vand.u32 2147483647, %v921
      %v1665 = vand.u32 2147483647, %v923
      %v1666 = vand.u32 2147483647, %v1364
      %v1667 = vand.u32 2147483647, %v1366
      %v1668 = vand.u32 2147483647, %v927
      %v1669 = vand.u32 2147483647, %v929
      %v1670 = vand.u32 2147483647, %v1370
      %v1671 = vand.u32 2147483647, %v1372
      %v1672 = vand.u32 2147483647, %v933
      %v1673 = vand.u32 2147483647, %v935
      %v1674 = vand.u32 2147483647, %v1376
      %v1675 = vand.u32 2147483647, %v1378
      %v1676 = vand.u32 2147483647, %v939
      %v1677 = vand.u32 2147483647, %v941
      %v1678 = vand.u32 2147483647, %v1382
      %v1679 = vand.u32 2147483647, %v1384
      %v1680 = vand.u32 2147483647, %v945
      %v1681 = vand.u32 2147483647, %v947
      %v1682 = vand.u32 2147483647, %v1388
      %v1683 = vand.u32 2147483647, %v1390
      %v1684 = vand.u32 2147483647, %v951
      %v1685 = vand.u32 2147483647, %v953
      %v1686 = vand.u32 2147483647, %v1394
      %v1687 = vand.u32 2147483647, %v1396
      %v1688 = vand.u32 2147483647, %v957
      %v1689 = vand.u32 2147483647, %v959
      %v1690 = vand.u32 2147483647, %v1400
      %v1691 = vand.u32 2147483647, %v1402
      %v1692 = vand.u32 2147483647, %v963
      %v1693 = vand.u32 2147483647, %v965
      %v1694 = vand.u32 2147483647, %v1406
      %v1695 = vand.u32 2147483647, %v1408
      %v1696 = vand.u32 2147483647, %v969
      %v1697 = vand.u32 2147483647, %v971
      %v1698 = vand.u32 2147483647, %v1412
      %v1699 = vand.u32 2147483647, %v1414
      %v1700 = vand.u32 2147483647, %v975
      %v1701 = vand.u32 2147483647, %v977
      %v1702 = vand.u32 2147483647, %v1418
      %v1703 = vand.u32 2147483647, %v1420
      %v1704 = vand.u32 2147483647, %v981
      %v1705 = vand.u32 2147483647, %v983
      %v1706 = vand.u32 2147483647, %v1424
      %v1707 = vand.u32 2147483647, %v1426
      %v1708 = vand.u32 2147483647, %v987
      %v1709 = vand.u32 2147483647, %v989
      %v1710 = vand.u32 2147483647, %v1430
      %v1711 = vand.u32 2147483647, %v1432
      %v1712 = vand.u32 2147483647, %v993
      %v1713 = vand.u32 2147483647, %v995
      %v1714 = vand.u32 2147483647, %v1436
      %v1715 = vand.u32 2147483647, %v1438
      %v1716 = vand.u32 2147483647, %v999
      %v1717 = vand.u32 2147483647, %v1001
      %v1718 = vand.u32 2147483647, %v1442
      %v1719 = vand.u32 2147483647, %v1444
      %v1720 = vand.u32 2147483647, %v1005
      %v1721 = vand.u32 2147483647, %v1007
      %v1722 = vand.u32 2147483647, %v1448
      %v1723 = vand.u32 2147483647, %v1450
      %v1724 = vand.u32 2147483647, %v1011
      %v1725 = vand.u32 2147483647, %v1013
      %v1726 = vand.u32 2147483647, %v1454
      %v1727 = vand.u32 2147483647, %v1456
      %v1728 = vand.u32 2147483647, %v1017
      %v1729 = vand.u32 2147483647, %v1019
      %v1730 = vand.u32 2147483647, %v1460
      %v1731 = vand.u32 2147483647, %v1462
      %v1732 = vand.u32 2147483647, %v1023
      %v1733 = vand.u32 2147483647, %v1025
      %v1734 = vand.u32 2147483647, %v1466
      %v1735 = vand.u32 2147483647, %v1468
      %v1736 = vand.u32 2147483647, %v1029
      %v1737 = vand.u32 2147483647, %v1031
      %v1738 = vand.u32 2147483647, %v1472
      %v1739 = vand.u32 2147483647, %v1474
      %v1740 = vand.u32 2147483647, %v1035
      %v1741 = vand.u32 2147483647, %v1037
      %v1742 = vand.u32 2147483647, %v1478
      %v1743 = vand.u32 2147483647, %v1480
      %v1744 = vand.u32 2147483647, %v1041
      %v1745 = vand.u32 2147483647, %v1043
      %v1746 = vand.u32 2147483647, %v1484
      %v1747 = vand.u32 2147483647, %v1486
      %v1748 = vand.u32 2147483647, %v1047
      %v1749 = vand.u32 2147483647, %v1049
      %v1750 = vand.u32 2147483647, %v1490
      %v1751 = vand.u32 2147483647, %v1492
      %v1752 = vand.u32 2147483647, %v1053
      %v1753 = vand.u32 2147483647, %v1055
      %v1754 = vand.u32 2147483647, %v1496
      %v1755 = vand.u32 2147483647, %v1498
      %v1756 = vand.u32 2147483647, %v1059
      %v1757 = vand.u32 2147483647, %v1061
      %v1758 = vand.u32 2147483647, %v1502
      %v1759 = vand.u32 2147483647, %v1504
      %v1760 = vand.u32 2147483647, %v1065
      %v1761 = vand.u32 2147483647, %v1067
      %v1762 = vand.u32 2147483647, %v1508
      %v1763 = vand.u32 2147483647, %v1510
      %vm1764 = vcmp.lt.f32.partialorder %v1512, 0.5
      %vm1765 = vcmp.lt.f32.partialorder %v1513, 0.5
      %vm1766 = vcmp.lt.f32.partialorder %v1514, 0.5
      %vm1767 = vcmp.lt.f32.partialorder %v1515, 0.5
      %vm1768 = vcmp.lt.f32.partialorder %v1516, 0.5
      %vm1769 = vcmp.lt.f32.partialorder %v1517, 0.5
      %vm1770 = vcmp.lt.f32.partialorder %v1518, 0.5
      %vm1771 = vcmp.lt.f32.partialorder %v1519, 0.5
      %vm1772 = vcmp.lt.f32.partialorder %v1520, 0.5
      %vm1773 = vcmp.lt.f32.partialorder %v1521, 0.5
      %vm1774 = vcmp.lt.f32.partialorder %v1522, 0.5
      %vm1775 = vcmp.lt.f32.partialorder %v1523, 0.5
      %vm1776 = vcmp.lt.f32.partialorder %v1524, 0.5
      %vm1777 = vcmp.lt.f32.partialorder %v1525, 0.5
      %vm1778 = vcmp.lt.f32.partialorder %v1526, 0.5
      %vm1779 = vcmp.lt.f32.partialorder %v1527, 0.5
      %vm1780 = vcmp.lt.f32.partialorder %v1528, 0.5
      %vm1781 = vcmp.lt.f32.partialorder %v1529, 0.5
      %vm1782 = vcmp.lt.f32.partialorder %v1530, 0.5
      %vm1783 = vcmp.lt.f32.partialorder %v1531, 0.5
      %vm1784 = vcmp.lt.f32.partialorder %v1532, 0.5
      %vm1785 = vcmp.lt.f32.partialorder %v1533, 0.5
      %vm1786 = vcmp.lt.f32.partialorder %v1534, 0.5
      %vm1787 = vcmp.lt.f32.partialorder %v1535, 0.5
      %vm1788 = vcmp.lt.f32.partialorder %v1536, 0.5
      %vm1789 = vcmp.lt.f32.partialorder %v1537, 0.5
      %vm1790 = vcmp.lt.f32.partialorder %v1538, 0.5
      %vm1791 = vcmp.lt.f32.partialorder %v1539, 0.5
      %vm1792 = vcmp.lt.f32.partialorder %v1540, 0.5
      %vm1793 = vcmp.lt.f32.partialorder %v1541, 0.5
      %vm1794 = vcmp.lt.f32.partialorder %v1542, 0.5
      %vm1795 = vcmp.lt.f32.partialorder %v1543, 0.5
      %vm1796 = vcmp.lt.f32.partialorder %v1544, 0.5
      %vm1797 = vcmp.lt.f32.partialorder %v1545, 0.5
      %vm1798 = vcmp.lt.f32.partialorder %v1546, 0.5
      %vm1799 = vcmp.lt.f32.partialorder %v1547, 0.5
      %vm1800 = vcmp.lt.f32.partialorder %v1548, 0.5
      %vm1801 = vcmp.lt.f32.partialorder %v1549, 0.5
      %vm1802 = vcmp.lt.f32.partialorder %v1550, 0.5
      %vm1803 = vcmp.lt.f32.partialorder %v1551, 0.5
      %vm1804 = vcmp.lt.f32.partialorder %v1552, 0.5
      %vm1805 = vcmp.lt.f32.partialorder %v1553, 0.5
      %vm1806 = vcmp.lt.f32.partialorder %v1554, 0.5
      %vm1807 = vcmp.lt.f32.partialorder %v1555, 0.5
      %vm1808 = vcmp.lt.f32.partialorder %v1556, 0.5
      %vm1809 = vcmp.lt.f32.partialorder %v1557, 0.5
      %vm1810 = vcmp.lt.f32.partialorder %v1558, 0.5
      %vm1811 = vcmp.lt.f32.partialorder %v1559, 0.5
      %vm1812 = vcmp.lt.f32.partialorder %v1560, 0.5
      %vm1813 = vcmp.lt.f32.partialorder %v1561, 0.5
      %vm1814 = vcmp.lt.f32.partialorder %v1562, 0.5
      %vm1815 = vcmp.lt.f32.partialorder %v1563, 0.5
      %vm1816 = vcmp.lt.f32.partialorder %v1564, 0.5
      %vm1817 = vcmp.lt.f32.partialorder %v1565, 0.5
      %vm1818 = vcmp.lt.f32.partialorder %v1566, 0.5
      %vm1819 = vcmp.lt.f32.partialorder %v1567, 0.5
      %vm1820 = vcmp.lt.f32.partialorder %v1568, 0.5
      %vm1821 = vcmp.lt.f32.partialorder %v1569, 0.5
      %vm1822 = vcmp.lt.f32.partialorder %v1570, 0.5
      %vm1823 = vcmp.lt.f32.partialorder %v1571, 0.5
      %vm1824 = vcmp.lt.f32.partialorder %v1572, 0.5
      %vm1825 = vcmp.lt.f32.partialorder %v1573, 0.5
      %vm1826 = vcmp.lt.f32.partialorder %v1574, 0.5
      %vm1827 = vcmp.lt.f32.partialorder %v1575, 0.5
      %vm1828 = vcmp.lt.f32.partialorder %v1576, 0.5
      %vm1829 = vcmp.lt.f32.partialorder %v1577, 0.5
      %vm1830 = vcmp.lt.f32.partialorder %v1578, 0.5
      %vm1831 = vcmp.lt.f32.partialorder %v1579, 0.5
      %vm1832 = vcmp.lt.f32.partialorder %v1580, 0.5
      %vm1833 = vcmp.lt.f32.partialorder %v1581, 0.5
      %vm1834 = vcmp.lt.f32.partialorder %v1582, 0.5
      %vm1835 = vcmp.lt.f32.partialorder %v1583, 0.5
      %vm1836 = vcmp.lt.f32.partialorder %v1584, 0.5
      %vm1837 = vcmp.lt.f32.partialorder %v1585, 0.5
      %vm1838 = vcmp.lt.f32.partialorder %v1586, 0.5
      %vm1839 = vcmp.lt.f32.partialorder %v1587, 0.5
      %vm1840 = vcmp.lt.f32.partialorder %v1588, 0.5
      %vm1841 = vcmp.lt.f32.partialorder %v1589, 0.5
      %vm1842 = vcmp.lt.f32.partialorder %v1590, 0.5
      %vm1843 = vcmp.lt.f32.partialorder %v1591, 0.5
      %vm1844 = vcmp.lt.f32.partialorder %v1592, 0.5
      %vm1845 = vcmp.lt.f32.partialorder %v1593, 0.5
      %vm1846 = vcmp.lt.f32.partialorder %v1594, 0.5
      %vm1847 = vcmp.lt.f32.partialorder %v1595, 0.5
      %vm1848 = vcmp.lt.f32.partialorder %v1596, 0.5
      %vm1849 = vcmp.lt.f32.partialorder %v1597, 0.5
      %vm1850 = vcmp.lt.f32.partialorder %v1598, 0.5
      %vm1851 = vcmp.lt.f32.partialorder %v1599, 0.5
      %vm1852 = vcmp.lt.f32.partialorder %v1600, 0.5
      %vm1853 = vcmp.lt.f32.partialorder %v1601, 0.5
      %vm1854 = vcmp.lt.f32.partialorder %v1602, 0.5
      %vm1855 = vcmp.lt.f32.partialorder %v1603, 0.5
      %vm1856 = vcmp.lt.f32.partialorder %v1604, 0.5
      %vm1857 = vcmp.lt.f32.partialorder %v1605, 0.5
      %vm1858 = vcmp.lt.f32.partialorder %v1606, 0.5
      %vm1859 = vcmp.lt.f32.partialorder %v1607, 0.5
      %vm1860 = vcmp.lt.f32.partialorder %v1608, 0.5
      %vm1861 = vcmp.lt.f32.partialorder %v1609, 0.5
      %vm1862 = vcmp.lt.f32.partialorder %v1610, 0.5
      %vm1863 = vcmp.lt.f32.partialorder %v1611, 0.5
      %vm1864 = vcmp.lt.f32.partialorder %v1612, 0.5
      %vm1865 = vcmp.lt.f32.partialorder %v1613, 0.5
      %vm1866 = vcmp.lt.f32.partialorder %v1614, 0.5
      %vm1867 = vcmp.lt.f32.partialorder %v1615, 0.5
      %vm1868 = vcmp.lt.f32.partialorder %v1616, 0.5
      %vm1869 = vcmp.lt.f32.partialorder %v1617, 0.5
      %vm1870 = vcmp.lt.f32.partialorder %v1618, 0.5
      %vm1871 = vcmp.lt.f32.partialorder %v1619, 0.5
      %vm1872 = vcmp.lt.f32.partialorder %v1620, 0.5
      %vm1873 = vcmp.lt.f32.partialorder %v1621, 0.5
      %vm1874 = vcmp.lt.f32.partialorder %v1622, 0.5
      %vm1875 = vcmp.lt.f32.partialorder %v1623, 0.5
      %vm1876 = vcmp.lt.f32.partialorder %v1624, 0.5
      %vm1877 = vcmp.lt.f32.partialorder %v1625, 0.5
      %vm1878 = vcmp.lt.f32.partialorder %v1626, 0.5
      %vm1879 = vcmp.lt.f32.partialorder %v1627, 0.5
      %vm1880 = vcmp.lt.f32.partialorder %v1628, 0.5
      %vm1881 = vcmp.lt.f32.partialorder %v1629, 0.5
      %vm1882 = vcmp.lt.f32.partialorder %v1630, 0.5
      %vm1883 = vcmp.lt.f32.partialorder %v1631, 0.5
      %vm1884 = vcmp.lt.f32.partialorder %v1632, 0.5
      %vm1885 = vcmp.lt.f32.partialorder %v1633, 0.5
      %vm1886 = vcmp.lt.f32.partialorder %v1634, 0.5
      %vm1887 = vcmp.lt.f32.partialorder %v1635, 0.5
      %vm1888 = vcmp.lt.f32.partialorder %v1636, 0.5
      %vm1889 = vcmp.lt.f32.partialorder %v1637, 0.5
      %vm1890 = vcmp.lt.f32.partialorder %v1638, 0.5
      %vm1891 = vcmp.lt.f32.partialorder %v1639, 0.5
      %vm1892 = vcmp.lt.f32.partialorder %v1640, 0.5
      %vm1893 = vcmp.lt.f32.partialorder %v1641, 0.5
      %vm1894 = vcmp.lt.f32.partialorder %v1642, 0.5
      %vm1895 = vcmp.lt.f32.partialorder %v1643, 0.5
      %vm1896 = vcmp.lt.f32.partialorder %v1644, 0.5
      %vm1897 = vcmp.lt.f32.partialorder %v1645, 0.5
      %vm1898 = vcmp.lt.f32.partialorder %v1646, 0.5
      %vm1899 = vcmp.lt.f32.partialorder %v1647, 0.5
      %vm1900 = vcmp.lt.f32.partialorder %v1648, 0.5
      %vm1901 = vcmp.lt.f32.partialorder %v1649, 0.5
      %vm1902 = vcmp.lt.f32.partialorder %v1650, 0.5
      %vm1903 = vcmp.lt.f32.partialorder %v1651, 0.5
      %vm1904 = vcmp.lt.f32.partialorder %v1652, 0.5
      %vm1905 = vcmp.lt.f32.partialorder %v1653, 0.5
      %vm1906 = vcmp.lt.f32.partialorder %v1654, 0.5
      %vm1907 = vcmp.lt.f32.partialorder %v1655, 0.5
      %vm1908 = vcmp.lt.f32.partialorder %v1656, 0.5
      %vm1909 = vcmp.lt.f32.partialorder %v1657, 0.5
      %vm1910 = vcmp.lt.f32.partialorder %v1658, 0.5
      %vm1911 = vcmp.lt.f32.partialorder %v1659, 0.5
      %vm1912 = vcmp.lt.f32.partialorder %v1660, 0.5
      %vm1913 = vcmp.lt.f32.partialorder %v1661, 0.5
      %vm1914 = vcmp.lt.f32.partialorder %v1662, 0.5
      %vm1915 = vcmp.lt.f32.partialorder %v1663, 0.5
      %vm1916 = vcmp.lt.f32.partialorder %v1664, 0.5
      %vm1917 = vcmp.lt.f32.partialorder %v1665, 0.5
      %vm1918 = vcmp.lt.f32.partialorder %v1666, 0.5
      %vm1919 = vcmp.lt.f32.partialorder %v1667, 0.5
      %vm1920 = vcmp.lt.f32.partialorder %v1668, 0.5
      %vm1921 = vcmp.lt.f32.partialorder %v1669, 0.5
      %vm1922 = vcmp.lt.f32.partialorder %v1670, 0.5
      %vm1923 = vcmp.lt.f32.partialorder %v1671, 0.5
      %vm1924 = vcmp.lt.f32.partialorder %v1672, 0.5
      %vm1925 = vcmp.lt.f32.partialorder %v1673, 0.5
      %vm1926 = vcmp.lt.f32.partialorder %v1674, 0.5
      %vm1927 = vcmp.lt.f32.partialorder %v1675, 0.5
      %vm1928 = vcmp.lt.f32.partialorder %v1676, 0.5
      %vm1929 = vcmp.lt.f32.partialorder %v1677, 0.5
      %vm1930 = vcmp.lt.f32.partialorder %v1678, 0.5
      %vm1931 = vcmp.lt.f32.partialorder %v1679, 0.5
      %vm1932 = vcmp.lt.f32.partialorder %v1680, 0.5
      %vm1933 = vcmp.lt.f32.partialorder %v1681, 0.5
      %vm1934 = vcmp.lt.f32.partialorder %v1682, 0.5
      %vm1935 = vcmp.lt.f32.partialorder %v1683, 0.5
      %vm1936 = vcmp.lt.f32.partialorder %v1684, 0.5
      %vm1937 = vcmp.lt.f32.partialorder %v1685, 0.5
      %vm1938 = vcmp.lt.f32.partialorder %v1686, 0.5
      %vm1939 = vcmp.lt.f32.partialorder %v1687, 0.5
      %vm1940 = vcmp.lt.f32.partialorder %v1688, 0.5
      %vm1941 = vcmp.lt.f32.partialorder %v1689, 0.5
      %vm1942 = vcmp.lt.f32.partialorder %v1690, 0.5
      %vm1943 = vcmp.lt.f32.partialorder %v1691, 0.5
      %vm1944 = vcmp.lt.f32.partialorder %v1692, 0.5
      %vm1945 = vcmp.lt.f32.partialorder %v1693, 0.5
      %vm1946 = vcmp.lt.f32.partialorder %v1694, 0.5
      %vm1947 = vcmp.lt.f32.partialorder %v1695, 0.5
      %vm1948 = vcmp.lt.f32.partialorder %v1696, 0.5
      %vm1949 = vcmp.lt.f32.partialorder %v1697, 0.5
      %vm1950 = vcmp.lt.f32.partialorder %v1698, 0.5
      %vm1951 = vcmp.lt.f32.partialorder %v1699, 0.5
      %vm1952 = vcmp.lt.f32.partialorder %v1700, 0.5
      %vm1953 = vcmp.lt.f32.partialorder %v1701, 0.5
      %vm1954 = vcmp.lt.f32.partialorder %v1702, 0.5
      %vm1955 = vcmp.lt.f32.partialorder %v1703, 0.5
      %vm1956 = vcmp.lt.f32.partialorder %v1704, 0.5
      %vm1957 = vcmp.lt.f32.partialorder %v1705, 0.5
      %vm1958 = vcmp.lt.f32.partialorder %v1706, 0.5
      %vm1959 = vcmp.lt.f32.partialorder %v1707, 0.5
      %vm1960 = vcmp.lt.f32.partialorder %v1708, 0.5
      %vm1961 = vcmp.lt.f32.partialorder %v1709, 0.5
      %vm1962 = vcmp.lt.f32.partialorder %v1710, 0.5
      %vm1963 = vcmp.lt.f32.partialorder %v1711, 0.5
      %vm1964 = vcmp.lt.f32.partialorder %v1712, 0.5
      %vm1965 = vcmp.lt.f32.partialorder %v1713, 0.5
      %vm1966 = vcmp.lt.f32.partialorder %v1714, 0.5
      %vm1967 = vcmp.lt.f32.partialorder %v1715, 0.5
      %vm1968 = vcmp.lt.f32.partialorder %v1716, 0.5
      %vm1969 = vcmp.lt.f32.partialorder %v1717, 0.5
      %vm1970 = vcmp.lt.f32.partialorder %v1718, 0.5
      %vm1971 = vcmp.lt.f32.partialorder %v1719, 0.5
      %vm1972 = vcmp.lt.f32.partialorder %v1720, 0.5
      %vm1973 = vcmp.lt.f32.partialorder %v1721, 0.5
      %vm1974 = vcmp.lt.f32.partialorder %v1722, 0.5
      %vm1975 = vcmp.lt.f32.partialorder %v1723, 0.5
      %vm1976 = vcmp.lt.f32.partialorder %v1724, 0.5
      %vm1977 = vcmp.lt.f32.partialorder %v1725, 0.5
      %vm1978 = vcmp.lt.f32.partialorder %v1726, 0.5
      %vm1979 = vcmp.lt.f32.partialorder %v1727, 0.5
      %vm1980 = vcmp.lt.f32.partialorder %v1728, 0.5
      %vm1981 = vcmp.lt.f32.partialorder %v1729, 0.5
      %vm1982 = vcmp.lt.f32.partialorder %v1730, 0.5
      %vm1983 = vcmp.lt.f32.partialorder %v1731, 0.5
      %vm1984 = vcmp.lt.f32.partialorder %v1732, 0.5
      %vm1985 = vcmp.lt.f32.partialorder %v1733, 0.5
      %vm1986 = vcmp.lt.f32.partialorder %v1734, 0.5
      %vm1987 = vcmp.lt.f32.partialorder %v1735, 0.5
      %vm1988 = vcmp.lt.f32.partialorder %v1736, 0.5
      %vm1989 = vcmp.lt.f32.partialorder %v1737, 0.5
      %vm1990 = vcmp.lt.f32.partialorder %v1738, 0.5
      %vm1991 = vcmp.lt.f32.partialorder %v1739, 0.5
      %vm1992 = vcmp.lt.f32.partialorder %v1740, 0.5
      %vm1993 = vcmp.lt.f32.partialorder %v1741, 0.5
      %vm1994 = vcmp.lt.f32.partialorder %v1742, 0.5
      %vm1995 = vcmp.lt.f32.partialorder %v1743, 0.5
      %vm1996 = vcmp.lt.f32.partialorder %v1744, 0.5
      %vm1997 = vcmp.lt.f32.partialorder %v1745, 0.5
      %vm1998 = vcmp.lt.f32.partialorder %v1746, 0.5
      %vm1999 = vcmp.lt.f32.partialorder %v1747, 0.5
      %vm2000 = vcmp.lt.f32.partialorder %v1748, 0.5
      %vm2001 = vcmp.lt.f32.partialorder %v1749, 0.5
      %vm2002 = vcmp.lt.f32.partialorder %v1750, 0.5
      %vm2003 = vcmp.lt.f32.partialorder %v1751, 0.5
      %vm2004 = vcmp.lt.f32.partialorder %v1752, 0.5
      %vm2005 = vcmp.lt.f32.partialorder %v1753, 0.5
      %vm2006 = vcmp.lt.f32.partialorder %v1754, 0.5
      %vm2007 = vcmp.lt.f32.partialorder %v1755, 0.5
      %vm2008 = vcmp.lt.f32.partialorder %v1756, 0.5
      %vm2009 = vcmp.lt.f32.partialorder %v1757, 0.5
      %vm2010 = vcmp.lt.f32.partialorder %v1758, 0.5
      %vm2011 = vcmp.lt.f32.partialorder %v1759, 0.5
      %vm2012 = vcmp.lt.f32.partialorder %v1760, 0.5
      %vm2013 = vcmp.lt.f32.partialorder %v1761, 0.5
      %vm2014 = vcmp.lt.f32.partialorder %v1762, 0.5
      %vm2015 = vcmp.lt.f32.partialorder %v1763, 0.5
      %v2016 = vsel %vm1764, 1.0, 0.0
      %v2017 = vsel %vm1765, 1.0, 0.0
      %v2018 = vsel %vm1766, 1.0, 0.0
      %v2019 = vsel %vm1767, 1.0, 0.0
      %v2020 = vsel %vm1768, 1.0, 0.0
      %v2021 = vsel %vm1769, 1.0, 0.0
      %v2022 = vsel %vm1770, 1.0, 0.0
      %v2023 = vsel %vm1771, 1.0, 0.0
      %v2024 = vsel %vm1772, 1.0, 0.0
      %v2025 = vsel %vm1773, 1.0, 0.0
      %v2026 = vsel %vm1774, 1.0, 0.0
      %v2027 = vsel %vm1775, 1.0, 0.0
      %v2028 = vsel %vm1776, 1.0, 0.0
      %v2029 = vsel %vm1777, 1.0, 0.0
      %v2030 = vsel %vm1778, 1.0, 0.0
      %v2031 = vsel %vm1779, 1.0, 0.0
      %v2032 = vsel %vm1780, 1.0, 0.0
      %v2033 = vsel %vm1781, 1.0, 0.0
      %v2034 = vsel %vm1782, 1.0, 0.0
      %v2035 = vsel %vm1783, 1.0, 0.0
      %v2036 = vsel %vm1784, 1.0, 0.0
      %v2037 = vsel %vm1785, 1.0, 0.0
      %v2038 = vsel %vm1786, 1.0, 0.0
      %v2039 = vsel %vm1787, 1.0, 0.0
      %v2040 = vsel %vm1788, 1.0, 0.0
      %v2041 = vsel %vm1789, 1.0, 0.0
      %v2042 = vsel %vm1790, 1.0, 0.0
      %v2043 = vsel %vm1791, 1.0, 0.0
      %v2044 = vsel %vm1792, 1.0, 0.0
      %v2045 = vsel %vm1793, 1.0, 0.0
      %v2046 = vsel %vm1794, 1.0, 0.0
      %v2047 = vsel %vm1795, 1.0, 0.0
      %v2048 = vsel %vm1796, 1.0, 0.0
      %v2049 = vsel %vm1797, 1.0, 0.0
      %v2050 = vsel %vm1798, 1.0, 0.0
      %v2051 = vsel %vm1799, 1.0, 0.0
      %v2052 = vsel %vm1800, 1.0, 0.0
      %v2053 = vsel %vm1801, 1.0, 0.0
      %v2054 = vsel %vm1802, 1.0, 0.0
      %v2055 = vsel %vm1803, 1.0, 0.0
      %v2056 = vsel %vm1804, 1.0, 0.0
      %v2057 = vsel %vm1805, 1.0, 0.0
      %v2058 = vsel %vm1806, 1.0, 0.0
      %v2059 = vsel %vm1807, 1.0, 0.0
      %v2060 = vsel %vm1808, 1.0, 0.0
      %v2061 = vsel %vm1809, 1.0, 0.0
      %v2062 = vsel %vm1810, 1.0, 0.0
      %v2063 = vsel %vm1811, 1.0, 0.0
      %v2064 = vsel %vm1812, 1.0, 0.0
      %v2065 = vsel %vm1813, 1.0, 0.0
      %v2066 = vsel %vm1814, 1.0, 0.0
      %v2067 = vsel %vm1815, 1.0, 0.0
      %v2068 = vsel %vm1816, 1.0, 0.0
      %v2069 = vsel %vm1817, 1.0, 0.0
      %v2070 = vsel %vm1818, 1.0, 0.0
      %v2071 = vsel %vm1819, 1.0, 0.0
      %v2072 = vsel %vm1820, 1.0, 0.0
      %v2073 = vsel %vm1821, 1.0, 0.0
      %v2074 = vsel %vm1822, 1.0, 0.0
      %v2075 = vsel %vm1823, 1.0, 0.0
      %v2076 = vsel %vm1824, 1.0, 0.0
      %v2077 = vsel %vm1825, 1.0, 0.0
      %v2078 = vsel %vm1826, 1.0, 0.0
      %v2079 = vsel %vm1827, 1.0, 0.0
      %v2080 = vsel %vm1828, 1.0, 0.0
      %v2081 = vsel %vm1829, 1.0, 0.0
      %v2082 = vsel %vm1830, 1.0, 0.0
      %v2083 = vsel %vm1831, 1.0, 0.0
      %v2084 = vsel %vm1832, 1.0, 0.0
      %v2085 = vsel %vm1833, 1.0, 0.0
      %v2086 = vsel %vm1834, 1.0, 0.0
      %v2087 = vsel %vm1835, 1.0, 0.0
      %v2088 = vsel %vm1836, 1.0, 0.0
      %v2089 = vsel %vm1837, 1.0, 0.0
      %v2090 = vsel %vm1838, 1.0, 0.0
      %v2091 = vsel %vm1839, 1.0, 0.0
      %v2092 = vsel %vm1840, 1.0, 0.0
      %v2093 = vsel %vm1841, 1.0, 0.0
      %v2094 = vsel %vm1842, 1.0, 0.0
      %v2095 = vsel %vm1843, 1.0, 0.0
      %v2096 = vsel %vm1844, 1.0, 0.0
      %v2097 = vsel %vm1845, 1.0, 0.0
      %v2098 = vsel %vm1846, 1.0, 0.0
      %v2099 = vsel %vm1847, 1.0, 0.0
      %v2100 = vsel %vm1848, 1.0, 0.0
      %v2101 = vsel %vm1849, 1.0, 0.0
      %v2102 = vsel %vm1850, 1.0, 0.0
      %v2103 = vsel %vm1851, 1.0, 0.0
      %v2104 = vsel %vm1852, 1.0, 0.0
      %v2105 = vsel %vm1853, 1.0, 0.0
      %v2106 = vsel %vm1854, 1.0, 0.0
      %v2107 = vsel %vm1855, 1.0, 0.0
      %v2108 = vsel %vm1856, 1.0, 0.0
      %v2109 = vsel %vm1857, 1.0, 0.0
      %v2110 = vsel %vm1858, 1.0, 0.0
      %v2111 = vsel %vm1859, 1.0, 0.0
      %v2112 = vsel %vm1860, 1.0, 0.0
      %v2113 = vsel %vm1861, 1.0, 0.0
      %v2114 = vsel %vm1862, 1.0, 0.0
      %v2115 = vsel %vm1863, 1.0, 0.0
      %v2116 = vsel %vm1864, 1.0, 0.0
      %v2117 = vsel %vm1865, 1.0, 0.0
      %v2118 = vsel %vm1866, 1.0, 0.0
      %v2119 = vsel %vm1867, 1.0, 0.0
      %v2120 = vsel %vm1868, 1.0, 0.0
      %v2121 = vsel %vm1869, 1.0, 0.0
      %v2122 = vsel %vm1870, 1.0, 0.0
      %v2123 = vsel %vm1871, 1.0, 0.0
      %v2124 = vsel %vm1872, 1.0, 0.0
      %v2125 = vsel %vm1873, 1.0, 0.0
      %v2126 = vsel %vm1874, 1.0, 0.0
      %v2127 = vsel %vm1875, 1.0, 0.0
      %v2128 = vsel %vm1876, 1.0, 0.0
      %v2129 = vsel %vm1877, 1.0, 0.0
      %v2130 = vsel %vm1878, 1.0, 0.0
      %v2131 = vsel %vm1879, 1.0, 0.0
      %v2132 = vsel %vm1880, 1.0, 0.0
      %v2133 = vsel %vm1881, 1.0, 0.0
      %v2134 = vsel %vm1882, 1.0, 0.0
      %v2135 = vsel %vm1883, 1.0, 0.0
      %v2136 = vsel %vm1884, 1.0, 0.0
      %v2137 = vsel %vm1885, 1.0, 0.0
      %v2138 = vsel %vm1886, 1.0, 0.0
      %v2139 = vsel %vm1887, 1.0, 0.0
      %v2140 = vsel %vm1888, 1.0, 0.0
      %v2141 = vsel %vm1889, 1.0, 0.0
      %v2142 = vsel %vm1890, 1.0, 0.0
      %v2143 = vsel %vm1891, 1.0, 0.0
      %v2144 = vsel %vm1892, 1.0, 0.0
      %v2145 = vsel %vm1893, 1.0, 0.0
      %v2146 = vsel %vm1894, 1.0, 0.0
      %v2147 = vsel %vm1895, 1.0, 0.0
      %v2148 = vsel %vm1896, 1.0, 0.0
      %v2149 = vsel %vm1897, 1.0, 0.0
      %v2150 = vsel %vm1898, 1.0, 0.0
      %v2151 = vsel %vm1899, 1.0, 0.0
      %v2152 = vsel %vm1900, 1.0, 0.0
      %v2153 = vsel %vm1901, 1.0, 0.0
      %v2154 = vsel %vm1902, 1.0, 0.0
      %v2155 = vsel %vm1903, 1.0, 0.0
      %v2156 = vsel %vm1904, 1.0, 0.0
      %v2157 = vsel %vm1905, 1.0, 0.0
      %v2158 = vsel %vm1906, 1.0, 0.0
      %v2159 = vsel %vm1907, 1.0, 0.0
      %v2160 = vsel %vm1908, 1.0, 0.0
      %v2161 = vsel %vm1909, 1.0, 0.0
      %v2162 = vsel %vm1910, 1.0, 0.0
      %v2163 = vsel %vm1911, 1.0, 0.0
      %v2164 = vsel %vm1912, 1.0, 0.0
      %v2165 = vsel %vm1913, 1.0, 0.0
      %v2166 = vsel %vm1914, 1.0, 0.0
      %v2167 = vsel %vm1915, 1.0, 0.0
      %v2168 = vsel %vm1916, 1.0, 0.0
      %v2169 = vsel %vm1917, 1.0, 0.0
      %v2170 = vsel %vm1918, 1.0, 0.0
      %v2171 = vsel %vm1919, 1.0, 0.0
      %v2172 = vsel %vm1920, 1.0, 0.0
      %v2173 = vsel %vm1921, 1.0, 0.0
      %v2174 = vsel %vm1922, 1.0, 0.0
      %v2175 = vsel %vm1923, 1.0, 0.0
      %v2176 = vsel %vm1924, 1.0, 0.0
      %v2177 = vsel %vm1925, 1.0, 0.0
      %v2178 = vsel %vm1926, 1.0, 0.0
      %v2179 = vsel %vm1927, 1.0, 0.0
      %v2180 = vsel %vm1928, 1.0, 0.0
      %v2181 = vsel %vm1929, 1.0, 0.0
      %v2182 = vsel %vm1930, 1.0, 0.0
      %v2183 = vsel %vm1931, 1.0, 0.0
      %v2184 = vsel %vm1932, 1.0, 0.0
      %v2185 = vsel %vm1933, 1.0, 0.0
      %v2186 = vsel %vm1934, 1.0, 0.0
      %v2187 = vsel %vm1935, 1.0, 0.0
      %v2188 = vsel %vm1936, 1.0, 0.0
      %v2189 = vsel %vm1937, 1.0, 0.0
      %v2190 = vsel %vm1938, 1.0, 0.0
      %v2191 = vsel %vm1939, 1.0, 0.0
      %v2192 = vsel %vm1940, 1.0, 0.0
      %v2193 = vsel %vm1941, 1.0, 0.0
      %v2194 = vsel %vm1942, 1.0, 0.0
      %v2195 = vsel %vm1943, 1.0, 0.0
      %v2196 = vsel %vm1944, 1.0, 0.0
      %v2197 = vsel %vm1945, 1.0, 0.0
      %v2198 = vsel %vm1946, 1.0, 0.0
      %v2199 = vsel %vm1947, 1.0, 0.0
      %v2200 = vsel %vm1948, 1.0, 0.0
      %v2201 = vsel %vm1949, 1.0, 0.0
      %v2202 = vsel %vm1950, 1.0, 0.0
      %v2203 = vsel %vm1951, 1.0, 0.0
      %v2204 = vsel %vm1952, 1.0, 0.0
      %v2205 = vsel %vm1953, 1.0, 0.0
      %v2206 = vsel %vm1954, 1.0, 0.0
      %v2207 = vsel %vm1955, 1.0, 0.0
      %v2208 = vsel %vm1956, 1.0, 0.0
      %v2209 = vsel %vm1957, 1.0, 0.0
      %v2210 = vsel %vm1958, 1.0, 0.0
      %v2211 = vsel %vm1959, 1.0, 0.0
      %v2212 = vsel %vm1960, 1.0, 0.0
      %v2213 = vsel %vm1961, 1.0, 0.0
      %v2214 = vsel %vm1962, 1.0, 0.0
      %v2215 = vsel %vm1963, 1.0, 0.0
      %v2216 = vsel %vm1964, 1.0, 0.0
      %v2217 = vsel %vm1965, 1.0, 0.0
      %v2218 = vsel %vm1966, 1.0, 0.0
      %v2219 = vsel %vm1967, 1.0, 0.0
      %v2220 = vsel %vm1968, 1.0, 0.0
      %v2221 = vsel %vm1969, 1.0, 0.0
      %v2222 = vsel %vm1970, 1.0, 0.0
      %v2223 = vsel %vm1971, 1.0, 0.0
      %v2224 = vsel %vm1972, 1.0, 0.0
      %v2225 = vsel %vm1973, 1.0, 0.0
      %v2226 = vsel %vm1974, 1.0, 0.0
      %v2227 = vsel %vm1975, 1.0, 0.0
      %v2228 = vsel %vm1976, 1.0, 0.0
      %v2229 = vsel %vm1977, 1.0, 0.0
      %v2230 = vsel %vm1978, 1.0, 0.0
      %v2231 = vsel %vm1979, 1.0, 0.0
      %v2232 = vsel %vm1980, 1.0, 0.0
      %v2233 = vsel %vm1981, 1.0, 0.0
      %v2234 = vsel %vm1982, 1.0, 0.0
      %v2235 = vsel %vm1983, 1.0, 0.0
      %v2236 = vsel %vm1984, 1.0, 0.0
      %v2237 = vsel %vm1985, 1.0, 0.0
      %v2238 = vsel %vm1986, 1.0, 0.0
      %v2239 = vsel %vm1987, 1.0, 0.0
      %v2240 = vsel %vm1988, 1.0, 0.0
      %v2241 = vsel %vm1989, 1.0, 0.0
      %v2242 = vsel %vm1990, 1.0, 0.0
      %v2243 = vsel %vm1991, 1.0, 0.0
      %v2244 = vsel %vm1992, 1.0, 0.0
      %v2245 = vsel %vm1993, 1.0, 0.0
      %v2246 = vsel %vm1994, 1.0, 0.0
      %v2247 = vsel %vm1995, 1.0, 0.0
      %v2248 = vsel %vm1996, 1.0, 0.0
      %v2249 = vsel %vm1997, 1.0, 0.0
      %v2250 = vsel %vm1998, 1.0, 0.0
      %v2251 = vsel %vm1999, 1.0, 0.0
      %v2252 = vsel %vm2000, 1.0, 0.0
      %v2253 = vsel %vm2001, 1.0, 0.0
      %v2254 = vsel %vm2002, 1.0, 0.0
      %v2255 = vsel %vm2003, 1.0, 0.0
      %v2256 = vsel %vm2004, 1.0, 0.0
      %v2257 = vsel %vm2005, 1.0, 0.0
      %v2258 = vsel %vm2006, 1.0, 0.0
      %v2259 = vsel %vm2007, 1.0, 0.0
      %v2260 = vsel %vm2008, 1.0, 0.0
      %v2261 = vsel %vm2009, 1.0, 0.0
      %v2262 = vsel %vm2010, 1.0, 0.0
      %v2263 = vsel %vm2011, 1.0, 0.0
      %v2264 = vsel %vm2012, 1.0, 0.0
      %v2265 = vsel %vm2013, 1.0, 0.0
      %v2266 = vsel %vm2014, 1.0, 0.0
      %v2267 = vsel %vm2015, 1.0, 0.0
      %v2268 = vpack.c.bf16 %v2020, %v2016
      %v2269 = vpack.c.bf16 %v2021, %v2017
      %v2270 = vpack.c.bf16 %v2022, %v2018
      %v2271 = vpack.c.bf16 %v2023, %v2019
      %v2272 = vpack.c.bf16 %v2028, %v2024
      %v2273 = vpack.c.bf16 %v2029, %v2025
      %v2274 = vpack.c.bf16 %v2030, %v2026
      %v2275 = vpack.c.bf16 %v2031, %v2027
      %v2276 = vpack.c.bf16 %v2036, %v2032
      %v2277 = vpack.c.bf16 %v2037, %v2033
      %v2278 = vpack.c.bf16 %v2038, %v2034
      %v2279 = vpack.c.bf16 %v2039, %v2035
      %v2280 = vpack.c.bf16 %v2044, %v2040
      %v2281 = vpack.c.bf16 %v2045, %v2041
      %v2282 = vpack.c.bf16 %v2046, %v2042
      %v2283 = vpack.c.bf16 %v2047, %v2043
      %v2284 = vpack.c.bf16 %v2052, %v2048
      %v2285 = vpack.c.bf16 %v2053, %v2049
      %v2286 = vpack.c.bf16 %v2054, %v2050
      %v2287 = vpack.c.bf16 %v2055, %v2051
      %v2288 = vpack.c.bf16 %v2060, %v2056
      %v2289 = vpack.c.bf16 %v2061, %v2057
      %v2290 = vpack.c.bf16 %v2062, %v2058
      %v2291 = vpack.c.bf16 %v2063, %v2059
      %v2292 = vpack.c.bf16 %v2068, %v2064
      %v2293 = vpack.c.bf16 %v2069, %v2065
      %v2294 = vpack.c.bf16 %v2070, %v2066
      %v2295 = vpack.c.bf16 %v2071, %v2067
      %v2296 = vpack.c.bf16 %v2076, %v2072
      %v2297 = vpack.c.bf16 %v2077, %v2073
      %v2298 = vpack.c.bf16 %v2078, %v2074
      %v2299 = vpack.c.bf16 %v2079, %v2075
      %v2300 = vpack.c.bf16 %v2084, %v2080
      %v2301 = vpack.c.bf16 %v2085, %v2081
      %v2302 = vpack.c.bf16 %v2086, %v2082
      %v2303 = vpack.c.bf16 %v2087, %v2083
      %v2304 = vpack.c.bf16 %v2092, %v2088
      %v2305 = vpack.c.bf16 %v2093, %v2089
      %v2306 = vpack.c.bf16 %v2094, %v2090
      %v2307 = vpack.c.bf16 %v2095, %v2091
      %v2308 = vpack.c.bf16 %v2100, %v2096
      %v2309 = vpack.c.bf16 %v2101, %v2097
      %v2310 = vpack.c.bf16 %v2102, %v2098
      %v2311 = vpack.c.bf16 %v2103, %v2099
      %v2312 = vpack.c.bf16 %v2108, %v2104
      %v2313 = vpack.c.bf16 %v2109, %v2105
      %v2314 = vpack.c.bf16 %v2110, %v2106
      %v2315 = vpack.c.bf16 %v2111, %v2107
      %v2316 = vpack.c.bf16 %v2116, %v2112
      %v2317 = vpack.c.bf16 %v2117, %v2113
      %v2318 = vpack.c.bf16 %v2118, %v2114
      %v2319 = vpack.c.bf16 %v2119, %v2115
      %v2320 = vpack.c.bf16 %v2124, %v2120
      %v2321 = vpack.c.bf16 %v2125, %v2121
      %v2322 = vpack.c.bf16 %v2126, %v2122
      %v2323 = vpack.c.bf16 %v2127, %v2123
      %v2324 = vpack.c.bf16 %v2132, %v2128
      %v2325 = vpack.c.bf16 %v2133, %v2129
      %v2326 = vpack.c.bf16 %v2134, %v2130
      %v2327 = vpack.c.bf16 %v2135, %v2131
      %v2328 = vpack.c.bf16 %v2140, %v2136
      %v2329 = vpack.c.bf16 %v2141, %v2137
      %v2330 = vpack.c.bf16 %v2142, %v2138
      %v2331 = vpack.c.bf16 %v2143, %v2139
      %v2332 = vpack.c.bf16 %v2148, %v2144
      %v2333 = vpack.c.bf16 %v2149, %v2145
      %v2334 = vpack.c.bf16 %v2150, %v2146
      %v2335 = vpack.c.bf16 %v2151, %v2147
      %v2336 = vpack.c.bf16 %v2156, %v2152
      %v2337 = vpack.c.bf16 %v2157, %v2153
      %v2338 = vpack.c.bf16 %v2158, %v2154
      %v2339 = vpack.c.bf16 %v2159, %v2155
      %v2340 = vpack.c.bf16 %v2164, %v2160
      %v2341 = vpack.c.bf16 %v2165, %v2161
      %v2342 = vpack.c.bf16 %v2166, %v2162
      %v2343 = vpack.c.bf16 %v2167, %v2163
      %v2344 = vpack.c.bf16 %v2172, %v2168
      %v2345 = vpack.c.bf16 %v2173, %v2169
      %v2346 = vpack.c.bf16 %v2174, %v2170
      %v2347 = vpack.c.bf16 %v2175, %v2171
      %v2348 = vpack.c.bf16 %v2180, %v2176
      %v2349 = vpack.c.bf16 %v2181, %v2177
      %v2350 = vpack.c.bf16 %v2182, %v2178
      %v2351 = vpack.c.bf16 %v2183, %v2179
      %v2352 = vpack.c.bf16 %v2188, %v2184
      %v2353 = vpack.c.bf16 %v2189, %v2185
      %v2354 = vpack.c.bf16 %v2190, %v2186
      %v2355 = vpack.c.bf16 %v2191, %v2187
      %v2356 = vpack.c.bf16 %v2196, %v2192
      %v2357 = vpack.c.bf16 %v2197, %v2193
      %v2358 = vpack.c.bf16 %v2198, %v2194
      %v2359 = vpack.c.bf16 %v2199, %v2195
      %v2360 = vpack.c.bf16 %v2204, %v2200
      %v2361 = vpack.c.bf16 %v2205, %v2201
      %v2362 = vpack.c.bf16 %v2206, %v2202
      %v2363 = vpack.c.bf16 %v2207, %v2203
      %v2364 = vpack.c.bf16 %v2212, %v2208
      %v2365 = vpack.c.bf16 %v2213, %v2209
      %v2366 = vpack.c.bf16 %v2214, %v2210
      %v2367 = vpack.c.bf16 %v2215, %v2211
      %v2368 = vpack.c.bf16 %v2220, %v2216
      %v2369 = vpack.c.bf16 %v2221, %v2217
      %v2370 = vpack.c.bf16 %v2222, %v2218
      %v2371 = vpack.c.bf16 %v2223, %v2219
      %v2372 = vpack.c.bf16 %v2228, %v2224
      %v2373 = vpack.c.bf16 %v2229, %v2225
      %v2374 = vpack.c.bf16 %v2230, %v2226
      %v2375 = vpack.c.bf16 %v2231, %v2227
      %v2376 = vpack.c.bf16 %v2236, %v2232
      %v2377 = vpack.c.bf16 %v2237, %v2233
      %v2378 = vpack.c.bf16 %v2238, %v2234
      %v2379 = vpack.c.bf16 %v2239, %v2235
      %v2380 = vpack.c.bf16 %v2244, %v2240
      %v2381 = vpack.c.bf16 %v2245, %v2241
      %v2382 = vpack.c.bf16 %v2246, %v2242
      %v2383 = vpack.c.bf16 %v2247, %v2243
      %v2384 = vpack.c.bf16 %v2252, %v2248
      %v2385 = vpack.c.bf16 %v2253, %v2249
      %v2386 = vpack.c.bf16 %v2254, %v2250
      %v2387 = vpack.c.bf16 %v2255, %v2251
      %v2388 = vpack.c.bf16 %v2260, %v2256
      %v2389 = vpack.c.bf16 %v2261, %v2257
      %v2390 = vpack.c.bf16 %v2262, %v2258
      %v2391 = vpack.c.bf16 %v2263, %v2259
      %v2392 = vpack.c.bf16 %v2264, %v2264
      %v2393 = vpack.c.bf16 %v2265, %v2265
      %v2394 = vpack.c.bf16 %v2266, %v2266
      %v2395 = vpack.c.bf16 %v2267, %v2267
      %v2396 = vld [vmem:[%s4] sm:$0xf]
      %v2397 = vld [vmem:[%s4 + $0x4] sm:$0xf]
      %v2398 = vld [vmem:[%s4 + $0x8] sm:$0xf]
      %v2399 = vld [vmem:[%s4 + $0xc] sm:$0xf]
      %v2400 = vld [vmem:[%s4 + $0x10] sm:$0xf]
      %v2401 = vld [vmem:[%s4 + $0x14] sm:$0xf]
      %v2402 = vld [vmem:[%s4 + $0x18] sm:$0xf]
      %v2403 = vld [vmem:[%s4 + $0x1c] sm:$0xf]
      %v2404 = vld [vmem:[%s4 + $0x20] sm:$0xf]
      %v2405 = vld [vmem:[%s4 + $0x24] sm:$0xf]
      %v2406 = vld [vmem:[%s4 + $0x28] sm:$0xf]
      %v2407 = vld [vmem:[%s4 + $0x2c] sm:$0xf]
      %v2408 = vld [vmem:[%s4 + $0x30] sm:$0xf]
      %v2409 = vld [vmem:[%s4 + $0x34] sm:$0xf]
      %v2410 = vld [vmem:[%s4 + $0x38] sm:$0xf]
      %v2411 = vld [vmem:[%s4 + $0x3c] sm:$0xf]
      %v2412 = vld [vmem:[%s4 + $0x40] sm:$0xf]
      %v2413 = vld [vmem:[%s4 + $0x44] sm:$0xf]
      %v2414 = vld [vmem:[%s4 + $0x48] sm:$0xf]
      %v2415 = vld [vmem:[%s4 + $0x4c] sm:$0xf]
      %v2416 = vld [vmem:[%s4 + $0x50] sm:$0xf]
      %v2417 = vld [vmem:[%s4 + $0x54] sm:$0xf]
      %v2418 = vld [vmem:[%s4 + $0x58] sm:$0xf]
      %v2419 = vld [vmem:[%s4 + $0x5c] sm:$0xf]
      %v2420 = vld [vmem:[%s4 + $0x60] sm:$0xf]
      %v2421 = vld [vmem:[%s4 + $0x64] sm:$0xf]
      %v2422 = vld [vmem:[%s4 + $0x68] sm:$0xf]
      %v2423 = vld [vmem:[%s4 + $0x6c] sm:$0xf]
      %v2424 = vld [vmem:[%s4 + $0x70] sm:$0xf]
      %v2425 = vld [vmem:[%s4 + $0x74] sm:$0xf]
      %v2426 = vld [vmem:[%s4 + $0x78] sm:$0xf]
      %v2427 = vld [vmem:[%s4 + $0x7c] sm:$0xf]
      %v2428 = vld [vmem:[%s4 + $0x80] sm:$0xf]
      %v2429 = vld [vmem:[%s4 + $0x84] sm:$0xf]
      %v2430 = vld [vmem:[%s4 + $0x88] sm:$0xf]
      %v2431 = vld [vmem:[%s4 + $0x8c] sm:$0xf]
      %v2432 = vld [vmem:[%s4 + $0x90] sm:$0xf]
      %v2433 = vld [vmem:[%s4 + $0x94] sm:$0xf]
      %v2434 = vld [vmem:[%s4 + $0x98] sm:$0xf]
      %v2435 = vld [vmem:[%s4 + $0x9c] sm:$0xf]
      %v2436 = vld [vmem:[%s4 + $0xa0] sm:$0xf]
      %v2437 = vld [vmem:[%s4 + $0xa4] sm:$0xf]
      %v2438 = vld [vmem:[%s4 + $0xa8] sm:$0xf]
      %v2439 = vld [vmem:[%s4 + $0xac] sm:$0xf]
      %v2440 = vld [vmem:[%s4 + $0xb0] sm:$0xf]
      %v2441 = vld [vmem:[%s4 + $0xb4] sm:$0xf]
      %v2442 = vld [vmem:[%s4 + $0xb8] sm:$0xf]
      %v2443 = vld [vmem:[%s4 + $0xbc] sm:$0xf]
      %v2444 = vld [vmem:[%s4 + $0xc0] sm:$0xf]
      %v2445 = vld [vmem:[%s4 + $0xc4] sm:$0xf]
      %v2446 = vld [vmem:[%s4 + $0xc8] sm:$0xf]
      %v2447 = vld [vmem:[%s4 + $0xcc] sm:$0xf]
      %v2448 = vld [vmem:[%s4 + $0xd0] sm:$0xf]
      %v2449 = vld [vmem:[%s4 + $0xd4] sm:$0xf]
      %v2450 = vld [vmem:[%s4 + $0xd8] sm:$0xf]
      %v2451 = vld [vmem:[%s4 + $0xdc] sm:$0xf]
      %v2452 = vld [vmem:[%s4 + $0xe0] sm:$0xf]
      %v2453 = vld [vmem:[%s4 + $0xe4] sm:$0xf]
      %v2454 = vld [vmem:[%s4 + $0xe8] sm:$0xf]
      %v2455 = vld [vmem:[%s4 + $0xec] sm:$0xf]
      %v2456 = vld [vmem:[%s4 + $0xf0] sm:$0xf]
      %v2457 = vld [vmem:[%s4 + $0xf4] sm:$0xf]
      %v2458 = vld [vmem:[%s4 + $0xf8] sm:$0xf]
      %v2459 = vld [vmem:[%s4 + $0xfc] sm:$0xf]
      %v2524 = vunpack.c.l.b16 %v2396
      %v2525 = vunpack.c.l.b16 %v2397
      %v2526 = vunpack.c.l.b16 %v2398
      %v2527 = vunpack.c.l.b16 %v2399
      %v2528 = vunpack.c.l.b16 %v2400
      %v2529 = vunpack.c.l.b16 %v2401
      %v2530 = vunpack.c.l.b16 %v2402
      %v2531 = vunpack.c.l.b16 %v2403
      %v2532 = vunpack.c.l.b16 %v2404
      %v2533 = vunpack.c.l.b16 %v2405
      %v2534 = vunpack.c.l.b16 %v2406
      %v2535 = vunpack.c.l.b16 %v2407
      %v2536 = vunpack.c.l.b16 %v2408
      %v2537 = vunpack.c.l.b16 %v2409
      %v2538 = vunpack.c.l.b16 %v2410
      %v2539 = vunpack.c.l.b16 %v2411
      %v2540 = vunpack.c.l.b16 %v2412
      %v2541 = vunpack.c.l.b16 %v2413
      %v2542 = vunpack.c.l.b16 %v2414
      %v2543 = vunpack.c.l.b16 %v2415
      %v2544 = vunpack.c.l.b16 %v2416
      %v2545 = vunpack.c.l.b16 %v2417
      %v2546 = vunpack.c.l.b16 %v2418
      %v2547 = vunpack.c.l.b16 %v2419
      %v2548 = vunpack.c.l.b16 %v2420
      %v2549 = vunpack.c.l.b16 %v2421
      %v2550 = vunpack.c.l.b16 %v2422
      %v2551 = vunpack.c.l.b16 %v2423
      %v2552 = vunpack.c.l.b16 %v2424
      %v2553 = vunpack.c.l.b16 %v2425
      %v2554 = vunpack.c.l.b16 %v2426
      %v2555 = vunpack.c.l.b16 %v2427
      %v2556 = vunpack.c.l.b16 %v2428
      %v2557 = vunpack.c.l.b16 %v2429
      %v2558 = vunpack.c.l.b16 %v2430
      %v2559 = vunpack.c.l.b16 %v2431
      %v2560 = vunpack.c.l.b16 %v2432
      %v2561 = vunpack.c.l.b16 %v2433
      %v2562 = vunpack.c.l.b16 %v2434
      %v2563 = vunpack.c.l.b16 %v2435
      %v2564 = vunpack.c.l.b16 %v2436
      %v2565 = vunpack.c.l.b16 %v2437
      %v2566 = vunpack.c.l.b16 %v2438
      %v2567 = vunpack.c.l.b16 %v2439
      %v2568 = vunpack.c.l.b16 %v2440
      %v2569 = vunpack.c.l.b16 %v2441
      %v2570 = vunpack.c.l.b16 %v2442
      %v2571 = vunpack.c.l.b16 %v2443
      %v2572 = vunpack.c.l.b16 %v2444
      %v2573 = vunpack.c.l.b16 %v2445
      %v2574 = vunpack.c.l.b16 %v2446
      %v2575 = vunpack.c.l.b16 %v2447
      %v2576 = vunpack.c.l.b16 %v2448
      %v2577 = vunpack.c.l.b16 %v2449
      %v2578 = vunpack.c.l.b16 %v2450
      %v2579 = vunpack.c.l.b16 %v2451
      %v2580 = vunpack.c.l.b16 %v2452
      %v2581 = vunpack.c.l.b16 %v2453
      %v2582 = vunpack.c.l.b16 %v2454
      %v2583 = vunpack.c.l.b16 %v2455
      %v2584 = vunpack.c.l.b16 %v2456
      %v2585 = vunpack.c.l.b16 %v2457
      %v2586 = vunpack.c.l.b16 %v2458
      %v2587 = vunpack.c.l.b16 %v2459
      %v2588 = vpack.c.b16 %v2525, %v2524
      %v2589 = vpack.c.b16 %v2527, %v2526
      %v2590 = vpack.c.b16 %v2529, %v2528
      %v2591 = vpack.c.b16 %v2531, %v2530
      %v2592 = vpack.c.b16 %v2533, %v2532
      %v2593 = vpack.c.b16 %v2535, %v2534
      %v2594 = vpack.c.b16 %v2537, %v2536
      %v2595 = vpack.c.b16 %v2539, %v2538
      %v2596 = vpack.c.b16 %v2541, %v2540
      %v2597 = vpack.c.b16 %v2543, %v2542
      %v2598 = vpack.c.b16 %v2545, %v2544
      %v2599 = vpack.c.b16 %v2547, %v2546
      %v2600 = vpack.c.b16 %v2549, %v2548
      %v2601 = vpack.c.b16 %v2551, %v2550
      %v2602 = vpack.c.b16 %v2553, %v2552
      %v2603 = vpack.c.b16 %v2555, %v2554
      %v2604 = vpack.c.b16 %v2557, %v2556
      %v2605 = vpack.c.b16 %v2559, %v2558
      %v2606 = vpack.c.b16 %v2561, %v2560
      %v2607 = vpack.c.b16 %v2563, %v2562
      %v2608 = vpack.c.b16 %v2565, %v2564
      %v2609 = vpack.c.b16 %v2567, %v2566
      %v2610 = vpack.c.b16 %v2569, %v2568
      %v2611 = vpack.c.b16 %v2571, %v2570
      %v2612 = vpack.c.b16 %v2573, %v2572
      %v2613 = vpack.c.b16 %v2575, %v2574
      %v2614 = vpack.c.b16 %v2577, %v2576
      %v2615 = vpack.c.b16 %v2579, %v2578
      %v2616 = vpack.c.b16 %v2581, %v2580
      %v2617 = vpack.c.b16 %v2583, %v2582
      %v2618 = vpack.c.b16 %v2585, %v2584
      %v2619 = vpack.c.b16 %v2587, %v2586
      %2652 = vmatprep.subr.bf16.mxu0 0
      %2653 = vmatpush1.bf16.msra.mxu0 %v2588
      %2654 = vmatprep.subr.bf16.mxu0 0
      %2655 = vmatpush1.bf16.msra.mxu0 %v2589
      %2656 = vmatprep.subr.bf16.mxu0 0
      %2657 = vmatpush1.bf16.msra.mxu0 %v2590
      %2658 = vmatprep.subr.bf16.mxu0 0
      %2659 = vmatpush1.bf16.msra.mxu0 %v2591
      %2660 = vmatprep.subr.bf16.mxu0 0
      %2661 = vmatpush1.bf16.msra.mxu0 %v2592
      %2662 = vmatprep.subr.bf16.mxu0 0
      %2663 = vmatpush1.bf16.msra.mxu0 %v2593
      %2664 = vmatprep.subr.bf16.mxu0 0
      %2665 = vmatpush1.bf16.msra.mxu0 %v2594
      %2666 = vmatprep.subr.bf16.mxu0 0
      %2667 = vmatpush1.bf16.msra.mxu0 %v2595
      %2668 = vmatprep.subr.bf16.mxu0 0
      %2669 = vmatpush1.bf16.msra.mxu0 %v2596
      %2670 = vmatprep.subr.bf16.mxu0 0
      %2671 = vmatpush1.bf16.msra.mxu0 %v2597
      %2672 = vmatprep.subr.bf16.mxu0 0
      %2673 = vmatpush1.bf16.msra.mxu0 %v2598
      %2674 = vmatprep.subr.bf16.mxu0 0
      %2675 = vmatpush1.bf16.msra.mxu0 %v2599
      %2676 = vmatprep.subr.bf16.mxu0 0
      %2677 = vmatpush1.bf16.msra.mxu0 %v2600
      %2678 = vmatprep.subr.bf16.mxu0 0
      %2679 = vmatpush1.bf16.msra.mxu0 %v2601
      %2680 = vmatprep.subr.bf16.mxu0 0
      %2681 = vmatpush1.bf16.msra.mxu0 %v2602
      %2682 = vmatprep.subr.bf16.mxu0 0
      %2683 = vmatpush1.bf16.msra.mxu0 %v2603
      %2684 = vmatprep.mubr.bf16.mxu0 %v2269
      %2685 = vmatmul.mubr.bf16.gmra.mrb[0].mxu0 %v2268
      %v2686 = vpop.f32.mrb[0].mxu0
      %v2687 = vadd.f32 0.0, %v2686
      %v2688 = vpop.f32.mrb[0].mxu0
      %v2689 = vpop.f32.mrb[0].mxu0
      %v2690 = vadd.f32 0.0, %v2689
      %v2691 = vpop.f32.mrb[0].mxu0
      %2692 = vmatprep.mubr.bf16.mxu0 %v2273
      %2693 = vmatmul.mubr.bf16.gmra.mrb[0].mxu0 %v2272
      %v2694 = vpop.f32.mrb[0].mxu0
      %v2695 = vadd.f32 0.0, %v2694
      %v2696 = vpop.f32.mrb[0].mxu0
      %v2697 = vpop.f32.mrb[0].mxu0
      %v2698 = vadd.f32 0.0, %v2697
      %v2699 = vpop.f32.mrb[0].mxu0
      %2700 = vmatprep.mubr.bf16.mxu0 %v2277
      %2701 = vmatmul.mubr.bf16.gmra.mrb[0].mxu0 %v2276
      %v2702 = vpop.f32.mrb[0].mxu0
      %v2703 = vadd.f32 0.0, %v2702
      %v2704 = vpop.f32.mrb[0].mxu0
      %v2705 = vpop.f32.mrb[0].mxu0
      %v2706 = vadd.f32 0.0, %v2705
      %v2707 = vpop.f32.mrb[0].mxu0
      %2708 = vmatprep.mubr.bf16.mxu0 %v2281
      %2709 = vmatmul.mubr.bf16.gmra.mrb[0].mxu0 %v2280
      %v2710 = vpop.f32.mrb[0].mxu0
      %v2711 = vadd.f32 0.0, %v2710
      %v2712 = vpop.f32.mrb[0].mxu0
      %v2713 = vpop.f32.mrb[0].mxu0
      %v2714 = vadd.f32 0.0, %v2713
      %v2715 = vpop.f32.mrb[0].mxu0
      %2716 = vmatprep.mubr.bf16.mxu0 %v2285
      %2717 = vmatmul.mubr.bf16.gmra.mrb[0].mxu0 %v2284
      %v2718 = vpop.f32.mrb[0].mxu0
      %v2719 = vadd.f32 0.0, %v2718
      %v2720 = vpop.f32.mrb[0].mxu0
      %v2721 = vpop.f32.mrb[0].mxu0
      %v2722 = vadd.f32 0.0, %v2721
      %v2723 = vpop.f32.mrb[0].mxu0
      %2724 = vmatprep.mubr.bf16.mxu0 %v2289
      %2725 = vmatmul.mubr.bf16.gmra.mrb[0].mxu0 %v2288
      %v2726 = vpop.f32.mrb[0].mxu0
      %v2727 = vadd.f32 0.0, %v2726
      %v2728 = vpop.f32.mrb[0].mxu0
      %v2729 = vpop.f32.mrb[0].mxu0
      %v2730 = vadd.f32 0.0, %v2729
      %v2731 = vpop.f32.mrb[0].mxu0
      %2732 = vmatprep.mubr.bf16.mxu0 %v2293
      %2733 = vmatmul.mubr.bf16.gmra.mrb[0].mxu0 %v2292
      %v2734 = vpop.f32.mrb[0].mxu0
      %v2735 = vadd.f32 0.0, %v2734
      %v2736 = vpop.f32.mrb[0].mxu0
      %v2737 = vpop.f32.mrb[0].mxu0
      %v2738 = vadd.f32 0.0, %v2737
      %v2739 = vpop.f32.mrb[0].mxu0
      %2740 = vmatprep.mubr.bf16.mxu0 %v2297
      %2741 = vmatmul.mubr.bf16.gmra.mrb[0].mxu0 %v2296
      %v2742 = vpop.f32.mrb[0].mxu0
      %v2743 = vadd.f32 0.0, %v2742
      %v2744 = vpop.f32.mrb[0].mxu0
      %v2745 = vpop.f32.mrb[0].mxu0
      %v2746 = vadd.f32 0.0, %v2745
      %v2747 = vpop.f32.mrb[0].mxu0
      %2748 = vmatprep.mubr.bf16.mxu0 %v2301
      %2749 = vmatmul.mubr.bf16.gmra.mrb[0].mxu0 %v2300
      %v2750 = vpop.f32.mrb[0].mxu0
      %v2751 = vadd.f32 0.0, %v2750
      %v2752 = vpop.f32.mrb[0].mxu0
      %v2753 = vpop.f32.mrb[0].mxu0
      %v2754 = vadd.f32 0.0, %v2753
      %v2755 = vpop.f32.mrb[0].mxu0
      %2756 = vmatprep.mubr.bf16.mxu0 %v2305
      %2757 = vmatmul.mubr.bf16.gmra.mrb[0].mxu0 %v2304
      %v2758 = vpop.f32.mrb[0].mxu0
      %v2759 = vadd.f32 0.0, %v2758
      %v2760 = vpop.f32.mrb[0].mxu0
      %v2761 = vpop.f32.mrb[0].mxu0
      %v2762 = vadd.f32 0.0, %v2761
      %v2763 = vpop.f32.mrb[0].mxu0
      %2764 = vmatprep.mubr.bf16.mxu0 %v2309
      %2765 = vmatmul.mubr.bf16.gmra.mrb[0].mxu0 %v2308
      %v2766 = vpop.f32.mrb[0].mxu0
      %v2767 = vadd.f32 0.0, %v2766
      %v2768 = vpop.f32.mrb[0].mxu0
      %v2769 = vpop.f32.mrb[0].mxu0
      %v2770 = vadd.f32 0.0, %v2769
      %v2771 = vpop.f32.mrb[0].mxu0
      %2772 = vmatprep.mubr.bf16.mxu0 %v2313
      %2773 = vmatmul.mubr.bf16.gmra.mrb[0].mxu0 %v2312
      %v2774 = vpop.f32.mrb[0].mxu0
      %v2775 = vadd.f32 0.0, %v2774
      %v2776 = vpop.f32.mrb[0].mxu0
      %v2777 = vpop.f32.mrb[0].mxu0
      %v2778 = vadd.f32 0.0, %v2777
      %v2779 = vpop.f32.mrb[0].mxu0
      %2780 = vmatprep.mubr.bf16.mxu0 %v2317
      %2781 = vmatmul.mubr.bf16.gmra.mrb[0].mxu0 %v2316
      %v2782 = vpop.f32.mrb[0].mxu0
      %v2783 = vadd.f32 0.0, %v2782
      %v2784 = vpop.f32.mrb[0].mxu0
      %v2785 = vpop.f32.mrb[0].mxu0
      %v2786 = vadd.f32 0.0, %v2785
      %v2787 = vpop.f32.mrb[0].mxu0
      %2788 = vmatprep.mubr.bf16.mxu0 %v2321
      %2789 = vmatmul.mubr.bf16.gmra.mrb[0].mxu0 %v2320
      %v2790 = vpop.f32.mrb[0].mxu0
      %v2791 = vadd.f32 0.0, %v2790
      %v2792 = vpop.f32.mrb[0].mxu0
      %v2793 = vpop.f32.mrb[0].mxu0
      %v2794 = vadd.f32 0.0, %v2793
      %v2795 = vpop.f32.mrb[0].mxu0
      %2796 = vmatprep.mubr.bf16.mxu0 %v2325
      %2797 = vmatmul.mubr.bf16.gmra.mrb[0].mxu0 %v2324
      %v2798 = vpop.f32.mrb[0].mxu0
      %v2799 = vadd.f32 0.0, %v2798
      %v2800 = vpop.f32.mrb[0].mxu0
      %v2801 = vpop.f32.mrb[0].mxu0
      %v2802 = vadd.f32 0.0, %v2801
      %v2803 = vpop.f32.mrb[0].mxu0
      %2804 = vmatprep.mubr.bf16.mxu0 %v2329
      %2805 = vmatmul.mubr.bf16.gmra.mrb[0].mxu0 %v2328
      %v2806 = vpop.f32.mrb[0].mxu0
      %v2807 = vadd.f32 0.0, %v2806
      %v2808 = vpop.f32.mrb[0].mxu0
      %v2809 = vpop.f32.mrb[0].mxu0
      %v2810 = vadd.f32 0.0, %v2809
      %v2811 = vpop.f32.mrb[0].mxu0
      %2812 = vmatprep.mubr.bf16.mxu0 %v2333
      %2813 = vmatmul.mubr.bf16.gmra.mrb[0].mxu0 %v2332
      %v2814 = vpop.f32.mrb[0].mxu0
      %v2815 = vadd.f32 0.0, %v2814
      %v2816 = vpop.f32.mrb[0].mxu0
      %v2817 = vpop.f32.mrb[0].mxu0
      %v2818 = vadd.f32 0.0, %v2817
      %v2819 = vpop.f32.mrb[0].mxu0
      %2820 = vmatprep.mubr.bf16.mxu0 %v2337
      %2821 = vmatmul.mubr.bf16.gmra.mrb[0].mxu0 %v2336
      %v2822 = vpop.f32.mrb[0].mxu0
      %v2823 = vadd.f32 0.0, %v2822
      %v2824 = vpop.f32.mrb[0].mxu0
      %v2825 = vpop.f32.mrb[0].mxu0
      %v2826 = vadd.f32 0.0, %v2825
      %v2827 = vpop.f32.mrb[0].mxu0
      %2828 = vmatprep.mubr.bf16.mxu0 %v2341
      %2829 = vmatmul.mubr.bf16.gmra.mrb[0].mxu0 %v2340
      %v2830 = vpop.f32.mrb[0].mxu0
      %v2831 = vadd.f32 0.0, %v2830
      %v2832 = vpop.f32.mrb[0].mxu0
      %v2833 = vpop.f32.mrb[0].mxu0
      %v2834 = vadd.f32 0.0, %v2833
      %v2835 = vpop.f32.mrb[0].mxu0
      %2836 = vmatprep.mubr.bf16.mxu0 %v2345
      %2837 = vmatmul.mubr.bf16.gmra.mrb[0].mxu0 %v2344
      %v2838 = vpop.f32.mrb[0].mxu0
      %v2839 = vadd.f32 0.0, %v2838
      %v2840 = vpop.f32.mrb[0].mxu0
      %v2841 = vpop.f32.mrb[0].mxu0
      %v2842 = vadd.f32 0.0, %v2841
      %v2843 = vpop.f32.mrb[0].mxu0
      %2844 = vmatprep.mubr.bf16.mxu0 %v2349
      %2845 = vmatmul.mubr.bf16.gmra.mrb[0].mxu0 %v2348
      %v2846 = vpop.f32.mrb[0].mxu0
      %v2847 = vadd.f32 0.0, %v2846
      %v2848 = vpop.f32.mrb[0].mxu0
      %v2849 = vpop.f32.mrb[0].mxu0
      %v2850 = vadd.f32 0.0, %v2849
      %v2851 = vpop.f32.mrb[0].mxu0
      %2852 = vmatprep.mubr.bf16.mxu0 %v2353
      %2853 = vmatmul.mubr.bf16.gmra.mrb[0].mxu0 %v2352
      %v2854 = vpop.f32.mrb[0].mxu0
      %v2855 = vadd.f32 0.0, %v2854
      %v2856 = vpop.f32.mrb[0].mxu0
      %v2857 = vpop.f32.mrb[0].mxu0
      %v2858 = vadd.f32 0.0, %v2857
      %v2859 = vpop.f32.mrb[0].mxu0
      %2860 = vmatprep.mubr.bf16.mxu0 %v2357
      %2861 = vmatmul.mubr.bf16.gmra.mrb[0].mxu0 %v2356
      %v2862 = vpop.f32.mrb[0].mxu0
      %v2863 = vadd.f32 0.0, %v2862
      %v2864 = vpop.f32.mrb[0].mxu0
      %v2865 = vpop.f32.mrb[0].mxu0
      %v2866 = vadd.f32 0.0, %v2865
      %v2867 = vpop.f32.mrb[0].mxu0
      %2868 = vmatprep.mubr.bf16.mxu0 %v2361
      %2869 = vmatmul.mubr.bf16.gmra.mrb[0].mxu0 %v2360
      %v2870 = vpop.f32.mrb[0].mxu0
      %v2871 = vadd.f32 0.0, %v2870
      %v2872 = vpop.f32.mrb[0].mxu0
      %v2873 = vpop.f32.mrb[0].mxu0
      %v2874 = vadd.f32 0.0, %v2873
      %v2875 = vpop.f32.mrb[0].mxu0
      %2876 = vmatprep.mubr.bf16.mxu0 %v2365
      %2877 = vmatmul.mubr.bf16.gmra.mrb[0].mxu0 %v2364
      %v2878 = vpop.f32.mrb[0].mxu0
      %v2879 = vadd.f32 0.0, %v2878
      %v2880 = vpop.f32.mrb[0].mxu0
      %v2881 = vpop.f32.mrb[0].mxu0
      %v2882 = vadd.f32 0.0, %v2881
      %v2883 = vpop.f32.mrb[0].mxu0
      %2884 = vmatprep.mubr.bf16.mxu0 %v2369
      %2885 = vmatmul.mubr.bf16.gmra.mrb[0].mxu0 %v2368
      %v2886 = vpop.f32.mrb[0].mxu0
      %v2887 = vadd.f32 0.0, %v2886
      %v2888 = vpop.f32.mrb[0].mxu0
      %v2889 = vpop.f32.mrb[0].mxu0
      %v2890 = vadd.f32 0.0, %v2889
      %v2891 = vpop.f32.mrb[0].mxu0
      %2892 = vmatprep.mubr.bf16.mxu0 %v2373
      %2893 = vmatmul.mubr.bf16.gmra.mrb[0].mxu0 %v2372
      %v2894 = vpop.f32.mrb[0].mxu0
      %v2895 = vadd.f32 0.0, %v2894
      %v2896 = vpop.f32.mrb[0].mxu0
      %v2897 = vpop.f32.mrb[0].mxu0
      %v2898 = vadd.f32 0.0, %v2897
      %v2899 = vpop.f32.mrb[0].mxu0
      %2900 = vmatprep.mubr.bf16.mxu0 %v2377
      %2901 = vmatmul.mubr.bf16.gmra.mrb[0].mxu0 %v2376
      %v2902 = vpop.f32.mrb[0].mxu0
      %v2903 = vadd.f32 0.0, %v2902
      %v2904 = vpop.f32.mrb[0].mxu0
      %v2905 = vpop.f32.mrb[0].mxu0
      %v2906 = vadd.f32 0.0, %v2905
      %v2907 = vpop.f32.mrb[0].mxu0
      %2908 = vmatprep.mubr.bf16.mxu0 %v2381
      %2909 = vmatmul.mubr.bf16.gmra.mrb[0].mxu0 %v2380
      %v2910 = vpop.f32.mrb[0].mxu0
      %v2911 = vadd.f32 0.0, %v2910
      %v2912 = vpop.f32.mrb[0].mxu0
      %v2913 = vpop.f32.mrb[0].mxu0
      %v2914 = vadd.f32 0.0, %v2913
      %v2915 = vpop.f32.mrb[0].mxu0
      %2916 = vmatprep.mubr.bf16.mxu0 %v2385
      %2917 = vmatmul.mubr.bf16.gmra.mrb[0].mxu0 %v2384
      %v2918 = vpop.f32.mrb[0].mxu0
      %v2919 = vadd.f32 0.0, %v2918
      %v2920 = vpop.f32.mrb[0].mxu0
      %v2921 = vpop.f32.mrb[0].mxu0
      %v2922 = vadd.f32 0.0, %v2921
      %v2923 = vpop.f32.mrb[0].mxu0
      %2924 = vmatprep.mubr.bf16.mxu0 %v2389
      %2925 = vmatmul.mubr.bf16.gmra.mrb[0].mxu0 %v2388
      %v2926 = vpop.f32.mrb[0].mxu0
      %v2927 = vadd.f32 0.0, %v2926
      %v2928 = vpop.f32.mrb[0].mxu0
      %v2929 = vpop.f32.mrb[0].mxu0
      %v2930 = vadd.f32 0.0, %v2929
      %v2931 = vpop.f32.mrb[0].mxu0
      %2932 = vmatprep.mubr.bf16.mxu0 %v2393
      %2933 = vmatmul.mubr.bf16.gmra.mrb[0].mxu0 %v2392
      %v2934 = vpop.f32.mrb[0].mxu0
      %v2935 = vadd.f32 0.0, %v2934
      %v2936 = vpop.f32.mrb[0].mxu0
      %v2937 = vpop.f32.mrb[0].mxu0
      %v2938 = vpop.f32.mrb[0].mxu0
      %2939 = vdwg.mxu0
      %2940 = vmatprep.subr.bf16.mxu0 0
      %2941 = vmatpush1.bf16.msra.mxu0 %v2604
      %2942 = vmatprep.subr.bf16.mxu0 0
      %2943 = vmatpush1.bf16.msra.mxu0 %v2605
      %2944 = vmatprep.subr.bf16.mxu0 0
      %2945 = vmatpush1.bf16.msra.mxu0 %v2606
      %2946 = vmatprep.subr.bf16.mxu0 0
      %2947 = vmatpush1.bf16.msra.mxu0 %v2607
      %2948 = vmatprep.subr.bf16.mxu0 0
      %2949 = vmatpush1.bf16.msra.mxu0 %v2608
      %2950 = vmatprep.subr.bf16.mxu0 0
      %2951 = vmatpush1.bf16.msra.mxu0 %v2609
      %2952 = vmatprep.subr.bf16.mxu0 0
      %2953 = vmatpush1.bf16.msra.mxu0 %v2610
      %2954 = vmatprep.subr.bf16.mxu0 0
      %2955 = vmatpush1.bf16.msra.mxu0 %v2611
      %2956 = vmatprep.subr.bf16.mxu0 0
      %2957 = vmatpush1.bf16.msra.mxu0 %v2612
      %2958 = vmatprep.subr.bf16.mxu0 0
      %2959 = vmatpush1.bf16.msra.mxu0 %v2613
      %2960 = vmatprep.subr.bf16.mxu0 0
      %2961 = vmatpush1.bf16.msra.mxu0 %v2614
      %2962 = vmatprep.subr.bf16.mxu0 0
      %2963 = vmatpush1.bf16.msra.mxu0 %v2615
      %2964 = vmatprep.subr.bf16.mxu0 0
      %2965 = vmatpush1.bf16.msra.mxu0 %v2616
      %2966 = vmatprep.subr.bf16.mxu0 0
      %2967 = vmatpush1.bf16.msra.mxu0 %v2617
      %2968 = vmatprep.subr.bf16.mxu0 0
      %2969 = vmatpush1.bf16.msra.mxu0 %v2618
      %2970 = vmatprep.subr.bf16.mxu0 0
      %2971 = vmatpush1.bf16.msra.mxu0 %v2619
      %2972 = vmatprep.mubr.bf16.mxu0 %v2271
      %2973 = vmatmul.mubr.bf16.gmra.mrb[0].mxu0 %v2270
      %v2974 = vpop.f32.mrb[0].mxu0
      %v2975 = vadd.f32 %v2687, %v2974
      %v2976 = vpop.f32.mrb[0].mxu0
      %v2977 = vpop.f32.mrb[0].mxu0
      %v2978 = vadd.f32 %v2690, %v2977
      %v2979 = vpop.f32.mrb[0].mxu0
      %2980 = vmatprep.mubr.bf16.mxu0 %v2275
      %2981 = vmatmul.mubr.bf16.gmra.mrb[0].mxu0 %v2274
      %v2982 = vpop.f32.mrb[0].mxu0
      %v2983 = vadd.f32 %v2695, %v2982
      %v2984 = vpop.f32.mrb[0].mxu0
      %v2985 = vpop.f32.mrb[0].mxu0
      %v2986 = vadd.f32 %v2698, %v2985
      %v2987 = vpop.f32.mrb[0].mxu0
      %2988 = vmatprep.mubr.bf16.mxu0 %v2279
      %2989 = vmatmul.mubr.bf16.gmra.mrb[0].mxu0 %v2278
      %v2990 = vpop.f32.mrb[0].mxu0
      %v2991 = vadd.f32 %v2703, %v2990
      %v2992 = vpop.f32.mrb[0].mxu0
      %v2993 = vpop.f32.mrb[0].mxu0
      %v2994 = vadd.f32 %v2706, %v2993
      %v2995 = vpop.f32.mrb[0].mxu0
      %2996 = vmatprep.mubr.bf16.mxu0 %v2283
      %2997 = vmatmul.mubr.bf16.gmra.mrb[0].mxu0 %v2282
      %v2998 = vpop.f32.mrb[0].mxu0
      %v2999 = vadd.f32 %v2711, %v2998
      %v3000 = vpop.f32.mrb[0].mxu0
      %v3001 = vpop.f32.mrb[0].mxu0
      %v3002 = vadd.f32 %v2714, %v3001
      %v3003 = vpop.f32.mrb[0].mxu0
      %3004 = vmatprep.mubr.bf16.mxu0 %v2287
      %3005 = vmatmul.mubr.bf16.gmra.mrb[0].mxu0 %v2286
      %v3006 = vpop.f32.mrb[0].mxu0
      %v3007 = vadd.f32 %v2719, %v3006
      %v3008 = vpop.f32.mrb[0].mxu0
      %v3009 = vpop.f32.mrb[0].mxu0
      %v3010 = vadd.f32 %v2722, %v3009
      %v3011 = vpop.f32.mrb[0].mxu0
      %3012 = vmatprep.mubr.bf16.mxu0 %v2291
      %3013 = vmatmul.mubr.bf16.gmra.mrb[0].mxu0 %v2290
      %v3014 = vpop.f32.mrb[0].mxu0
      %v3015 = vadd.f32 %v2727, %v3014
      %v3016 = vpop.f32.mrb[0].mxu0
      %v3017 = vpop.f32.mrb[0].mxu0
      %v3018 = vadd.f32 %v2730, %v3017
      %v3019 = vpop.f32.mrb[0].mxu0
      %3020 = vmatprep.mubr.bf16.mxu0 %v2295
      %3021 = vmatmul.mubr.bf16.gmra.mrb[0].mxu0 %v2294
      %v3022 = vpop.f32.mrb[0].mxu0
      %v3023 = vadd.f32 %v2735, %v3022
      %v3024 = vpop.f32.mrb[0].mxu0
      %v3025 = vpop.f32.mrb[0].mxu0
      %v3026 = vadd.f32 %v2738, %v3025
      %v3027 = vpop.f32.mrb[0].mxu0
      %3028 = vmatprep.mubr.bf16.mxu0 %v2299
      %3029 = vmatmul.mubr.bf16.gmra.mrb[0].mxu0 %v2298
      %v3030 = vpop.f32.mrb[0].mxu0
      %v3031 = vadd.f32 %v2743, %v3030
      %v3032 = vpop.f32.mrb[0].mxu0
      %v3033 = vpop.f32.mrb[0].mxu0
      %v3034 = vadd.f32 %v2746, %v3033
      %v3035 = vpop.f32.mrb[0].mxu0
      %3036 = vmatprep.mubr.bf16.mxu0 %v2303
      %3037 = vmatmul.mubr.bf16.gmra.mrb[0].mxu0 %v2302
      %v3038 = vpop.f32.mrb[0].mxu0
      %v3039 = vadd.f32 %v2751, %v3038
      %v3040 = vpop.f32.mrb[0].mxu0
      %v3041 = vpop.f32.mrb[0].mxu0
      %v3042 = vadd.f32 %v2754, %v3041
      %v3043 = vpop.f32.mrb[0].mxu0
      %3044 = vmatprep.mubr.bf16.mxu0 %v2307
      %3045 = vmatmul.mubr.bf16.gmra.mrb[0].mxu0 %v2306
      %v3046 = vpop.f32.mrb[0].mxu0
      %v3047 = vadd.f32 %v2759, %v3046
      %v3048 = vpop.f32.mrb[0].mxu0
      %v3049 = vpop.f32.mrb[0].mxu0
      %v3050 = vadd.f32 %v2762, %v3049
      %v3051 = vpop.f32.mrb[0].mxu0
      %3052 = vmatprep.mubr.bf16.mxu0 %v2311
      %3053 = vmatmul.mubr.bf16.gmra.mrb[0].mxu0 %v2310
      %v3054 = vpop.f32.mrb[0].mxu0
      %v3055 = vadd.f32 %v2767, %v3054
      %v3056 = vpop.f32.mrb[0].mxu0
      %v3057 = vpop.f32.mrb[0].mxu0
      %v3058 = vadd.f32 %v2770, %v3057
      %v3059 = vpop.f32.mrb[0].mxu0
      %3060 = vmatprep.mubr.bf16.mxu0 %v2315
      %3061 = vmatmul.mubr.bf16.gmra.mrb[0].mxu0 %v2314
      %v3062 = vpop.f32.mrb[0].mxu0
      %v3063 = vadd.f32 %v2775, %v3062
      %v3064 = vpop.f32.mrb[0].mxu0
      %v3065 = vpop.f32.mrb[0].mxu0
      %v3066 = vadd.f32 %v2778, %v3065
      %v3067 = vpop.f32.mrb[0].mxu0
      %3068 = vmatprep.mubr.bf16.mxu0 %v2319
      %3069 = vmatmul.mubr.bf16.gmra.mrb[0].mxu0 %v2318
      %v3070 = vpop.f32.mrb[0].mxu0
      %v3071 = vadd.f32 %v2783, %v3070
      %v3072 = vpop.f32.mrb[0].mxu0
      %v3073 = vpop.f32.mrb[0].mxu0
      %v3074 = vadd.f32 %v2786, %v3073
      %v3075 = vpop.f32.mrb[0].mxu0
      %3076 = vmatprep.mubr.bf16.mxu0 %v2323
      %3077 = vmatmul.mubr.bf16.gmra.mrb[0].mxu0 %v2322
      %v3078 = vpop.f32.mrb[0].mxu0
      %v3079 = vadd.f32 %v2791, %v3078
      %v3080 = vpop.f32.mrb[0].mxu0
      %v3081 = vpop.f32.mrb[0].mxu0
      %v3082 = vadd.f32 %v2794, %v3081
      %v3083 = vpop.f32.mrb[0].mxu0
      %3084 = vmatprep.mubr.bf16.mxu0 %v2327
      %3085 = vmatmul.mubr.bf16.gmra.mrb[0].mxu0 %v2326
      %v3086 = vpop.f32.mrb[0].mxu0
      %v3087 = vadd.f32 %v2799, %v3086
      %v3088 = vpop.f32.mrb[0].mxu0
      %v3089 = vpop.f32.mrb[0].mxu0
      %v3090 = vadd.f32 %v2802, %v3089
      %v3091 = vpop.f32.mrb[0].mxu0
      %3092 = vmatprep.mubr.bf16.mxu0 %v2331
      %3093 = vmatmul.mubr.bf16.gmra.mrb[0].mxu0 %v2330
      %v3094 = vpop.f32.mrb[0].mxu0
      %v3095 = vadd.f32 %v2807, %v3094
      %v3096 = vpop.f32.mrb[0].mxu0
      %v3097 = vpop.f32.mrb[0].mxu0
      %v3098 = vadd.f32 %v2810, %v3097
      %v3099 = vpop.f32.mrb[0].mxu0
      %3100 = vmatprep.mubr.bf16.mxu0 %v2335
      %3101 = vmatmul.mubr.bf16.gmra.mrb[0].mxu0 %v2334
      %v3102 = vpop.f32.mrb[0].mxu0
      %v3103 = vadd.f32 %v2815, %v3102
      %v3104 = vpop.f32.mrb[0].mxu0
      %v3105 = vpop.f32.mrb[0].mxu0
      %v3106 = vadd.f32 %v2818, %v3105
      %v3107 = vpop.f32.mrb[0].mxu0
      %3108 = vmatprep.mubr.bf16.mxu0 %v2339
      %3109 = vmatmul.mubr.bf16.gmra.mrb[0].mxu0 %v2338
      %v3110 = vpop.f32.mrb[0].mxu0
      %v3111 = vadd.f32 %v2823, %v3110
      %v3112 = vpop.f32.mrb[0].mxu0
      %v3113 = vpop.f32.mrb[0].mxu0
      %v3114 = vadd.f32 %v2826, %v3113
      %v3115 = vpop.f32.mrb[0].mxu0
      %3116 = vmatprep.mubr.bf16.mxu0 %v2343
      %3117 = vmatmul.mubr.bf16.gmra.mrb[0].mxu0 %v2342
      %v3118 = vpop.f32.mrb[0].mxu0
      %v3119 = vadd.f32 %v2831, %v3118
      %v3120 = vpop.f32.mrb[0].mxu0
      %v3121 = vpop.f32.mrb[0].mxu0
      %v3122 = vadd.f32 %v2834, %v3121
      %v3123 = vpop.f32.mrb[0].mxu0
      %3124 = vmatprep.mubr.bf16.mxu0 %v2347
      %3125 = vmatmul.mubr.bf16.gmra.mrb[0].mxu0 %v2346
      %v3126 = vpop.f32.mrb[0].mxu0
      %v3127 = vadd.f32 %v2839, %v3126
      %v3128 = vpop.f32.mrb[0].mxu0
      %v3129 = vpop.f32.mrb[0].mxu0
      %v3130 = vadd.f32 %v2842, %v3129
      %v3131 = vpop.f32.mrb[0].mxu0
      %3132 = vmatprep.mubr.bf16.mxu0 %v2351
      %3133 = vmatmul.mubr.bf16.gmra.mrb[0].mxu0 %v2350
      %v3134 = vpop.f32.mrb[0].mxu0
      %v3135 = vadd.f32 %v2847, %v3134
      %v3136 = vpop.f32.mrb[0].mxu0
      %v3137 = vpop.f32.mrb[0].mxu0
      %v3138 = vadd.f32 %v2850, %v3137
      %v3139 = vpop.f32.mrb[0].mxu0
      %3140 = vmatprep.mubr.bf16.mxu0 %v2355
      %3141 = vmatmul.mubr.bf16.gmra.mrb[0].mxu0 %v2354
      %v3142 = vpop.f32.mrb[0].mxu0
      %v3143 = vadd.f32 %v2855, %v3142
      %v3144 = vpop.f32.mrb[0].mxu0
      %v3145 = vpop.f32.mrb[0].mxu0
      %v3146 = vadd.f32 %v2858, %v3145
      %v3147 = vpop.f32.mrb[0].mxu0
      %3148 = vmatprep.mubr.bf16.mxu0 %v2359
      %3149 = vmatmul.mubr.bf16.gmra.mrb[0].mxu0 %v2358
      %v3150 = vpop.f32.mrb[0].mxu0
      %v3151 = vadd.f32 %v2863, %v3150
      %v3152 = vpop.f32.mrb[0].mxu0
      %v3153 = vpop.f32.mrb[0].mxu0
      %v3154 = vadd.f32 %v2866, %v3153
      %v3155 = vpop.f32.mrb[0].mxu0
      %3156 = vmatprep.mubr.bf16.mxu0 %v2363
      %3157 = vmatmul.mubr.bf16.gmra.mrb[0].mxu0 %v2362
      %v3158 = vpop.f32.mrb[0].mxu0
      %v3159 = vadd.f32 %v2871, %v3158
      %v3160 = vpop.f32.mrb[0].mxu0
      %v3161 = vpop.f32.mrb[0].mxu0
      %v3162 = vadd.f32 %v2874, %v3161
      %v3163 = vpop.f32.mrb[0].mxu0
      %3164 = vmatprep.mubr.bf16.mxu0 %v2367
      %3165 = vmatmul.mubr.bf16.gmra.mrb[0].mxu0 %v2366
      %v3166 = vpop.f32.mrb[0].mxu0
      %v3167 = vadd.f32 %v2879, %v3166
      %v3168 = vpop.f32.mrb[0].mxu0
      %v3169 = vpop.f32.mrb[0].mxu0
      %v3170 = vadd.f32 %v2882, %v3169
      %v3171 = vpop.f32.mrb[0].mxu0
      %3172 = vmatprep.mubr.bf16.mxu0 %v2371
      %3173 = vmatmul.mubr.bf16.gmra.mrb[0].mxu0 %v2370
      %v3174 = vpop.f32.mrb[0].mxu0
      %v3175 = vadd.f32 %v2887, %v3174
      %v3176 = vpop.f32.mrb[0].mxu0
      %v3177 = vpop.f32.mrb[0].mxu0
      %v3178 = vadd.f32 %v2890, %v3177
      %v3179 = vpop.f32.mrb[0].mxu0
      %3180 = vmatprep.mubr.bf16.mxu0 %v2375
      %3181 = vmatmul.mubr.bf16.gmra.mrb[0].mxu0 %v2374
      %v3182 = vpop.f32.mrb[0].mxu0
      %v3183 = vadd.f32 %v2895, %v3182
      %v3184 = vpop.f32.mrb[0].mxu0
      %v3185 = vpop.f32.mrb[0].mxu0
      %v3186 = vadd.f32 %v2898, %v3185
      %v3187 = vpop.f32.mrb[0].mxu0
      %3188 = vmatprep.mubr.bf16.mxu0 %v2379
      %3189 = vmatmul.mubr.bf16.gmra.mrb[0].mxu0 %v2378
      %v3190 = vpop.f32.mrb[0].mxu0
      %v3191 = vadd.f32 %v2903, %v3190
      %v3192 = vpop.f32.mrb[0].mxu0
      %v3193 = vpop.f32.mrb[0].mxu0
      %v3194 = vadd.f32 %v2906, %v3193
      %v3195 = vpop.f32.mrb[0].mxu0
      %3196 = vmatprep.mubr.bf16.mxu0 %v2383
      %3197 = vmatmul.mubr.bf16.gmra.mrb[0].mxu0 %v2382
      %v3198 = vpop.f32.mrb[0].mxu0
      %v3199 = vadd.f32 %v2911, %v3198
      %v3200 = vpop.f32.mrb[0].mxu0
      %v3201 = vpop.f32.mrb[0].mxu0
      %v3202 = vadd.f32 %v2914, %v3201
      %v3203 = vpop.f32.mrb[0].mxu0
      %3204 = vmatprep.mubr.bf16.mxu0 %v2387
      %3205 = vmatmul.mubr.bf16.gmra.mrb[0].mxu0 %v2386
      %v3206 = vpop.f32.mrb[0].mxu0
      %v3207 = vadd.f32 %v2919, %v3206
      %v3208 = vpop.f32.mrb[0].mxu0
      %v3209 = vpop.f32.mrb[0].mxu0
      %v3210 = vadd.f32 %v2922, %v3209
      %v3211 = vpop.f32.mrb[0].mxu0
      %3212 = vmatprep.mubr.bf16.mxu0 %v2391
      %3213 = vmatmul.mubr.bf16.gmra.mrb[0].mxu0 %v2390
      %v3214 = vpop.f32.mrb[0].mxu0
      %v3215 = vadd.f32 %v2927, %v3214
      %v3216 = vpop.f32.mrb[0].mxu0
      %v3217 = vpop.f32.mrb[0].mxu0
      %v3218 = vadd.f32 %v2930, %v3217
      %v3219 = vpop.f32.mrb[0].mxu0
      %3220 = vmatprep.mubr.bf16.mxu0 %v2395
      %3221 = vmatmul.mubr.bf16.gmra.mrb[0].mxu0 %v2394
      %v3222 = vpop.f32.mrb[0].mxu0
      %v3223 = vadd.f32 %v2935, %v3222
      %v3224 = vpop.f32.mrb[0].mxu0
      %v3225 = vpop.f32.mrb[0].mxu0
      %v3226 = vpop.f32.mrb[0].mxu0
      %3227 = vdwg.mxu0
      %v3229 = vsel %vm436, %v305, 0
      %v3232 = vsel %vm436, %v306, 0
      %v3235 = vsel %vm436, %v307, 0
      %v3238 = vsel %vm436, %v308, 0
      %v3241 = vsel %vm436, %v309, 0
      %v3244 = vsel %vm436, %v310, 0
      %v3247 = vsel %vm436, %v311, 0
      %v3250 = vsel %vm436, %v312, 0
      %v3253 = vsel %vm436, %v313, 0
      %v3256 = vsel %vm436, %v314, 0
      %v3259 = vsel %vm436, %v315, 0
      %v3262 = vsel %vm436, %v316, 0
      %v3265 = vsel %vm436, %v317, 0
      %v3268 = vsel %vm436, %v318, 0
      %v3271 = vsel %vm436, %v319, 0
      %v3274 = vsel %vm436, %v320, 0
      %v3277 = vsel %vm436, %v321, 0
      %v3280 = vsel %vm436, %v322, 0
      %v3283 = vsel %vm436, %v323, 0
      %v3286 = vsel %vm436, %v324, 0
      %v3289 = vsel %vm436, %v325, 0
      %v3292 = vsel %vm436, %v326, 0
      %v3295 = vsel %vm436, %v327, 0
      %v3298 = vsel %vm436, %v328, 0
      %v3301 = vsel %vm436, %v329, 0
      %v3304 = vsel %vm436, %v330, 0
      %v3307 = vsel %vm436, %v331, 0
      %v3310 = vsel %vm436, %v332, 0
      %v3313 = vsel %vm436, %v333, 0
      %v3316 = vsel %vm436, %v334, 0
      %v3319 = vsel %vm436, %v335, 0
      %v3322 = vsel %vm436, %v336, 0
      %v3325 = vsel %vm436, %v337, 0
      %v3328 = vsel %vm436, %v338, 0
      %v3331 = vsel %vm436, %v339, 0
      %v3334 = vsel %vm436, %v340, 0
      %v3337 = vsel %vm436, %v341, 0
      %v3340 = vsel %vm436, %v342, 0
      %v3343 = vsel %vm436, %v343, 0
      %v3346 = vsel %vm436, %v344, 0
      %v3349 = vsel %vm436, %v345, 0
      %v3352 = vsel %vm436, %v346, 0
      %v3355 = vsel %vm436, %v347, 0
      %v3358 = vsel %vm436, %v348, 0
      %v3361 = vsel %vm436, %v349, 0
      %v3364 = vsel %vm436, %v350, 0
      %v3367 = vsel %vm436, %v351, 0
      %v3370 = vsel %vm436, %v352, 0
      %v3373 = vsel %vm436, %v353, 0
      %v3376 = vsel %vm436, %v354, 0
      %v3379 = vsel %vm436, %v355, 0
      %v3382 = vsel %vm436, %v356, 0
      %v3385 = vsel %vm436, %v357, 0
      %v3388 = vsel %vm436, %v358, 0
      %v3391 = vsel %vm436, %v359, 0
      %v3394 = vsel %vm436, %v360, 0
      %v3397 = vsel %vm436, %v361, 0
      %v3400 = vsel %vm436, %v362, 0
      %v3403 = vsel %vm436, %v363, 0
      %v3406 = vsel %vm436, %v364, 0
      %v3409 = vsel %vm436, %v365, 0
      %v3412 = vsel %vm436, %v366, 0
      %v3415 = vsel %vm436, %v367, 0
      %3417 = vmatprep.subr.mxu0 0.0
      %3418 = vmatpush1.msra.mxu0 %v368
      %3419 = vmatprep.subr.mxu0 0.0
      %3420 = vmatpush1.msra.mxu0 0.0
      %3421 = vmatprep.subr.mxu0 0.0
      %3422 = vmatpush1.msra.mxu0 0.0
      %3423 = vmatprep.subr.mxu0 0.0
      %3424 = vmatpush1.msra.mxu0 0.0
      %3425 = vmatprep.subr.mxu0 0.0
      %3426 = vmatpush1.msra.mxu0 0.0
      %3427 = vmatprep.subr.mxu0 0.0
      %3428 = vmatpush1.msra.mxu0 0.0
      %3429 = vmatprep.subr.mxu0 0.0
      %3430 = vmatpush1.msra.mxu0 0.0
      %3431 = vmatprep.subr.mxu0 0.0
      %3432 = vmatpush1.msra.mxu0 0.0
      %3433 = vmatprep.subr.mxu0 0.0
      %3434 = vmatpush1.msra.mxu0 0.0
      %3435 = vmatprep.subr.mxu0 0.0
      %3436 = vmatpush1.msra.mxu0 0.0
      %3437 = vmatprep.subr.mxu0 0.0
      %3438 = vmatpush1.msra.mxu0 0.0
      %3439 = vmatprep.subr.mxu0 0.0
      %3440 = vmatpush1.msra.mxu0 0.0
      %3441 = vmatprep.subr.mxu0 0.0
      %3442 = vmatpush1.msra.mxu0 0.0
      %3443 = vmatprep.subr.mxu0 0.0
      %3444 = vmatpush1.msra.mxu0 0.0
      %3445 = vmatprep.subr.mxu0 0.0
      %3446 = vmatpush1.msra.mxu0 0.0
      %3447 = vmatprep.subr.mxu0 0.0
      %3448 = vmatpush1.msra.mxu0 0.0
      %3449 = vmatprep.subr.mxu0 0.0
      %3450 = vmatpush1.msra.mxu0 0.0
      %3451 = vmatprep.subr.mxu0 0.0
      %3452 = vmatpush1.msra.mxu0 0.0
      %3453 = vmatprep.subr.mxu0 0.0
      %3454 = vmatpush1.msra.mxu0 0.0
      %3455 = vmatprep.subr.mxu0 0.0
      %3456 = vmatpush1.msra.mxu0 0.0
      %3457 = vmatprep.subr.mxu0 0.0
      %3458 = vmatpush1.msra.mxu0 0.0
      %3459 = vmatprep.subr.mxu0 0.0
      %3460 = vmatpush1.msra.mxu0 0.0
      %3461 = vmatprep.subr.mxu0 0.0
      %3462 = vmatpush1.msra.mxu0 0.0
      %3463 = vmatprep.subr.mxu0 0.0
      %3464 = vmatpush1.msra.mxu0 0.0
      %3465 = vmatprep.subr.mxu0 0.0
      %3466 = vmatpush1.msra.mxu0 0.0
      %3467 = vmatprep.subr.mxu0 0.0
      %3468 = vmatpush1.msra.mxu0 0.0
      %3469 = vmatprep.subr.mxu0 0.0
      %3470 = vmatpush1.msra.mxu0 0.0
      %3471 = vmatprep.subr.mxu0 0.0
      %3472 = vmatpush1.msra.mxu0 0.0
      %3473 = vmatprep.subr.mxu0 0.0
      %3474 = vmatpush1.msra.mxu0 0.0
      %3475 = vmatprep.subr.mxu0 0.0
      %3476 = vmatpush1.msra.mxu0 0.0
      %3477 = vmatprep.subr.mxu0 0.0
      %3478 = vmatpush1.msra.mxu0 0.0
      %3479 = vmatprep.subr.mxu0 0.0
      %3480 = vmatpush1.msra.mxu0 0.0
      %3481 = vmatprep.mubr.f32.mxu0 0.0
      %3482 = vmatmul.mubr.f32.gmra.mrb[0].mxu0 %v3229
      %v3483 = vpop.f32.mrb[0].mxu0
      %v3484 = vadd.f32 %v2975, %v3483
      %v3485 = vpop.f32.mrb[0].mxu0
      %3486 = vmatprep.mubr.f32.mxu0 0.0
      %3487 = vmatmul.mubr.f32.gmra.mrb[0].mxu0 %v3232
      %v3488 = vpop.f32.mrb[0].mxu0
      %v3489 = vadd.f32 %v2978, %v3488
      %v3490 = vpop.f32.mrb[0].mxu0
      %3491 = vmatprep.mubr.f32.mxu0 0.0
      %3492 = vmatmul.mubr.f32.gmra.mrb[0].mxu0 %v3235
      %v3493 = vpop.f32.mrb[0].mxu0
      %v3494 = vadd.f32 %v2983, %v3493
      %v3495 = vpop.f32.mrb[0].mxu0
      %3496 = vmatprep.mubr.f32.mxu0 0.0
      %3497 = vmatmul.mubr.f32.gmra.mrb[0].mxu0 %v3238
      %v3498 = vpop.f32.mrb[0].mxu0
      %v3499 = vadd.f32 %v2986, %v3498
      %v3500 = vpop.f32.mrb[0].mxu0
      %3501 = vmatprep.mubr.f32.mxu0 0.0
      %3502 = vmatmul.mubr.f32.gmra.mrb[0].mxu0 %v3241
      %v3503 = vpop.f32.mrb[0].mxu0
      %v3504 = vadd.f32 %v2991, %v3503
      %v3505 = vpop.f32.mrb[0].mxu0
      %3506 = vmatprep.mubr.f32.mxu0 0.0
      %3507 = vmatmul.mubr.f32.gmra.mrb[0].mxu0 %v3244
      %v3508 = vpop.f32.mrb[0].mxu0
      %v3509 = vadd.f32 %v2994, %v3508
      %v3510 = vpop.f32.mrb[0].mxu0
      %3511 = vmatprep.mubr.f32.mxu0 0.0
      %3512 = vmatmul.mubr.f32.gmra.mrb[0].mxu0 %v3247
      %v3513 = vpop.f32.mrb[0].mxu0
      %v3514 = vadd.f32 %v2999, %v3513
      %v3515 = vpop.f32.mrb[0].mxu0
      %3516 = vmatprep.mubr.f32.mxu0 0.0
      %3517 = vmatmul.mubr.f32.gmra.mrb[0].mxu0 %v3250
      %v3518 = vpop.f32.mrb[0].mxu0
      %v3519 = vadd.f32 %v3002, %v3518
      %v3520 = vpop.f32.mrb[0].mxu0
      %3521 = vmatprep.mubr.f32.mxu0 0.0
      %3522 = vmatmul.mubr.f32.gmra.mrb[0].mxu0 %v3253
      %v3523 = vpop.f32.mrb[0].mxu0
      %v3524 = vadd.f32 %v3007, %v3523
      %v3525 = vpop.f32.mrb[0].mxu0
      %3526 = vmatprep.mubr.f32.mxu0 0.0
      %3527 = vmatmul.mubr.f32.gmra.mrb[0].mxu0 %v3256
      %v3528 = vpop.f32.mrb[0].mxu0
      %v3529 = vadd.f32 %v3010, %v3528
      %v3530 = vpop.f32.mrb[0].mxu0
      %3531 = vmatprep.mubr.f32.mxu0 0.0
      %3532 = vmatmul.mubr.f32.gmra.mrb[0].mxu0 %v3259
      %v3533 = vpop.f32.mrb[0].mxu0
      %v3534 = vadd.f32 %v3015, %v3533
      %v3535 = vpop.f32.mrb[0].mxu0
      %3536 = vmatprep.mubr.f32.mxu0 0.0
      %3537 = vmatmul.mubr.f32.gmra.mrb[0].mxu0 %v3262
      %v3538 = vpop.f32.mrb[0].mxu0
      %v3539 = vadd.f32 %v3018, %v3538
      %v3540 = vpop.f32.mrb[0].mxu0
      %3541 = vmatprep.mubr.f32.mxu0 0.0
      %3542 = vmatmul.mubr.f32.gmra.mrb[0].mxu0 %v3265
      %v3543 = vpop.f32.mrb[0].mxu0
      %v3544 = vadd.f32 %v3023, %v3543
      %v3545 = vpop.f32.mrb[0].mxu0
      %3546 = vmatprep.mubr.f32.mxu0 0.0
      %3547 = vmatmul.mubr.f32.gmra.mrb[0].mxu0 %v3268
      %v3548 = vpop.f32.mrb[0].mxu0
      %v3549 = vadd.f32 %v3026, %v3548
      %v3550 = vpop.f32.mrb[0].mxu0
      %3551 = vmatprep.mubr.f32.mxu0 0.0
      %3552 = vmatmul.mubr.f32.gmra.mrb[0].mxu0 %v3271
      %v3553 = vpop.f32.mrb[0].mxu0
      %v3554 = vadd.f32 %v3031, %v3553
      %v3555 = vpop.f32.mrb[0].mxu0
      %3556 = vmatprep.mubr.f32.mxu0 0.0
      %3557 = vmatmul.mubr.f32.gmra.mrb[0].mxu0 %v3274
      %v3558 = vpop.f32.mrb[0].mxu0
      %v3559 = vadd.f32 %v3034, %v3558
      %v3560 = vpop.f32.mrb[0].mxu0
      %3561 = vmatprep.mubr.f32.mxu0 0.0
      %3562 = vmatmul.mubr.f32.gmra.mrb[0].mxu0 %v3277
      %v3563 = vpop.f32.mrb[0].mxu0
      %v3564 = vadd.f32 %v3039, %v3563
      %v3565 = vpop.f32.mrb[0].mxu0
      %3566 = vmatprep.mubr.f32.mxu0 0.0
      %3567 = vmatmul.mubr.f32.gmra.mrb[0].mxu0 %v3280
      %v3568 = vpop.f32.mrb[0].mxu0
      %v3569 = vadd.f32 %v3042, %v3568
      %v3570 = vpop.f32.mrb[0].mxu0
      %3571 = vmatprep.mubr.f32.mxu0 0.0
      %3572 = vmatmul.mubr.f32.gmra.mrb[0].mxu0 %v3283
      %v3573 = vpop.f32.mrb[0].mxu0
      %v3574 = vadd.f32 %v3047, %v3573
      %v3575 = vpop.f32.mrb[0].mxu0
      %3576 = vmatprep.mubr.f32.mxu0 0.0
      %3577 = vmatmul.mubr.f32.gmra.mrb[0].mxu0 %v3286
      %v3578 = vpop.f32.mrb[0].mxu0
      %v3579 = vadd.f32 %v3050, %v3578
      %v3580 = vpop.f32.mrb[0].mxu0
      %3581 = vmatprep.mubr.f32.mxu0 0.0
      %3582 = vmatmul.mubr.f32.gmra.mrb[0].mxu0 %v3289
      %v3583 = vpop.f32.mrb[0].mxu0
      %v3584 = vadd.f32 %v3055, %v3583
      %v3585 = vpop.f32.mrb[0].mxu0
      %3586 = vmatprep.mubr.f32.mxu0 0.0
      %3587 = vmatmul.mubr.f32.gmra.mrb[0].mxu0 %v3292
      %v3588 = vpop.f32.mrb[0].mxu0
      %v3589 = vadd.f32 %v3058, %v3588
      %v3590 = vpop.f32.mrb[0].mxu0
      %3591 = vmatprep.mubr.f32.mxu0 0.0
      %3592 = vmatmul.mubr.f32.gmra.mrb[0].mxu0 %v3295
      %v3593 = vpop.f32.mrb[0].mxu0
      %v3594 = vadd.f32 %v3063, %v3593
      %v3595 = vpop.f32.mrb[0].mxu0
      %3596 = vmatprep.mubr.f32.mxu0 0.0
      %3597 = vmatmul.mubr.f32.gmra.mrb[0].mxu0 %v3298
      %v3598 = vpop.f32.mrb[0].mxu0
      %v3599 = vadd.f32 %v3066, %v3598
      %v3600 = vpop.f32.mrb[0].mxu0
      %3601 = vmatprep.mubr.f32.mxu0 0.0
      %3602 = vmatmul.mubr.f32.gmra.mrb[0].mxu0 %v3301
      %v3603 = vpop.f32.mrb[0].mxu0
      %v3604 = vadd.f32 %v3071, %v3603
      %v3605 = vpop.f32.mrb[0].mxu0
      %3606 = vmatprep.mubr.f32.mxu0 0.0
      %3607 = vmatmul.mubr.f32.gmra.mrb[0].mxu0 %v3304
      %v3608 = vpop.f32.mrb[0].mxu0
      %v3609 = vadd.f32 %v3074, %v3608
      %v3610 = vpop.f32.mrb[0].mxu0
      %3611 = vmatprep.mubr.f32.mxu0 0.0
      %3612 = vmatmul.mubr.f32.gmra.mrb[0].mxu0 %v3307
      %v3613 = vpop.f32.mrb[0].mxu0
      %v3614 = vadd.f32 %v3079, %v3613
      %v3615 = vpop.f32.mrb[0].mxu0
      %3616 = vmatprep.mubr.f32.mxu0 0.0
      %3617 = vmatmul.mubr.f32.gmra.mrb[0].mxu0 %v3310
      %v3618 = vpop.f32.mrb[0].mxu0
      %v3619 = vadd.f32 %v3082, %v3618
      %v3620 = vpop.f32.mrb[0].mxu0
      %3621 = vmatprep.mubr.f32.mxu0 0.0
      %3622 = vmatmul.mubr.f32.gmra.mrb[0].mxu0 %v3313
      %v3623 = vpop.f32.mrb[0].mxu0
      %v3624 = vadd.f32 %v3087, %v3623
      %v3625 = vpop.f32.mrb[0].mxu0
      %3626 = vmatprep.mubr.f32.mxu0 0.0
      %3627 = vmatmul.mubr.f32.gmra.mrb[0].mxu0 %v3316
      %v3628 = vpop.f32.mrb[0].mxu0
      %v3629 = vadd.f32 %v3090, %v3628
      %v3630 = vpop.f32.mrb[0].mxu0
      %3631 = vmatprep.mubr.f32.mxu0 0.0
      %3632 = vmatmul.mubr.f32.gmra.mrb[0].mxu0 %v3319
      %v3633 = vpop.f32.mrb[0].mxu0
      %v3634 = vadd.f32 %v3095, %v3633
      %v3635 = vpop.f32.mrb[0].mxu0
      %3636 = vmatprep.mubr.f32.mxu0 0.0
      %3637 = vmatmul.mubr.f32.gmra.mrb[0].mxu0 %v3322
      %v3638 = vpop.f32.mrb[0].mxu0
      %v3639 = vadd.f32 %v3098, %v3638
      %v3640 = vpop.f32.mrb[0].mxu0
      %3641 = vmatprep.mubr.f32.mxu0 0.0
      %3642 = vmatmul.mubr.f32.gmra.mrb[0].mxu0 %v3325
      %v3643 = vpop.f32.mrb[0].mxu0
      %v3644 = vadd.f32 %v3103, %v3643
      %v3645 = vpop.f32.mrb[0].mxu0
      %3646 = vmatprep.mubr.f32.mxu0 0.0
      %3647 = vmatmul.mubr.f32.gmra.mrb[0].mxu0 %v3328
      %v3648 = vpop.f32.mrb[0].mxu0
      %v3649 = vadd.f32 %v3106, %v3648
      %v3650 = vpop.f32.mrb[0].mxu0
      %3651 = vmatprep.mubr.f32.mxu0 0.0
      %3652 = vmatmul.mubr.f32.gmra.mrb[0].mxu0 %v3331
      %v3653 = vpop.f32.mrb[0].mxu0
      %v3654 = vadd.f32 %v3111, %v3653
      %v3655 = vpop.f32.mrb[0].mxu0
      %3656 = vmatprep.mubr.f32.mxu0 0.0
      %3657 = vmatmul.mubr.f32.gmra.mrb[0].mxu0 %v3334
      %v3658 = vpop.f32.mrb[0].mxu0
      %v3659 = vadd.f32 %v3114, %v3658
      %v3660 = vpop.f32.mrb[0].mxu0
      %3661 = vmatprep.mubr.f32.mxu0 0.0
      %3662 = vmatmul.mubr.f32.gmra.mrb[0].mxu0 %v3337
      %v3663 = vpop.f32.mrb[0].mxu0
      %v3664 = vadd.f32 %v3119, %v3663
      %v3665 = vpop.f32.mrb[0].mxu0
      %3666 = vmatprep.mubr.f32.mxu0 0.0
      %3667 = vmatmul.mubr.f32.gmra.mrb[0].mxu0 %v3340
      %v3668 = vpop.f32.mrb[0].mxu0
      %v3669 = vadd.f32 %v3122, %v3668
      %v3670 = vpop.f32.mrb[0].mxu0
      %3671 = vmatprep.mubr.f32.mxu0 0.0
      %3672 = vmatmul.mubr.f32.gmra.mrb[0].mxu0 %v3343
      %v3673 = vpop.f32.mrb[0].mxu0
      %v3674 = vadd.f32 %v3127, %v3673
      %v3675 = vpop.f32.mrb[0].mxu0
      %3676 = vmatprep.mubr.f32.mxu0 0.0
      %3677 = vmatmul.mubr.f32.gmra.mrb[0].mxu0 %v3346
      %v3678 = vpop.f32.mrb[0].mxu0
      %v3679 = vadd.f32 %v3130, %v3678
      %v3680 = vpop.f32.mrb[0].mxu0
      %3681 = vmatprep.mubr.f32.mxu0 0.0
      %3682 = vmatmul.mubr.f32.gmra.mrb[0].mxu0 %v3349
      %v3683 = vpop.f32.mrb[0].mxu0
      %v3684 = vadd.f32 %v3135, %v3683
      %v3685 = vpop.f32.mrb[0].mxu0
      %3686 = vmatprep.mubr.f32.mxu0 0.0
      %3687 = vmatmul.mubr.f32.gmra.mrb[0].mxu0 %v3352
      %v3688 = vpop.f32.mrb[0].mxu0
      %v3689 = vadd.f32 %v3138, %v3688
      %v3690 = vpop.f32.mrb[0].mxu0
      %3691 = vmatprep.mubr.f32.mxu0 0.0
      %3692 = vmatmul.mubr.f32.gmra.mrb[0].mxu0 %v3355
      %v3693 = vpop.f32.mrb[0].mxu0
      %v3694 = vadd.f32 %v3143, %v3693
      %v3695 = vpop.f32.mrb[0].mxu0
      %3696 = vmatprep.mubr.f32.mxu0 0.0
      %3697 = vmatmul.mubr.f32.gmra.mrb[0].mxu0 %v3358
      %v3698 = vpop.f32.mrb[0].mxu0
      %v3699 = vadd.f32 %v3146, %v3698
      %v3700 = vpop.f32.mrb[0].mxu0
      %3701 = vmatprep.mubr.f32.mxu0 0.0
      %3702 = vmatmul.mubr.f32.gmra.mrb[0].mxu0 %v3361
      %v3703 = vpop.f32.mrb[0].mxu0
      %v3704 = vadd.f32 %v3151, %v3703
      %v3705 = vpop.f32.mrb[0].mxu0
      %3706 = vmatprep.mubr.f32.mxu0 0.0
      %3707 = vmatmul.mubr.f32.gmra.mrb[0].mxu0 %v3364
      %v3708 = vpop.f32.mrb[0].mxu0
      %v3709 = vadd.f32 %v3154, %v3708
      %v3710 = vpop.f32.mrb[0].mxu0
      %3711 = vmatprep.mubr.f32.mxu0 0.0
      %3712 = vmatmul.mubr.f32.gmra.mrb[0].mxu0 %v3367
      %v3713 = vpop.f32.mrb[0].mxu0
      %v3714 = vadd.f32 %v3159, %v3713
      %v3715 = vpop.f32.mrb[0].mxu0
      %3716 = vmatprep.mubr.f32.mxu0 0.0
      %3717 = vmatmul.mubr.f32.gmra.mrb[0].mxu0 %v3370
      %v3718 = vpop.f32.mrb[0].mxu0
      %v3719 = vadd.f32 %v3162, %v3718
      %v3720 = vpop.f32.mrb[0].mxu0
      %3721 = vmatprep.mubr.f32.mxu0 0.0
      %3722 = vmatmul.mubr.f32.gmra.mrb[0].mxu0 %v3373
      %v3723 = vpop.f32.mrb[0].mxu0
      %v3724 = vadd.f32 %v3167, %v3723
      %v3725 = vpop.f32.mrb[0].mxu0
      %3726 = vmatprep.mubr.f32.mxu0 0.0
      %3727 = vmatmul.mubr.f32.gmra.mrb[0].mxu0 %v3376
      %v3728 = vpop.f32.mrb[0].mxu0
      %v3729 = vadd.f32 %v3170, %v3728
      %v3730 = vpop.f32.mrb[0].mxu0
      %3731 = vmatprep.mubr.f32.mxu0 0.0
      %3732 = vmatmul.mubr.f32.gmra.mrb[0].mxu0 %v3379
      %v3733 = vpop.f32.mrb[0].mxu0
      %v3734 = vadd.f32 %v3175, %v3733
      %v3735 = vpop.f32.mrb[0].mxu0
      %3736 = vmatprep.mubr.f32.mxu0 0.0
      %3737 = vmatmul.mubr.f32.gmra.mrb[0].mxu0 %v3382
      %v3738 = vpop.f32.mrb[0].mxu0
      %v3739 = vadd.f32 %v3178, %v3738
      %v3740 = vpop.f32.mrb[0].mxu0
      %3741 = vmatprep.mubr.f32.mxu0 0.0
      %3742 = vmatmul.mubr.f32.gmra.mrb[0].mxu0 %v3385
      %v3743 = vpop.f32.mrb[0].mxu0
      %v3744 = vadd.f32 %v3183, %v3743
      %v3745 = vpop.f32.mrb[0].mxu0
      %3746 = vmatprep.mubr.f32.mxu0 0.0
      %3747 = vmatmul.mubr.f32.gmra.mrb[0].mxu0 %v3388
      %v3748 = vpop.f32.mrb[0].mxu0
      %v3749 = vadd.f32 %v3186, %v3748
      %v3750 = vpop.f32.mrb[0].mxu0
      %3751 = vmatprep.mubr.f32.mxu0 0.0
      %3752 = vmatmul.mubr.f32.gmra.mrb[0].mxu0 %v3391
      %v3753 = vpop.f32.mrb[0].mxu0
      %v3754 = vadd.f32 %v3191, %v3753
      %v3755 = vpop.f32.mrb[0].mxu0
      %3756 = vmatprep.mubr.f32.mxu0 0.0
      %3757 = vmatmul.mubr.f32.gmra.mrb[0].mxu0 %v3394
      %v3758 = vpop.f32.mrb[0].mxu0
      %v3759 = vadd.f32 %v3194, %v3758
      %v3760 = vpop.f32.mrb[0].mxu0
      %3761 = vmatprep.mubr.f32.mxu0 0.0
      %3762 = vmatmul.mubr.f32.gmra.mrb[0].mxu0 %v3397
      %v3763 = vpop.f32.mrb[0].mxu0
      %v3764 = vadd.f32 %v3199, %v3763
      %v3765 = vpop.f32.mrb[0].mxu0
      %3766 = vmatprep.mubr.f32.mxu0 0.0
      %3767 = vmatmul.mubr.f32.gmra.mrb[0].mxu0 %v3400
      %v3768 = vpop.f32.mrb[0].mxu0
      %v3769 = vadd.f32 %v3202, %v3768
      %v3770 = vpop.f32.mrb[0].mxu0
      %3771 = vmatprep.mubr.f32.mxu0 0.0
      %3772 = vmatmul.mubr.f32.gmra.mrb[0].mxu0 %v3403
      %v3773 = vpop.f32.mrb[0].mxu0
      %v3774 = vadd.f32 %v3207, %v3773
      %v3775 = vpop.f32.mrb[0].mxu0
      %3776 = vmatprep.mubr.f32.mxu0 0.0
      %3777 = vmatmul.mubr.f32.gmra.mrb[0].mxu0 %v3406
      %v3778 = vpop.f32.mrb[0].mxu0
      %v3779 = vadd.f32 %v3210, %v3778
      %v3780 = vpop.f32.mrb[0].mxu0
      %3781 = vmatprep.mubr.f32.mxu0 0.0
      %3782 = vmatmul.mubr.f32.gmra.mrb[0].mxu0 %v3409
      %v3783 = vpop.f32.mrb[0].mxu0
      %v3784 = vadd.f32 %v3215, %v3783
      %v3785 = vpop.f32.mrb[0].mxu0
      %3786 = vmatprep.mubr.f32.mxu0 0.0
      %3787 = vmatmul.mubr.f32.gmra.mrb[0].mxu0 %v3412
      %v3788 = vpop.f32.mrb[0].mxu0
      %v3789 = vadd.f32 %v3218, %v3788
      %v3790 = vpop.f32.mrb[0].mxu0
      %3791 = vmatprep.mubr.f32.mxu0 0.0
      %3792 = vmatmul.mubr.f32.gmra.mrb[0].mxu0 %v3415
      %v3793 = vpop.f32.mrb[0].mxu0
      %v3794 = vadd.f32 %v3223, %v3793
      %v3795 = vpop.f32.mrb[0].mxu0
      %3796 = vdwg.mxu0
      %v3797 = vld [vmem:[%s5] sm:$0xf]
      %v3798 = vld [vmem:[%s5 + $0x4] sm:$0xf]
      %v3799 = vld [vmem:[%s5 + $0x8] sm:$0xf]
      %v3800 = vld [vmem:[%s5 + $0xc] sm:$0xf]
      %v3801 = vld [vmem:[%s5 + $0x10] sm:$0xf]
      %v3802 = vld [vmem:[%s5 + $0x14] sm:$0xf]
      %v3803 = vld [vmem:[%s5 + $0x18] sm:$0xf]
      %v3804 = vld [vmem:[%s5 + $0x1c] sm:$0xf]
      %v3805 = vld [vmem:[%s5 + $0x20] sm:$0xf]
      %v3806 = vld [vmem:[%s5 + $0x24] sm:$0xf]
      %v3807 = vld [vmem:[%s5 + $0x28] sm:$0xf]
      %v3808 = vld [vmem:[%s5 + $0x2c] sm:$0xf]
      %v3809 = vld [vmem:[%s5 + $0x30] sm:$0xf]
      %v3810 = vld [vmem:[%s5 + $0x34] sm:$0xf]
      %v3811 = vld [vmem:[%s5 + $0x38] sm:$0xf]
      %v3812 = vld [vmem:[%s5 + $0x3c] sm:$0xf]
      %v3813 = vld [vmem:[%s5 + $0x40] sm:$0xf]
      %v3814 = vld [vmem:[%s5 + $0x44] sm:$0xf]
      %v3815 = vld [vmem:[%s5 + $0x48] sm:$0xf]
      %v3816 = vld [vmem:[%s5 + $0x4c] sm:$0xf]
      %v3817 = vld [vmem:[%s5 + $0x50] sm:$0xf]
      %v3818 = vld [vmem:[%s5 + $0x54] sm:$0xf]
      %v3819 = vld [vmem:[%s5 + $0x58] sm:$0xf]
      %v3820 = vld [vmem:[%s5 + $0x5c] sm:$0xf]
      %v3821 = vld [vmem:[%s5 + $0x60] sm:$0xf]
      %v3822 = vld [vmem:[%s5 + $0x64] sm:$0xf]
      %v3823 = vld [vmem:[%s5 + $0x68] sm:$0xf]
      %v3824 = vld [vmem:[%s5 + $0x6c] sm:$0xf]
      %v3825 = vld [vmem:[%s5 + $0x70] sm:$0xf]
      %v3826 = vld [vmem:[%s5 + $0x74] sm:$0xf]
      %v3827 = vld [vmem:[%s5 + $0x78] sm:$0xf]
      %v3828 = vld [vmem:[%s5 + $0x7c] sm:$0xf]
      %v3829 = vld [vmem:[%s5 + $0x80] sm:$0xf]
      %v3830 = vld [vmem:[%s5 + $0x84] sm:$0xf]
      %v3831 = vld [vmem:[%s5 + $0x88] sm:$0xf]
      %v3832 = vld [vmem:[%s5 + $0x8c] sm:$0xf]
      %v3833 = vld [vmem:[%s5 + $0x90] sm:$0xf]
      %v3834 = vld [vmem:[%s5 + $0x94] sm:$0xf]
      %v3835 = vld [vmem:[%s5 + $0x98] sm:$0xf]
      %v3836 = vld [vmem:[%s5 + $0x9c] sm:$0xf]
      %v3837 = vld [vmem:[%s5 + $0xa0] sm:$0xf]
      %v3838 = vld [vmem:[%s5 + $0xa4] sm:$0xf]
      %v3839 = vld [vmem:[%s5 + $0xa8] sm:$0xf]
      %v3840 = vld [vmem:[%s5 + $0xac] sm:$0xf]
      %v3841 = vld [vmem:[%s5 + $0xb0] sm:$0xf]
      %v3842 = vld [vmem:[%s5 + $0xb4] sm:$0xf]
      %v3843 = vld [vmem:[%s5 + $0xb8] sm:$0xf]
      %v3844 = vld [vmem:[%s5 + $0xbc] sm:$0xf]
      %v3845 = vld [vmem:[%s5 + $0xc0] sm:$0xf]
      %v3846 = vld [vmem:[%s5 + $0xc4] sm:$0xf]
      %v3847 = vld [vmem:[%s5 + $0xc8] sm:$0xf]
      %v3848 = vld [vmem:[%s5 + $0xcc] sm:$0xf]
      %v3849 = vld [vmem:[%s5 + $0xd0] sm:$0xf]
      %v3850 = vld [vmem:[%s5 + $0xd4] sm:$0xf]
      %v3851 = vld [vmem:[%s5 + $0xd8] sm:$0xf]
      %v3852 = vld [vmem:[%s5 + $0xdc] sm:$0xf]
      %v3853 = vld [vmem:[%s5 + $0xe0] sm:$0xf]
      %v3854 = vld [vmem:[%s5 + $0xe4] sm:$0xf]
      %v3855 = vld [vmem:[%s5 + $0xe8] sm:$0xf]
      %v3856 = vld [vmem:[%s5 + $0xec] sm:$0xf]
      %v3857 = vld [vmem:[%s5 + $0xf0] sm:$0xf]
      %v3858 = vld [vmem:[%s5 + $0xf4] sm:$0xf]
      %v3859 = vld [vmem:[%s5 + $0xf8] sm:$0xf]
      %v3860 = vld [vmem:[%s5 + $0xfc] sm:$0xf]
      %v3925 = vunpack.c.l.b16 %v3797
      %v3926 = vunpack.c.l.b16 %v3798
      %v3927 = vunpack.c.l.b16 %v3799
      %v3928 = vunpack.c.l.b16 %v3800
      %v3929 = vunpack.c.l.b16 %v3801
      %v3930 = vunpack.c.l.b16 %v3802
      %v3931 = vunpack.c.l.b16 %v3803
      %v3932 = vunpack.c.l.b16 %v3804
      %v3933 = vunpack.c.l.b16 %v3805
      %v3934 = vunpack.c.l.b16 %v3806
      %v3935 = vunpack.c.l.b16 %v3807
      %v3936 = vunpack.c.l.b16 %v3808
      %v3937 = vunpack.c.l.b16 %v3809
      %v3938 = vunpack.c.l.b16 %v3810
      %v3939 = vunpack.c.l.b16 %v3811
      %v3940 = vunpack.c.l.b16 %v3812
      %v3941 = vunpack.c.l.b16 %v3813
      %v3942 = vunpack.c.l.b16 %v3814
      %v3943 = vunpack.c.l.b16 %v3815
      %v3944 = vunpack.c.l.b16 %v3816
      %v3945 = vunpack.c.l.b16 %v3817
      %v3946 = vunpack.c.l.b16 %v3818
      %v3947 = vunpack.c.l.b16 %v3819
      %v3948 = vunpack.c.l.b16 %v3820
      %v3949 = vunpack.c.l.b16 %v3821
      %v3950 = vunpack.c.l.b16 %v3822
      %v3951 = vunpack.c.l.b16 %v3823
      %v3952 = vunpack.c.l.b16 %v3824
      %v3953 = vunpack.c.l.b16 %v3825
      %v3954 = vunpack.c.l.b16 %v3826
      %v3955 = vunpack.c.l.b16 %v3827
      %v3956 = vunpack.c.l.b16 %v3828
      %v3957 = vunpack.c.l.b16 %v3829
      %v3958 = vunpack.c.l.b16 %v3830
      %v3959 = vunpack.c.l.b16 %v3831
      %v3960 = vunpack.c.l.b16 %v3832
      %v3961 = vunpack.c.l.b16 %v3833
      %v3962 = vunpack.c.l.b16 %v3834
      %v3963 = vunpack.c.l.b16 %v3835
      %v3964 = vunpack.c.l.b16 %v3836
      %v3965 = vunpack.c.l.b16 %v3837
      %v3966 = vunpack.c.l.b16 %v3838
      %v3967 = vunpack.c.l.b16 %v3839
      %v3968 = vunpack.c.l.b16 %v3840
      %v3969 = vunpack.c.l.b16 %v3841
      %v3970 = vunpack.c.l.b16 %v3842
      %v3971 = vunpack.c.l.b16 %v3843
      %v3972 = vunpack.c.l.b16 %v3844
      %v3973 = vunpack.c.l.b16 %v3845
      %v3974 = vunpack.c.l.b16 %v3846
      %v3975 = vunpack.c.l.b16 %v3847
      %v3976 = vunpack.c.l.b16 %v3848
      %v3977 = vunpack.c.l.b16 %v3849
      %v3978 = vunpack.c.l.b16 %v3850
      %v3979 = vunpack.c.l.b16 %v3851
      %v3980 = vunpack.c.l.b16 %v3852
      %v3981 = vunpack.c.l.b16 %v3853
      %v3982 = vunpack.c.l.b16 %v3854
      %v3983 = vunpack.c.l.b16 %v3855
      %v3984 = vunpack.c.l.b16 %v3856
      %v3985 = vunpack.c.l.b16 %v3857
      %v3986 = vunpack.c.l.b16 %v3858
      %v3987 = vunpack.c.l.b16 %v3859
      %v3988 = vunpack.c.l.b16 %v3860
      %v3989 = vpack.c.b16 %v3926, %v3925
      %v3990 = vpack.c.b16 %v3928, %v3927
      %v3991 = vpack.c.b16 %v3930, %v3929
      %v3992 = vpack.c.b16 %v3932, %v3931
      %v3993 = vpack.c.b16 %v3934, %v3933
      %v3994 = vpack.c.b16 %v3936, %v3935
      %v3995 = vpack.c.b16 %v3938, %v3937
      %v3996 = vpack.c.b16 %v3940, %v3939
      %v3997 = vpack.c.b16 %v3942, %v3941
      %v3998 = vpack.c.b16 %v3944, %v3943
      %v3999 = vpack.c.b16 %v3946, %v3945
      %v4000 = vpack.c.b16 %v3948, %v3947
      %v4001 = vpack.c.b16 %v3950, %v3949
      %v4002 = vpack.c.b16 %v3952, %v3951
      %v4003 = vpack.c.b16 %v3954, %v3953
      %v4004 = vpack.c.b16 %v3956, %v3955
      %v4005 = vpack.c.b16 %v3958, %v3957
      %v4006 = vpack.c.b16 %v3960, %v3959
      %v4007 = vpack.c.b16 %v3962, %v3961
      %v4008 = vpack.c.b16 %v3964, %v3963
      %v4009 = vpack.c.b16 %v3966, %v3965
      %v4010 = vpack.c.b16 %v3968, %v3967
      %v4011 = vpack.c.b16 %v3970, %v3969
      %v4012 = vpack.c.b16 %v3972, %v3971
      %v4013 = vpack.c.b16 %v3974, %v3973
      %v4014 = vpack.c.b16 %v3976, %v3975
      %v4015 = vpack.c.b16 %v3978, %v3977
      %v4016 = vpack.c.b16 %v3980, %v3979
      %v4017 = vpack.c.b16 %v3982, %v3981
      %v4018 = vpack.c.b16 %v3984, %v3983
      %v4019 = vpack.c.b16 %v3986, %v3985
      %v4020 = vpack.c.b16 %v3988, %v3987
      %4053 = vmatprep.subr.bf16.mxu0 0
      %4054 = vmatpush1.bf16.msra.mxu0 %v3989
      %4055 = vmatprep.subr.bf16.mxu0 0
      %4056 = vmatpush1.bf16.msra.mxu0 %v3990
      %4057 = vmatprep.subr.bf16.mxu0 0
      %4058 = vmatpush1.bf16.msra.mxu0 %v3991
      %4059 = vmatprep.subr.bf16.mxu0 0
      %4060 = vmatpush1.bf16.msra.mxu0 %v3992
      %4061 = vmatprep.subr.bf16.mxu0 0
      %4062 = vmatpush1.bf16.msra.mxu0 %v3993
      %4063 = vmatprep.subr.bf16.mxu0 0
      %4064 = vmatpush1.bf16.msra.mxu0 %v3994
      %4065 = vmatprep.subr.bf16.mxu0 0
      %4066 = vmatpush1.bf16.msra.mxu0 %v3995
      %4067 = vmatprep.subr.bf16.mxu0 0
      %4068 = vmatpush1.bf16.msra.mxu0 %v3996
      %4069 = vmatprep.subr.bf16.mxu0 0
      %4070 = vmatpush1.bf16.msra.mxu0 %v3997
      %4071 = vmatprep.subr.bf16.mxu0 0
      %4072 = vmatpush1.bf16.msra.mxu0 %v3998
      %4073 = vmatprep.subr.bf16.mxu0 0
      %4074 = vmatpush1.bf16.msra.mxu0 %v3999
      %4075 = vmatprep.subr.bf16.mxu0 0
      %4076 = vmatpush1.bf16.msra.mxu0 %v4000
      %4077 = vmatprep.subr.bf16.mxu0 0
      %4078 = vmatpush1.bf16.msra.mxu0 %v4001
      %4079 = vmatprep.subr.bf16.mxu0 0
      %4080 = vmatpush1.bf16.msra.mxu0 %v4002
      %4081 = vmatprep.subr.bf16.mxu0 0
      %4082 = vmatpush1.bf16.msra.mxu0 %v4003
      %4083 = vmatprep.subr.bf16.mxu0 0
      %4084 = vmatpush1.bf16.msra.mxu0 %v4004
      %4085 = vmatprep.mubr.bf16.mxu0 %v2269
      %4086 = vmatmul.mubr.bf16.gmra.mrb[0].mxu0 %v2268
      %v4087 = vpop.f32.mrb[0].mxu0
      %v4088 = vadd.f32 0.0, %v4087
      %v4089 = vpop.f32.mrb[0].mxu0
      %v4090 = vpop.f32.mrb[0].mxu0
      %v4091 = vadd.f32 0.0, %v4090
      %v4092 = vpop.f32.mrb[0].mxu0
      %4093 = vmatprep.mubr.bf16.mxu0 %v2273
      %4094 = vmatmul.mubr.bf16.gmra.mrb[0].mxu0 %v2272
      %v4095 = vpop.f32.mrb[0].mxu0
      %v4096 = vadd.f32 0.0, %v4095
      %v4097 = vpop.f32.mrb[0].mxu0
      %v4098 = vpop.f32.mrb[0].mxu0
      %v4099 = vadd.f32 0.0, %v4098
      %v4100 = vpop.f32.mrb[0].mxu0
      %4101 = vmatprep.mubr.bf16.mxu0 %v2277
      %4102 = vmatmul.mubr.bf16.gmra.mrb[0].mxu0 %v2276
      %v4103 = vpop.f32.mrb[0].mxu0
      %v4104 = vadd.f32 0.0, %v4103
      %v4105 = vpop.f32.mrb[0].mxu0
      %v4106 = vpop.f32.mrb[0].mxu0
      %v4107 = vadd.f32 0.0, %v4106
      %v4108 = vpop.f32.mrb[0].mxu0
      %4109 = vmatprep.mubr.bf16.mxu0 %v2281
      %4110 = vmatmul.mubr.bf16.gmra.mrb[0].mxu0 %v2280
      %v4111 = vpop.f32.mrb[0].mxu0
      %v4112 = vadd.f32 0.0, %v4111
      %v4113 = vpop.f32.mrb[0].mxu0
      %v4114 = vpop.f32.mrb[0].mxu0
      %v4115 = vadd.f32 0.0, %v4114
      %v4116 = vpop.f32.mrb[0].mxu0
      %4117 = vmatprep.mubr.bf16.mxu0 %v2285
      %4118 = vmatmul.mubr.bf16.gmra.mrb[0].mxu0 %v2284
      %v4119 = vpop.f32.mrb[0].mxu0
      %v4120 = vadd.f32 0.0, %v4119
      %v4121 = vpop.f32.mrb[0].mxu0
      %v4122 = vpop.f32.mrb[0].mxu0
      %v4123 = vadd.f32 0.0, %v4122
      %v4124 = vpop.f32.mrb[0].mxu0
      %4125 = vmatprep.mubr.bf16.mxu0 %v2289
      %4126 = vmatmul.mubr.bf16.gmra.mrb[0].mxu0 %v2288
      %v4127 = vpop.f32.mrb[0].mxu0
      %v4128 = vadd.f32 0.0, %v4127
      %v4129 = vpop.f32.mrb[0].mxu0
      %v4130 = vpop.f32.mrb[0].mxu0
      %v4131 = vadd.f32 0.0, %v4130
      %v4132 = vpop.f32.mrb[0].mxu0
      %4133 = vmatprep.mubr.bf16.mxu0 %v2293
      %4134 = vmatmul.mubr.bf16.gmra.mrb[0].mxu0 %v2292
      %v4135 = vpop.f32.mrb[0].mxu0
      %v4136 = vadd.f32 0.0, %v4135
      %v4137 = vpop.f32.mrb[0].mxu0
      %v4138 = vpop.f32.mrb[0].mxu0
      %v4139 = vadd.f32 0.0, %v4138
      %v4140 = vpop.f32.mrb[0].mxu0
      %4141 = vmatprep.mubr.bf16.mxu0 %v2297
      %4142 = vmatmul.mubr.bf16.gmra.mrb[0].mxu0 %v2296
      %v4143 = vpop.f32.mrb[0].mxu0
      %v4144 = vadd.f32 0.0, %v4143
      %v4145 = vpop.f32.mrb[0].mxu0
      %v4146 = vpop.f32.mrb[0].mxu0
      %v4147 = vadd.f32 0.0, %v4146
      %v4148 = vpop.f32.mrb[0].mxu0
      %4149 = vmatprep.mubr.bf16.mxu0 %v2301
      %4150 = vmatmul.mubr.bf16.gmra.mrb[0].mxu0 %v2300
      %v4151 = vpop.f32.mrb[0].mxu0
      %v4152 = vadd.f32 0.0, %v4151
      %v4153 = vpop.f32.mrb[0].mxu0
      %v4154 = vpop.f32.mrb[0].mxu0
      %v4155 = vadd.f32 0.0, %v4154
      %v4156 = vpop.f32.mrb[0].mxu0
      %4157 = vmatprep.mubr.bf16.mxu0 %v2305
      %4158 = vmatmul.mubr.bf16.gmra.mrb[0].mxu0 %v2304
      %v4159 = vpop.f32.mrb[0].mxu0
      %v4160 = vadd.f32 0.0, %v4159
      %v4161 = vpop.f32.mrb[0].mxu0
      %v4162 = vpop.f32.mrb[0].mxu0
      %v4163 = vadd.f32 0.0, %v4162
      %v4164 = vpop.f32.mrb[0].mxu0
      %4165 = vmatprep.mubr.bf16.mxu0 %v2309
      %4166 = vmatmul.mubr.bf16.gmra.mrb[0].mxu0 %v2308
      %v4167 = vpop.f32.mrb[0].mxu0
      %v4168 = vadd.f32 0.0, %v4167
      %v4169 = vpop.f32.mrb[0].mxu0
      %v4170 = vpop.f32.mrb[0].mxu0
      %v4171 = vadd.f32 0.0, %v4170
      %v4172 = vpop.f32.mrb[0].mxu0
      %4173 = vmatprep.mubr.bf16.mxu0 %v2313
      %4174 = vmatmul.mubr.bf16.gmra.mrb[0].mxu0 %v2312
      %v4175 = vpop.f32.mrb[0].mxu0
      %v4176 = vadd.f32 0.0, %v4175
      %v4177 = vpop.f32.mrb[0].mxu0
      %v4178 = vpop.f32.mrb[0].mxu0
      %v4179 = vadd.f32 0.0, %v4178
      %v4180 = vpop.f32.mrb[0].mxu0
      %4181 = vmatprep.mubr.bf16.mxu0 %v2317
      %4182 = vmatmul.mubr.bf16.gmra.mrb[0].mxu0 %v2316
      %v4183 = vpop.f32.mrb[0].mxu0
      %v4184 = vadd.f32 0.0, %v4183
      %v4185 = vpop.f32.mrb[0].mxu0
      %v4186 = vpop.f32.mrb[0].mxu0
      %v4187 = vadd.f32 0.0, %v4186
      %v4188 = vpop.f32.mrb[0].mxu0
      %4189 = vmatprep.mubr.bf16.mxu0 %v2321
      %4190 = vmatmul.mubr.bf16.gmra.mrb[0].mxu0 %v2320
      %v4191 = vpop.f32.mrb[0].mxu0
      %v4192 = vadd.f32 0.0, %v4191
      %v4193 = vpop.f32.mrb[0].mxu0
      %v4194 = vpop.f32.mrb[0].mxu0
      %v4195 = vadd.f32 0.0, %v4194
      %v4196 = vpop.f32.mrb[0].mxu0
      %4197 = vmatprep.mubr.bf16.mxu0 %v2325
      %4198 = vmatmul.mubr.bf16.gmra.mrb[0].mxu0 %v2324
      %v4199 = vpop.f32.mrb[0].mxu0
      %v4200 = vadd.f32 0.0, %v4199
      %v4201 = vpop.f32.mrb[0].mxu0
      %v4202 = vpop.f32.mrb[0].mxu0
      %v4203 = vadd.f32 0.0, %v4202
      %v4204 = vpop.f32.mrb[0].mxu0
      %4205 = vmatprep.mubr.bf16.mxu0 %v2329
      %4206 = vmatmul.mubr.bf16.gmra.mrb[0].mxu0 %v2328
      %v4207 = vpop.f32.mrb[0].mxu0
      %v4208 = vadd.f32 0.0, %v4207
      %v4209 = vpop.f32.mrb[0].mxu0
      %v4210 = vpop.f32.mrb[0].mxu0
      %v4211 = vadd.f32 0.0, %v4210
      %v4212 = vpop.f32.mrb[0].mxu0
      %4213 = vmatprep.mubr.bf16.mxu0 %v2333
      %4214 = vmatmul.mubr.bf16.gmra.mrb[0].mxu0 %v2332
      %v4215 = vpop.f32.mrb[0].mxu0
      %v4216 = vadd.f32 0.0, %v4215
      %v4217 = vpop.f32.mrb[0].mxu0
      %v4218 = vpop.f32.mrb[0].mxu0
      %v4219 = vadd.f32 0.0, %v4218
      %v4220 = vpop.f32.mrb[0].mxu0
      %4221 = vmatprep.mubr.bf16.mxu0 %v2337
      %4222 = vmatmul.mubr.bf16.gmra.mrb[0].mxu0 %v2336
      %v4223 = vpop.f32.mrb[0].mxu0
      %v4224 = vadd.f32 0.0, %v4223
      %v4225 = vpop.f32.mrb[0].mxu0
      %v4226 = vpop.f32.mrb[0].mxu0
      %v4227 = vadd.f32 0.0, %v4226
      %v4228 = vpop.f32.mrb[0].mxu0
      %4229 = vmatprep.mubr.bf16.mxu0 %v2341
      %4230 = vmatmul.mubr.bf16.gmra.mrb[0].mxu0 %v2340
      %v4231 = vpop.f32.mrb[0].mxu0
      %v4232 = vadd.f32 0.0, %v4231
      %v4233 = vpop.f32.mrb[0].mxu0
      %v4234 = vpop.f32.mrb[0].mxu0
      %v4235 = vadd.f32 0.0, %v4234
      %v4236 = vpop.f32.mrb[0].mxu0
      %4237 = vmatprep.mubr.bf16.mxu0 %v2345
      %4238 = vmatmul.mubr.bf16.gmra.mrb[0].mxu0 %v2344
      %v4239 = vpop.f32.mrb[0].mxu0
      %v4240 = vadd.f32 0.0, %v4239
      %v4241 = vpop.f32.mrb[0].mxu0
      %v4242 = vpop.f32.mrb[0].mxu0
      %v4243 = vadd.f32 0.0, %v4242
      %v4244 = vpop.f32.mrb[0].mxu0
      %4245 = vmatprep.mubr.bf16.mxu0 %v2349
      %4246 = vmatmul.mubr.bf16.gmra.mrb[0].mxu0 %v2348
      %v4247 = vpop.f32.mrb[0].mxu0
      %v4248 = vadd.f32 0.0, %v4247
      %v4249 = vpop.f32.mrb[0].mxu0
      %v4250 = vpop.f32.mrb[0].mxu0
      %v4251 = vadd.f32 0.0, %v4250
      %v4252 = vpop.f32.mrb[0].mxu0
      %4253 = vmatprep.mubr.bf16.mxu0 %v2353
      %4254 = vmatmul.mubr.bf16.gmra.mrb[0].mxu0 %v2352
      %v4255 = vpop.f32.mrb[0].mxu0
      %v4256 = vadd.f32 0.0, %v4255
      %v4257 = vpop.f32.mrb[0].mxu0
      %v4258 = vpop.f32.mrb[0].mxu0
      %v4259 = vadd.f32 0.0, %v4258
      %v4260 = vpop.f32.mrb[0].mxu0
      %4261 = vmatprep.mubr.bf16.mxu0 %v2357
      %4262 = vmatmul.mubr.bf16.gmra.mrb[0].mxu0 %v2356
      %v4263 = vpop.f32.mrb[0].mxu0
      %v4264 = vadd.f32 0.0, %v4263
      %v4265 = vpop.f32.mrb[0].mxu0
      %v4266 = vpop.f32.mrb[0].mxu0
      %v4267 = vadd.f32 0.0, %v4266
      %v4268 = vpop.f32.mrb[0].mxu0
      %4269 = vmatprep.mubr.bf16.mxu0 %v2361
      %4270 = vmatmul.mubr.bf16.gmra.mrb[0].mxu0 %v2360
      %v4271 = vpop.f32.mrb[0].mxu0
      %v4272 = vadd.f32 0.0, %v4271
      %v4273 = vpop.f32.mrb[0].mxu0
      %v4274 = vpop.f32.mrb[0].mxu0
      %v4275 = vadd.f32 0.0, %v4274
      %v4276 = vpop.f32.mrb[0].mxu0
      %4277 = vmatprep.mubr.bf16.mxu0 %v2365
      %4278 = vmatmul.mubr.bf16.gmra.mrb[0].mxu0 %v2364
      %v4279 = vpop.f32.mrb[0].mxu0
      %v4280 = vadd.f32 0.0, %v4279
      %v4281 = vpop.f32.mrb[0].mxu0
      %v4282 = vpop.f32.mrb[0].mxu0
      %v4283 = vadd.f32 0.0, %v4282
      %v4284 = vpop.f32.mrb[0].mxu0
      %4285 = vmatprep.mubr.bf16.mxu0 %v2369
      %4286 = vmatmul.mubr.bf16.gmra.mrb[0].mxu0 %v2368
      %v4287 = vpop.f32.mrb[0].mxu0
      %v4288 = vadd.f32 0.0, %v4287
      %v4289 = vpop.f32.mrb[0].mxu0
      %v4290 = vpop.f32.mrb[0].mxu0
      %v4291 = vadd.f32 0.0, %v4290
      %v4292 = vpop.f32.mrb[0].mxu0
      %4293 = vmatprep.mubr.bf16.mxu0 %v2373
      %4294 = vmatmul.mubr.bf16.gmra.mrb[0].mxu0 %v2372
      %v4295 = vpop.f32.mrb[0].mxu0
      %v4296 = vadd.f32 0.0, %v4295
      %v4297 = vpop.f32.mrb[0].mxu0
      %v4298 = vpop.f32.mrb[0].mxu0
      %v4299 = vadd.f32 0.0, %v4298
      %v4300 = vpop.f32.mrb[0].mxu0
      %4301 = vmatprep.mubr.bf16.mxu0 %v2377
      %4302 = vmatmul.mubr.bf16.gmra.mrb[0].mxu0 %v2376
      %v4303 = vpop.f32.mrb[0].mxu0
      %v4304 = vadd.f32 0.0, %v4303
      %v4305 = vpop.f32.mrb[0].mxu0
      %v4306 = vpop.f32.mrb[0].mxu0
      %v4307 = vadd.f32 0.0, %v4306
      %v4308 = vpop.f32.mrb[0].mxu0
      %4309 = vmatprep.mubr.bf16.mxu0 %v2381
      %4310 = vmatmul.mubr.bf16.gmra.mrb[0].mxu0 %v2380
      %v4311 = vpop.f32.mrb[0].mxu0
      %v4312 = vadd.f32 0.0, %v4311
      %v4313 = vpop.f32.mrb[0].mxu0
      %v4314 = vpop.f32.mrb[0].mxu0
      %v4315 = vadd.f32 0.0, %v4314
      %v4316 = vpop.f32.mrb[0].mxu0
      %4317 = vmatprep.mubr.bf16.mxu0 %v2385
      %4318 = vmatmul.mubr.bf16.gmra.mrb[0].mxu0 %v2384
      %v4319 = vpop.f32.mrb[0].mxu0
      %v4320 = vadd.f32 0.0, %v4319
      %v4321 = vpop.f32.mrb[0].mxu0
      %v4322 = vpop.f32.mrb[0].mxu0
      %v4323 = vadd.f32 0.0, %v4322
      %v4324 = vpop.f32.mrb[0].mxu0
      %4325 = vmatprep.mubr.bf16.mxu0 %v2389
      %4326 = vmatmul.mubr.bf16.gmra.mrb[0].mxu0 %v2388
      %v4327 = vpop.f32.mrb[0].mxu0
      %v4328 = vadd.f32 0.0, %v4327
      %v4329 = vpop.f32.mrb[0].mxu0
      %v4330 = vpop.f32.mrb[0].mxu0
      %v4331 = vadd.f32 0.0, %v4330
      %v4332 = vpop.f32.mrb[0].mxu0
      %4333 = vmatprep.mubr.bf16.mxu0 %v2393
      %4334 = vmatmul.mubr.bf16.gmra.mrb[0].mxu0 %v2392
      %v4335 = vpop.f32.mrb[0].mxu0
      %v4336 = vadd.f32 0.0, %v4335
      %v4337 = vpop.f32.mrb[0].mxu0
      %v4338 = vpop.f32.mrb[0].mxu0
      %v4339 = vpop.f32.mrb[0].mxu0
      %4340 = vdwg.mxu0
      %4341 = vmatprep.subr.bf16.mxu0 0
      %4342 = vmatpush1.bf16.msra.mxu0 %v4005
      %4343 = vmatprep.subr.bf16.mxu0 0
      %4344 = vmatpush1.bf16.msra.mxu0 %v4006
      %4345 = vmatprep.subr.bf16.mxu0 0
      %4346 = vmatpush1.bf16.msra.mxu0 %v4007
      %4347 = vmatprep.subr.bf16.mxu0 0
      %4348 = vmatpush1.bf16.msra.mxu0 %v4008
      %4349 = vmatprep.subr.bf16.mxu0 0
      %4350 = vmatpush1.bf16.msra.mxu0 %v4009
      %4351 = vmatprep.subr.bf16.mxu0 0
      %4352 = vmatpush1.bf16.msra.mxu0 %v4010
      %4353 = vmatprep.subr.bf16.mxu0 0
      %4354 = vmatpush1.bf16.msra.mxu0 %v4011
      %4355 = vmatprep.subr.bf16.mxu0 0
      %4356 = vmatpush1.bf16.msra.mxu0 %v4012
      %4357 = vmatprep.subr.bf16.mxu0 0
      %4358 = vmatpush1.bf16.msra.mxu0 %v4013
      %4359 = vmatprep.subr.bf16.mxu0 0
      %4360 = vmatpush1.bf16.msra.mxu0 %v4014
      %4361 = vmatprep.subr.bf16.mxu0 0
      %4362 = vmatpush1.bf16.msra.mxu0 %v4015
      %4363 = vmatprep.subr.bf16.mxu0 0
      %4364 = vmatpush1.bf16.msra.mxu0 %v4016
      %4365 = vmatprep.subr.bf16.mxu0 0
      %4366 = vmatpush1.bf16.msra.mxu0 %v4017
      %4367 = vmatprep.subr.bf16.mxu0 0
      %4368 = vmatpush1.bf16.msra.mxu0 %v4018
      %4369 = vmatprep.subr.bf16.mxu0 0
      %4370 = vmatpush1.bf16.msra.mxu0 %v4019
      %4371 = vmatprep.subr.bf16.mxu0 0
      %4372 = vmatpush1.bf16.msra.mxu0 %v4020
      %4373 = vmatprep.mubr.bf16.mxu0 %v2271
      %4374 = vmatmul.mubr.bf16.gmra.mrb[0].mxu0 %v2270
      %v4375 = vpop.f32.mrb[0].mxu0
      %v4376 = vadd.f32 %v4088, %v4375
      %v4377 = vpop.f32.mrb[0].mxu0
      %v4378 = vpop.f32.mrb[0].mxu0
      %v4379 = vadd.f32 %v4091, %v4378
      %v4380 = vpop.f32.mrb[0].mxu0
      %4381 = vmatprep.mubr.bf16.mxu0 %v2275
      %4382 = vmatmul.mubr.bf16.gmra.mrb[0].mxu0 %v2274
      %v4383 = vpop.f32.mrb[0].mxu0
      %v4384 = vadd.f32 %v4096, %v4383
      %v4385 = vpop.f32.mrb[0].mxu0
      %v4386 = vpop.f32.mrb[0].mxu0
      %v4387 = vadd.f32 %v4099, %v4386
      %v4388 = vpop.f32.mrb[0].mxu0
      %4389 = vmatprep.mubr.bf16.mxu0 %v2279
      %4390 = vmatmul.mubr.bf16.gmra.mrb[0].mxu0 %v2278
      %v4391 = vpop.f32.mrb[0].mxu0
      %v4392 = vadd.f32 %v4104, %v4391
      %v4393 = vpop.f32.mrb[0].mxu0
      %v4394 = vpop.f32.mrb[0].mxu0
      %v4395 = vadd.f32 %v4107, %v4394
      %v4396 = vpop.f32.mrb[0].mxu0
      %4397 = vmatprep.mubr.bf16.mxu0 %v2283
      %4398 = vmatmul.mubr.bf16.gmra.mrb[0].mxu0 %v2282
      %v4399 = vpop.f32.mrb[0].mxu0
      %v4400 = vadd.f32 %v4112, %v4399
      %v4401 = vpop.f32.mrb[0].mxu0
      %v4402 = vpop.f32.mrb[0].mxu0
      %v4403 = vadd.f32 %v4115, %v4402
      %v4404 = vpop.f32.mrb[0].mxu0
      %4405 = vmatprep.mubr.bf16.mxu0 %v2287
      %4406 = vmatmul.mubr.bf16.gmra.mrb[0].mxu0 %v2286
      %v4407 = vpop.f32.mrb[0].mxu0
      %v4408 = vadd.f32 %v4120, %v4407
      %v4409 = vpop.f32.mrb[0].mxu0
      %v4410 = vpop.f32.mrb[0].mxu0
      %v4411 = vadd.f32 %v4123, %v4410
      %v4412 = vpop.f32.mrb[0].mxu0
      %4413 = vmatprep.mubr.bf16.mxu0 %v2291
      %4414 = vmatmul.mubr.bf16.gmra.mrb[0].mxu0 %v2290
      %v4415 = vpop.f32.mrb[0].mxu0
      %v4416 = vadd.f32 %v4128, %v4415
      %v4417 = vpop.f32.mrb[0].mxu0
      %v4418 = vpop.f32.mrb[0].mxu0
      %v4419 = vadd.f32 %v4131, %v4418
      %v4420 = vpop.f32.mrb[0].mxu0
      %4421 = vmatprep.mubr.bf16.mxu0 %v2295
      %4422 = vmatmul.mubr.bf16.gmra.mrb[0].mxu0 %v2294
      %v4423 = vpop.f32.mrb[0].mxu0
      %v4424 = vadd.f32 %v4136, %v4423
      %v4425 = vpop.f32.mrb[0].mxu0
      %v4426 = vpop.f32.mrb[0].mxu0
      %v4427 = vadd.f32 %v4139, %v4426
      %v4428 = vpop.f32.mrb[0].mxu0
      %4429 = vmatprep.mubr.bf16.mxu0 %v2299
      %4430 = vmatmul.mubr.bf16.gmra.mrb[0].mxu0 %v2298
      %v4431 = vpop.f32.mrb[0].mxu0
      %v4432 = vadd.f32 %v4144, %v4431
      %v4433 = vpop.f32.mrb[0].mxu0
      %v4434 = vpop.f32.mrb[0].mxu0
      %v4435 = vadd.f32 %v4147, %v4434
      %v4436 = vpop.f32.mrb[0].mxu0
      %4437 = vmatprep.mubr.bf16.mxu0 %v2303
      %4438 = vmatmul.mubr.bf16.gmra.mrb[0].mxu0 %v2302
      %v4439 = vpop.f32.mrb[0].mxu0
      %v4440 = vadd.f32 %v4152, %v4439
      %v4441 = vpop.f32.mrb[0].mxu0
      %v4442 = vpop.f32.mrb[0].mxu0
      %v4443 = vadd.f32 %v4155, %v4442
      %v4444 = vpop.f32.mrb[0].mxu0
      %4445 = vmatprep.mubr.bf16.mxu0 %v2307
      %4446 = vmatmul.mubr.bf16.gmra.mrb[0].mxu0 %v2306
      %v4447 = vpop.f32.mrb[0].mxu0
      %v4448 = vadd.f32 %v4160, %v4447
      %v4449 = vpop.f32.mrb[0].mxu0
      %v4450 = vpop.f32.mrb[0].mxu0
      %v4451 = vadd.f32 %v4163, %v4450
      %v4452 = vpop.f32.mrb[0].mxu0
      %4453 = vmatprep.mubr.bf16.mxu0 %v2311
      %4454 = vmatmul.mubr.bf16.gmra.mrb[0].mxu0 %v2310
      %v4455 = vpop.f32.mrb[0].mxu0
      %v4456 = vadd.f32 %v4168, %v4455
      %v4457 = vpop.f32.mrb[0].mxu0
      %v4458 = vpop.f32.mrb[0].mxu0
      %v4459 = vadd.f32 %v4171, %v4458
      %v4460 = vpop.f32.mrb[0].mxu0
      %4461 = vmatprep.mubr.bf16.mxu0 %v2315
      %4462 = vmatmul.mubr.bf16.gmra.mrb[0].mxu0 %v2314
      %v4463 = vpop.f32.mrb[0].mxu0
      %v4464 = vadd.f32 %v4176, %v4463
      %v4465 = vpop.f32.mrb[0].mxu0
      %v4466 = vpop.f32.mrb[0].mxu0
      %v4467 = vadd.f32 %v4179, %v4466
      %v4468 = vpop.f32.mrb[0].mxu0
      %4469 = vmatprep.mubr.bf16.mxu0 %v2319
      %4470 = vmatmul.mubr.bf16.gmra.mrb[0].mxu0 %v2318
      %v4471 = vpop.f32.mrb[0].mxu0
      %v4472 = vadd.f32 %v4184, %v4471
      %v4473 = vpop.f32.mrb[0].mxu0
      %v4474 = vpop.f32.mrb[0].mxu0
      %v4475 = vadd.f32 %v4187, %v4474
      %v4476 = vpop.f32.mrb[0].mxu0
      %4477 = vmatprep.mubr.bf16.mxu0 %v2323
      %4478 = vmatmul.mubr.bf16.gmra.mrb[0].mxu0 %v2322
      %v4479 = vpop.f32.mrb[0].mxu0
      %v4480 = vadd.f32 %v4192, %v4479
      %v4481 = vpop.f32.mrb[0].mxu0
      %v4482 = vpop.f32.mrb[0].mxu0
      %v4483 = vadd.f32 %v4195, %v4482
      %v4484 = vpop.f32.mrb[0].mxu0
      %4485 = vmatprep.mubr.bf16.mxu0 %v2327
      %4486 = vmatmul.mubr.bf16.gmra.mrb[0].mxu0 %v2326
      %v4487 = vpop.f32.mrb[0].mxu0
      %v4488 = vadd.f32 %v4200, %v4487
      %v4489 = vpop.f32.mrb[0].mxu0
      %v4490 = vpop.f32.mrb[0].mxu0
      %v4491 = vadd.f32 %v4203, %v4490
      %v4492 = vpop.f32.mrb[0].mxu0
      %4493 = vmatprep.mubr.bf16.mxu0 %v2331
      %4494 = vmatmul.mubr.bf16.gmra.mrb[0].mxu0 %v2330
      %v4495 = vpop.f32.mrb[0].mxu0
      %v4496 = vadd.f32 %v4208, %v4495
      %v4497 = vpop.f32.mrb[0].mxu0
      %v4498 = vpop.f32.mrb[0].mxu0
      %v4499 = vadd.f32 %v4211, %v4498
      %v4500 = vpop.f32.mrb[0].mxu0
      %4501 = vmatprep.mubr.bf16.mxu0 %v2335
      %4502 = vmatmul.mubr.bf16.gmra.mrb[0].mxu0 %v2334
      %v4503 = vpop.f32.mrb[0].mxu0
      %v4504 = vadd.f32 %v4216, %v4503
      %v4505 = vpop.f32.mrb[0].mxu0
      %v4506 = vpop.f32.mrb[0].mxu0
      %v4507 = vadd.f32 %v4219, %v4506
      %v4508 = vpop.f32.mrb[0].mxu0
      %4509 = vmatprep.mubr.bf16.mxu0 %v2339
      %4510 = vmatmul.mubr.bf16.gmra.mrb[0].mxu0 %v2338
      %v4511 = vpop.f32.mrb[0].mxu0
      %v4512 = vadd.f32 %v4224, %v4511
      %v4513 = vpop.f32.mrb[0].mxu0
      %v4514 = vpop.f32.mrb[0].mxu0
      %v4515 = vadd.f32 %v4227, %v4514
      %v4516 = vpop.f32.mrb[0].mxu0
      %4517 = vmatprep.mubr.bf16.mxu0 %v2343
      %4518 = vmatmul.mubr.bf16.gmra.mrb[0].mxu0 %v2342
      %v4519 = vpop.f32.mrb[0].mxu0
      %v4520 = vadd.f32 %v4232, %v4519
      %v4521 = vpop.f32.mrb[0].mxu0
      %v4522 = vpop.f32.mrb[0].mxu0
      %v4523 = vadd.f32 %v4235, %v4522
      %v4524 = vpop.f32.mrb[0].mxu0
      %4525 = vmatprep.mubr.bf16.mxu0 %v2347
      %4526 = vmatmul.mubr.bf16.gmra.mrb[0].mxu0 %v2346
      %v4527 = vpop.f32.mrb[0].mxu0
      %v4528 = vadd.f32 %v4240, %v4527
      %v4529 = vpop.f32.mrb[0].mxu0
      %v4530 = vpop.f32.mrb[0].mxu0
      %v4531 = vadd.f32 %v4243, %v4530
      %v4532 = vpop.f32.mrb[0].mxu0
      %4533 = vmatprep.mubr.bf16.mxu0 %v2351
      %4534 = vmatmul.mubr.bf16.gmra.mrb[0].mxu0 %v2350
      %v4535 = vpop.f32.mrb[0].mxu0
      %v4536 = vadd.f32 %v4248, %v4535
      %v4537 = vpop.f32.mrb[0].mxu0
      %v4538 = vpop.f32.mrb[0].mxu0
      %v4539 = vadd.f32 %v4251, %v4538
      %v4540 = vpop.f32.mrb[0].mxu0
      %4541 = vmatprep.mubr.bf16.mxu0 %v2355
      %4542 = vmatmul.mubr.bf16.gmra.mrb[0].mxu0 %v2354
      %v4543 = vpop.f32.mrb[0].mxu0
      %v4544 = vadd.f32 %v4256, %v4543
      %v4545 = vpop.f32.mrb[0].mxu0
      %v4546 = vpop.f32.mrb[0].mxu0
      %v4547 = vadd.f32 %v4259, %v4546
      %v4548 = vpop.f32.mrb[0].mxu0
      %4549 = vmatprep.mubr.bf16.mxu0 %v2359
      %4550 = vmatmul.mubr.bf16.gmra.mrb[0].mxu0 %v2358
      %v4551 = vpop.f32.mrb[0].mxu0
      %v4552 = vadd.f32 %v4264, %v4551
      %v4553 = vpop.f32.mrb[0].mxu0
      %v4554 = vpop.f32.mrb[0].mxu0
      %v4555 = vadd.f32 %v4267, %v4554
      %v4556 = vpop.f32.mrb[0].mxu0
      %4557 = vmatprep.mubr.bf16.mxu0 %v2363
      %4558 = vmatmul.mubr.bf16.gmra.mrb[0].mxu0 %v2362
      %v4559 = vpop.f32.mrb[0].mxu0
      %v4560 = vadd.f32 %v4272, %v4559
      %v4561 = vpop.f32.mrb[0].mxu0
      %v4562 = vpop.f32.mrb[0].mxu0
      %v4563 = vadd.f32 %v4275, %v4562
      %v4564 = vpop.f32.mrb[0].mxu0
      %4565 = vmatprep.mubr.bf16.mxu0 %v2367
      %4566 = vmatmul.mubr.bf16.gmra.mrb[0].mxu0 %v2366
      %v4567 = vpop.f32.mrb[0].mxu0
      %v4568 = vadd.f32 %v4280, %v4567
      %v4569 = vpop.f32.mrb[0].mxu0
      %v4570 = vpop.f32.mrb[0].mxu0
      %v4571 = vadd.f32 %v4283, %v4570
      %v4572 = vpop.f32.mrb[0].mxu0
      %4573 = vmatprep.mubr.bf16.mxu0 %v2371
      %4574 = vmatmul.mubr.bf16.gmra.mrb[0].mxu0 %v2370
      %v4575 = vpop.f32.mrb[0].mxu0
      %v4576 = vadd.f32 %v4288, %v4575
      %v4577 = vpop.f32.mrb[0].mxu0
      %v4578 = vpop.f32.mrb[0].mxu0
      %v4579 = vadd.f32 %v4291, %v4578
      %v4580 = vpop.f32.mrb[0].mxu0
      %4581 = vmatprep.mubr.bf16.mxu0 %v2375
      %4582 = vmatmul.mubr.bf16.gmra.mrb[0].mxu0 %v2374
      %v4583 = vpop.f32.mrb[0].mxu0
      %v4584 = vadd.f32 %v4296, %v4583
      %v4585 = vpop.f32.mrb[0].mxu0
      %v4586 = vpop.f32.mrb[0].mxu0
      %v4587 = vadd.f32 %v4299, %v4586
      %v4588 = vpop.f32.mrb[0].mxu0
      %4589 = vmatprep.mubr.bf16.mxu0 %v2379
      %4590 = vmatmul.mubr.bf16.gmra.mrb[0].mxu0 %v2378
      %v4591 = vpop.f32.mrb[0].mxu0
      %v4592 = vadd.f32 %v4304, %v4591
      %v4593 = vpop.f32.mrb[0].mxu0
      %v4594 = vpop.f32.mrb[0].mxu0
      %v4595 = vadd.f32 %v4307, %v4594
      %v4596 = vpop.f32.mrb[0].mxu0
      %4597 = vmatprep.mubr.bf16.mxu0 %v2383
      %4598 = vmatmul.mubr.bf16.gmra.mrb[0].mxu0 %v2382
      %v4599 = vpop.f32.mrb[0].mxu0
      %v4600 = vadd.f32 %v4312, %v4599
      %v4601 = vpop.f32.mrb[0].mxu0
      %v4602 = vpop.f32.mrb[0].mxu0
      %v4603 = vadd.f32 %v4315, %v4602
      %v4604 = vpop.f32.mrb[0].mxu0
      %4605 = vmatprep.mubr.bf16.mxu0 %v2387
      %4606 = vmatmul.mubr.bf16.gmra.mrb[0].mxu0 %v2386
      %v4607 = vpop.f32.mrb[0].mxu0
      %v4608 = vadd.f32 %v4320, %v4607
      %v4609 = vpop.f32.mrb[0].mxu0
      %v4610 = vpop.f32.mrb[0].mxu0
      %v4611 = vadd.f32 %v4323, %v4610
      %v4612 = vpop.f32.mrb[0].mxu0
      %4613 = vmatprep.mubr.bf16.mxu0 %v2391
      %4614 = vmatmul.mubr.bf16.gmra.mrb[0].mxu0 %v2390
      %v4615 = vpop.f32.mrb[0].mxu0
      %v4616 = vadd.f32 %v4328, %v4615
      %v4617 = vpop.f32.mrb[0].mxu0
      %v4618 = vpop.f32.mrb[0].mxu0
      %v4619 = vadd.f32 %v4331, %v4618
      %v4620 = vpop.f32.mrb[0].mxu0
      %4621 = vmatprep.mubr.bf16.mxu0 %v2395
      %4622 = vmatmul.mubr.bf16.gmra.mrb[0].mxu0 %v2394
      %v4623 = vpop.f32.mrb[0].mxu0
      %v4624 = vadd.f32 %v4336, %v4623
      %v4625 = vpop.f32.mrb[0].mxu0
      %v4626 = vpop.f32.mrb[0].mxu0
      %v4627 = vpop.f32.mrb[0].mxu0
      %4628 = vdwg.mxu0
      %v4629 = vadd.f32 %v3484, %v4376
      %v4630 = vadd.f32 %v3489, %v4379
      %v4631 = vadd.f32 %v3494, %v4384
      %v4632 = vadd.f32 %v3499, %v4387
      %v4633 = vadd.f32 %v3504, %v4392
      %v4634 = vadd.f32 %v3509, %v4395
      %v4635 = vadd.f32 %v3514, %v4400
      %v4636 = vadd.f32 %v3519, %v4403
      %v4637 = vadd.f32 %v3524, %v4408
      %v4638 = vadd.f32 %v3529, %v4411
      %v4639 = vadd.f32 %v3534, %v4416
      %v4640 = vadd.f32 %v3539, %v4419
      %v4641 = vadd.f32 %v3544, %v4424
      %v4642 = vadd.f32 %v3549, %v4427
      %v4643 = vadd.f32 %v3554, %v4432
      %v4644 = vadd.f32 %v3559, %v4435
      %v4645 = vadd.f32 %v3564, %v4440
      %v4646 = vadd.f32 %v3569, %v4443
      %v4647 = vadd.f32 %v3574, %v4448
      %v4648 = vadd.f32 %v3579, %v4451
      %v4649 = vadd.f32 %v3584, %v4456
      %v4650 = vadd.f32 %v3589, %v4459
      %v4651 = vadd.f32 %v3594, %v4464
      %v4652 = vadd.f32 %v3599, %v4467
      %v4653 = vadd.f32 %v3604, %v4472
      %v4654 = vadd.f32 %v3609, %v4475
      %v4655 = vadd.f32 %v3614, %v4480
      %v4656 = vadd.f32 %v3619, %v4483
      %v4657 = vadd.f32 %v3624, %v4488
      %v4658 = vadd.f32 %v3629, %v4491
      %v4659 = vadd.f32 %v3634, %v4496
      %v4660 = vadd.f32 %v3639, %v4499
      %v4661 = vadd.f32 %v3644, %v4504
      %v4662 = vadd.f32 %v3649, %v4507
      %v4663 = vadd.f32 %v3654, %v4512
      %v4664 = vadd.f32 %v3659, %v4515
      %v4665 = vadd.f32 %v3664, %v4520
      %v4666 = vadd.f32 %v3669, %v4523
      %v4667 = vadd.f32 %v3674, %v4528
      %v4668 = vadd.f32 %v3679, %v4531
      %v4669 = vadd.f32 %v3684, %v4536
      %v4670 = vadd.f32 %v3689, %v4539
      %v4671 = vadd.f32 %v3694, %v4544
      %v4672 = vadd.f32 %v3699, %v4547
      %v4673 = vadd.f32 %v3704, %v4552
      %v4674 = vadd.f32 %v3709, %v4555
      %v4675 = vadd.f32 %v3714, %v4560
      %v4676 = vadd.f32 %v3719, %v4563
      %v4677 = vadd.f32 %v3724, %v4568
      %v4678 = vadd.f32 %v3729, %v4571
      %v4679 = vadd.f32 %v3734, %v4576
      %v4680 = vadd.f32 %v3739, %v4579
      %v4681 = vadd.f32 %v3744, %v4584
      %v4682 = vadd.f32 %v3749, %v4587
      %v4683 = vadd.f32 %v3754, %v4592
      %v4684 = vadd.f32 %v3759, %v4595
      %v4685 = vadd.f32 %v3764, %v4600
      %v4686 = vadd.f32 %v3769, %v4603
      %v4687 = vadd.f32 %v3774, %v4608
      %v4688 = vadd.f32 %v3779, %v4611
      %v4689 = vadd.f32 %v3784, %v4616
      %v4690 = vadd.f32 %v3789, %v4619
      %v4691 = vadd.f32 %v3794, %v4624
      %v4692 = vld [vmem:[%s6] sm:$0x1]
      %v4694 = vlaneseq
      %v4695 = vshrl.u32 %v4694, 7
      %v4696 = vsub.s32 0, %v4695
      %v4697 = vrot.slane %v4692, %v4696
      %v4699 = vadd.f32 %v4629, %v4697
      %v4700 = vadd.f32 %v4630, %v4697
      %v4701 = vadd.f32 %v4631, %v4697
      %v4702 = vadd.f32 %v4632, %v4697
      %v4703 = vadd.f32 %v4633, %v4697
      %v4704 = vadd.f32 %v4634, %v4697
      %v4705 = vadd.f32 %v4635, %v4697
      %v4706 = vadd.f32 %v4636, %v4697
      %v4707 = vadd.f32 %v4637, %v4697
      %v4708 = vadd.f32 %v4638, %v4697
      %v4709 = vadd.f32 %v4639, %v4697
      %v4710 = vadd.f32 %v4640, %v4697
      %v4711 = vadd.f32 %v4641, %v4697
      %v4712 = vadd.f32 %v4642, %v4697
      %v4713 = vadd.f32 %v4643, %v4697
      %v4714 = vadd.f32 %v4644, %v4697
      %v4715 = vadd.f32 %v4645, %v4697
      %v4716 = vadd.f32 %v4646, %v4697
      %v4717 = vadd.f32 %v4647, %v4697
      %v4718 = vadd.f32 %v4648, %v4697
      %v4719 = vadd.f32 %v4649, %v4697
      %v4720 = vadd.f32 %v4650, %v4697
      %v4721 = vadd.f32 %v4651, %v4697
      %v4722 = vadd.f32 %v4652, %v4697
      %v4723 = vadd.f32 %v4653, %v4697
      %v4724 = vadd.f32 %v4654, %v4697
      %v4725 = vadd.f32 %v4655, %v4697
      %v4726 = vadd.f32 %v4656, %v4697
      %v4727 = vadd.f32 %v4657, %v4697
      %v4728 = vadd.f32 %v4658, %v4697
      %v4729 = vadd.f32 %v4659, %v4697
      %v4730 = vadd.f32 %v4660, %v4697
      %v4731 = vadd.f32 %v4661, %v4697
      %v4732 = vadd.f32 %v4662, %v4697
      %v4733 = vadd.f32 %v4663, %v4697
      %v4734 = vadd.f32 %v4664, %v4697
      %v4735 = vadd.f32 %v4665, %v4697
      %v4736 = vadd.f32 %v4666, %v4697
      %v4737 = vadd.f32 %v4667, %v4697
      %v4738 = vadd.f32 %v4668, %v4697
      %v4739 = vadd.f32 %v4669, %v4697
      %v4740 = vadd.f32 %v4670, %v4697
      %v4741 = vadd.f32 %v4671, %v4697
      %v4742 = vadd.f32 %v4672, %v4697
      %v4743 = vadd.f32 %v4673, %v4697
      %v4744 = vadd.f32 %v4674, %v4697
      %v4745 = vadd.f32 %v4675, %v4697
      %v4746 = vadd.f32 %v4676, %v4697
      %v4747 = vadd.f32 %v4677, %v4697
      %v4748 = vadd.f32 %v4678, %v4697
      %v4749 = vadd.f32 %v4679, %v4697
      %v4750 = vadd.f32 %v4680, %v4697
      %v4751 = vadd.f32 %v4681, %v4697
      %v4752 = vadd.f32 %v4682, %v4697
      %v4753 = vadd.f32 %v4683, %v4697
      %v4754 = vadd.f32 %v4684, %v4697
      %v4755 = vadd.f32 %v4685, %v4697
      %v4756 = vadd.f32 %v4686, %v4697
      %v4757 = vadd.f32 %v4687, %v4697
      %v4758 = vadd.f32 %v4688, %v4697
      %v4759 = vadd.f32 %v4689, %v4697
      %v4760 = vadd.f32 %v4690, %v4697
      %v4761 = vadd.f32 %v4691, %v4697
      %vm4762 = vcmp.gt.f32.partialorder %v4699, 0.0
      %vm4763 = vcmp.gt.f32.partialorder %v4700, 0.0
      %vm4764 = vcmp.gt.f32.partialorder %v4701, 0.0
      %vm4765 = vcmp.gt.f32.partialorder %v4702, 0.0
      %vm4766 = vcmp.gt.f32.partialorder %v4703, 0.0
      %vm4767 = vcmp.gt.f32.partialorder %v4704, 0.0
      %vm4768 = vcmp.gt.f32.partialorder %v4705, 0.0
      %vm4769 = vcmp.gt.f32.partialorder %v4706, 0.0
      %vm4770 = vcmp.gt.f32.partialorder %v4707, 0.0
      %vm4771 = vcmp.gt.f32.partialorder %v4708, 0.0
      %vm4772 = vcmp.gt.f32.partialorder %v4709, 0.0
      %vm4773 = vcmp.gt.f32.partialorder %v4710, 0.0
      %vm4774 = vcmp.gt.f32.partialorder %v4711, 0.0
      %vm4775 = vcmp.gt.f32.partialorder %v4712, 0.0
      %vm4776 = vcmp.gt.f32.partialorder %v4713, 0.0
      %vm4777 = vcmp.gt.f32.partialorder %v4714, 0.0
      %vm4778 = vcmp.gt.f32.partialorder %v4715, 0.0
      %vm4779 = vcmp.gt.f32.partialorder %v4716, 0.0
      %vm4780 = vcmp.gt.f32.partialorder %v4717, 0.0
      %vm4781 = vcmp.gt.f32.partialorder %v4718, 0.0
      %vm4782 = vcmp.gt.f32.partialorder %v4719, 0.0
      %vm4783 = vcmp.gt.f32.partialorder %v4720, 0.0
      %vm4784 = vcmp.gt.f32.partialorder %v4721, 0.0
      %vm4785 = vcmp.gt.f32.partialorder %v4722, 0.0
      %vm4786 = vcmp.gt.f32.partialorder %v4723, 0.0
      %vm4787 = vcmp.gt.f32.partialorder %v4724, 0.0
      %vm4788 = vcmp.gt.f32.partialorder %v4725, 0.0
      %vm4789 = vcmp.gt.f32.partialorder %v4726, 0.0
      %vm4790 = vcmp.gt.f32.partialorder %v4727, 0.0
      %vm4791 = vcmp.gt.f32.partialorder %v4728, 0.0
      %vm4792 = vcmp.gt.f32.partialorder %v4729, 0.0
      %vm4793 = vcmp.gt.f32.partialorder %v4730, 0.0
      %vm4794 = vcmp.gt.f32.partialorder %v4731, 0.0
      %vm4795 = vcmp.gt.f32.partialorder %v4732, 0.0
      %vm4796 = vcmp.gt.f32.partialorder %v4733, 0.0
      %vm4797 = vcmp.gt.f32.partialorder %v4734, 0.0
      %vm4798 = vcmp.gt.f32.partialorder %v4735, 0.0
      %vm4799 = vcmp.gt.f32.partialorder %v4736, 0.0
      %vm4800 = vcmp.gt.f32.partialorder %v4737, 0.0
      %vm4801 = vcmp.gt.f32.partialorder %v4738, 0.0
      %vm4802 = vcmp.gt.f32.partialorder %v4739, 0.0
      %vm4803 = vcmp.gt.f32.partialorder %v4740, 0.0
      %vm4804 = vcmp.gt.f32.partialorder %v4741, 0.0
      %vm4805 = vcmp.gt.f32.partialorder %v4742, 0.0
      %vm4806 = vcmp.gt.f32.partialorder %v4743, 0.0
      %vm4807 = vcmp.gt.f32.partialorder %v4744, 0.0
      %vm4808 = vcmp.gt.f32.partialorder %v4745, 0.0
      %vm4809 = vcmp.gt.f32.partialorder %v4746, 0.0
      %vm4810 = vcmp.gt.f32.partialorder %v4747, 0.0
      %vm4811 = vcmp.gt.f32.partialorder %v4748, 0.0
      %vm4812 = vcmp.gt.f32.partialorder %v4749, 0.0
      %vm4813 = vcmp.gt.f32.partialorder %v4750, 0.0
      %vm4814 = vcmp.gt.f32.partialorder %v4751, 0.0
      %vm4815 = vcmp.gt.f32.partialorder %v4752, 0.0
      %vm4816 = vcmp.gt.f32.partialorder %v4753, 0.0
      %vm4817 = vcmp.gt.f32.partialorder %v4754, 0.0
      %vm4818 = vcmp.gt.f32.partialorder %v4755, 0.0
      %vm4819 = vcmp.gt.f32.partialorder %v4756, 0.0
      %vm4820 = vcmp.gt.f32.partialorder %v4757, 0.0
      %vm4821 = vcmp.gt.f32.partialorder %v4758, 0.0
      %vm4822 = vcmp.gt.f32.partialorder %v4759, 0.0
      %vm4823 = vcmp.gt.f32.partialorder %v4760, 0.0
      %vm4824 = vcmp.gt.f32.partialorder %v4761, 0.0
      %v4825 = vmul.f32 %v4699, 0.01
      %v4826 = vmul.f32 %v4700, 0.01
      %v4827 = vmul.f32 %v4701, 0.01
      %v4828 = vmul.f32 %v4702, 0.01
      %v4829 = vmul.f32 %v4703, 0.01
      %v4830 = vmul.f32 %v4704, 0.01
      %v4831 = vmul.f32 %v4705, 0.01
      %v4832 = vmul.f32 %v4706, 0.01
      %v4833 = vmul.f32 %v4707, 0.01
      %v4834 = vmul.f32 %v4708, 0.01
      %v4835 = vmul.f32 %v4709, 0.01
      %v4836 = vmul.f32 %v4710, 0.01
      %v4837 = vmul.f32 %v4711, 0.01
      %v4838 = vmul.f32 %v4712, 0.01
      %v4839 = vmul.f32 %v4713, 0.01
      %v4840 = vmul.f32 %v4714, 0.01
      %v4841 = vmul.f32 %v4715, 0.01
      %v4842 = vmul.f32 %v4716, 0.01
      %v4843 = vmul.f32 %v4717, 0.01
      %v4844 = vmul.f32 %v4718, 0.01
      %v4845 = vmul.f32 %v4719, 0.01
      %v4846 = vmul.f32 %v4720, 0.01
      %v4847 = vmul.f32 %v4721, 0.01
      %v4848 = vmul.f32 %v4722, 0.01
      %v4849 = vmul.f32 %v4723, 0.01
      %v4850 = vmul.f32 %v4724, 0.01
      %v4851 = vmul.f32 %v4725, 0.01
      %v4852 = vmul.f32 %v4726, 0.01
      %v4853 = vmul.f32 %v4727, 0.01
      %v4854 = vmul.f32 %v4728, 0.01
      %v4855 = vmul.f32 %v4729, 0.01
      %v4856 = vmul.f32 %v4730, 0.01
      %v4857 = vmul.f32 %v4731, 0.01
      %v4858 = vmul.f32 %v4732, 0.01
      %v4859 = vmul.f32 %v4733, 0.01
      %v4860 = vmul.f32 %v4734, 0.01
      %v4861 = vmul.f32 %v4735, 0.01
      %v4862 = vmul.f32 %v4736, 0.01
      %v4863 = vmul.f32 %v4737, 0.01
      %v4864 = vmul.f32 %v4738, 0.01
      %v4865 = vmul.f32 %v4739, 0.01
      %v4866 = vmul.f32 %v4740, 0.01
      %v4867 = vmul.f32 %v4741, 0.01
      %v4868 = vmul.f32 %v4742, 0.01
      %v4869 = vmul.f32 %v4743, 0.01
      %v4870 = vmul.f32 %v4744, 0.01
      %v4871 = vmul.f32 %v4745, 0.01
      %v4872 = vmul.f32 %v4746, 0.01
      %v4873 = vmul.f32 %v4747, 0.01
      %v4874 = vmul.f32 %v4748, 0.01
      %v4875 = vmul.f32 %v4749, 0.01
      %v4876 = vmul.f32 %v4750, 0.01
      %v4877 = vmul.f32 %v4751, 0.01
      %v4878 = vmul.f32 %v4752, 0.01
      %v4879 = vmul.f32 %v4753, 0.01
      %v4880 = vmul.f32 %v4754, 0.01
      %v4881 = vmul.f32 %v4755, 0.01
      %v4882 = vmul.f32 %v4756, 0.01
      %v4883 = vmul.f32 %v4757, 0.01
      %v4884 = vmul.f32 %v4758, 0.01
      %v4885 = vmul.f32 %v4759, 0.01
      %v4886 = vmul.f32 %v4760, 0.01
      %v4887 = vmul.f32 %v4761, 0.01
      %v4888 = vsel %vm4762, %v4699, %v4825
      %v4889 = vsel %vm4763, %v4700, %v4826
      %v4890 = vsel %vm4764, %v4701, %v4827
      %v4891 = vsel %vm4765, %v4702, %v4828
      %v4892 = vsel %vm4766, %v4703, %v4829
      %v4893 = vsel %vm4767, %v4704, %v4830
      %v4894 = vsel %vm4768, %v4705, %v4831
      %v4895 = vsel %vm4769, %v4706, %v4832
      %v4896 = vsel %vm4770, %v4707, %v4833
      %v4897 = vsel %vm4771, %v4708, %v4834
      %v4898 = vsel %vm4772, %v4709, %v4835
      %v4899 = vsel %vm4773, %v4710, %v4836
      %v4900 = vsel %vm4774, %v4711, %v4837
      %v4901 = vsel %vm4775, %v4712, %v4838
      %v4902 = vsel %vm4776, %v4713, %v4839
      %v4903 = vsel %vm4777, %v4714, %v4840
      %v4904 = vsel %vm4778, %v4715, %v4841
      %v4905 = vsel %vm4779, %v4716, %v4842
      %v4906 = vsel %vm4780, %v4717, %v4843
      %v4907 = vsel %vm4781, %v4718, %v4844
      %v4908 = vsel %vm4782, %v4719, %v4845
      %v4909 = vsel %vm4783, %v4720, %v4846
      %v4910 = vsel %vm4784, %v4721, %v4847
      %v4911 = vsel %vm4785, %v4722, %v4848
      %v4912 = vsel %vm4786, %v4723, %v4849
      %v4913 = vsel %vm4787, %v4724, %v4850
      %v4914 = vsel %vm4788, %v4725, %v4851
      %v4915 = vsel %vm4789, %v4726, %v4852
      %v4916 = vsel %vm4790, %v4727, %v4853
      %v4917 = vsel %vm4791, %v4728, %v4854
      %v4918 = vsel %vm4792, %v4729, %v4855
      %v4919 = vsel %vm4793, %v4730, %v4856
      %v4920 = vsel %vm4794, %v4731, %v4857
      %v4921 = vsel %vm4795, %v4732, %v4858
      %v4922 = vsel %vm4796, %v4733, %v4859
      %v4923 = vsel %vm4797, %v4734, %v4860
      %v4924 = vsel %vm4798, %v4735, %v4861
      %v4925 = vsel %vm4799, %v4736, %v4862
      %v4926 = vsel %vm4800, %v4737, %v4863
      %v4927 = vsel %vm4801, %v4738, %v4864
      %v4928 = vsel %vm4802, %v4739, %v4865
      %v4929 = vsel %vm4803, %v4740, %v4866
      %v4930 = vsel %vm4804, %v4741, %v4867
      %v4931 = vsel %vm4805, %v4742, %v4868
      %v4932 = vsel %vm4806, %v4743, %v4869
      %v4933 = vsel %vm4807, %v4744, %v4870
      %v4934 = vsel %vm4808, %v4745, %v4871
      %v4935 = vsel %vm4809, %v4746, %v4872
      %v4936 = vsel %vm4810, %v4747, %v4873
      %v4937 = vsel %vm4811, %v4748, %v4874
      %v4938 = vsel %vm4812, %v4749, %v4875
      %v4939 = vsel %vm4813, %v4750, %v4876
      %v4940 = vsel %vm4814, %v4751, %v4877
      %v4941 = vsel %vm4815, %v4752, %v4878
      %v4942 = vsel %vm4816, %v4753, %v4879
      %v4943 = vsel %vm4817, %v4754, %v4880
      %v4944 = vsel %vm4818, %v4755, %v4881
      %v4945 = vsel %vm4819, %v4756, %v4882
      %v4946 = vsel %vm4820, %v4757, %v4883
      %v4947 = vsel %vm4821, %v4758, %v4884
      %v4948 = vsel %vm4822, %v4759, %v4885
      %v4949 = vsel %vm4823, %v4760, %v4886
      %v4950 = vsel %vm4824, %v4761, %v4887
      %vm4951 = vcmask 261120
      %4952 = vst.msk [vmem:[%s302] sm:$0xff] %vm4951, %v4888
      %4953 = vst.msk [vmem:[%s302 + $0x8] sm:$0xff] %vm4951, %v4889
      %4954 = vst.msk [vmem:[%s302 + $0x10] sm:$0xff] %vm4951, %v4890
      %4955 = vst.msk [vmem:[%s302 + $0x18] sm:$0xff] %vm4951, %v4891
      %4956 = vst.msk [vmem:[%s302 + $0x20] sm:$0xff] %vm4951, %v4892
      %4957 = vst.msk [vmem:[%s302 + $0x28] sm:$0xff] %vm4951, %v4893
      %4958 = vst.msk [vmem:[%s302 + $0x30] sm:$0xff] %vm4951, %v4894
      %4959 = vst.msk [vmem:[%s302 + $0x38] sm:$0xff] %vm4951, %v4895
      %4960 = vst.msk [vmem:[%s302 + $0x40] sm:$0xff] %vm4951, %v4896
      %4961 = vst.msk [vmem:[%s302 + $0x48] sm:$0xff] %vm4951, %v4897
      %4962 = vst.msk [vmem:[%s302 + $0x50] sm:$0xff] %vm4951, %v4898
      %4963 = vst.msk [vmem:[%s302 + $0x58] sm:$0xff] %vm4951, %v4899
      %4964 = vst.msk [vmem:[%s302 + $0x60] sm:$0xff] %vm4951, %v4900
      %4965 = vst.msk [vmem:[%s302 + $0x68] sm:$0xff] %vm4951, %v4901
      %4966 = vst.msk [vmem:[%s302 + $0x70] sm:$0xff] %vm4951, %v4902
      %4967 = vst.msk [vmem:[%s302 + $0x78] sm:$0xff] %vm4951, %v4903
      %4968 = vst.msk [vmem:[%s302 + $0x80] sm:$0xff] %vm4951, %v4904
      %4969 = vst.msk [vmem:[%s302 + $0x88] sm:$0xff] %vm4951, %v4905
      %4970 = vst.msk [vmem:[%s302 + $0x90] sm:$0xff] %vm4951, %v4906
      %4971 = vst.msk [vmem:[%s302 + $0x98] sm:$0xff] %vm4951, %v4907
      %4972 = vst.msk [vmem:[%s302 + $0xa0] sm:$0xff] %vm4951, %v4908
      %4973 = vst.msk [vmem:[%s302 + $0xa8] sm:$0xff] %vm4951, %v4909
      %4974 = vst.msk [vmem:[%s302 + $0xb0] sm:$0xff] %vm4951, %v4910
      %4975 = vst.msk [vmem:[%s302 + $0xb8] sm:$0xff] %vm4951, %v4911
      %4976 = vst.msk [vmem:[%s302 + $0xc0] sm:$0xff] %vm4951, %v4912
      %4977 = vst.msk [vmem:[%s302 + $0xc8] sm:$0xff] %vm4951, %v4913
      %4978 = vst.msk [vmem:[%s302 + $0xd0] sm:$0xff] %vm4951, %v4914
      %4979 = vst.msk [vmem:[%s302 + $0xd8] sm:$0xff] %vm4951, %v4915
      %4980 = vst.msk [vmem:[%s302 + $0xe0] sm:$0xff] %vm4951, %v4916
      %4981 = vst.msk [vmem:[%s302 + $0xe8] sm:$0xff] %vm4951, %v4917
      %4982 = vst.msk [vmem:[%s302 + $0xf0] sm:$0xff] %vm4951, %v4918
      %4983 = vst.msk [vmem:[%s302 + $0xf8] sm:$0xff] %vm4951, %v4919
      %4984 = vst.msk [vmem:[%s302 + $0x100] sm:$0xff] %vm4951, %v4920
      %4985 = vst.msk [vmem:[%s302 + $0x108] sm:$0xff] %vm4951, %v4921
      %4986 = vst.msk [vmem:[%s302 + $0x110] sm:$0xff] %vm4951, %v4922
      %4987 = vst.msk [vmem:[%s302 + $0x118] sm:$0xff] %vm4951, %v4923
      %4988 = vst.msk [vmem:[%s302 + $0x120] sm:$0xff] %vm4951, %v4924
      %4989 = vst.msk [vmem:[%s302 + $0x128] sm:$0xff] %vm4951, %v4925
      %4990 = vst.msk [vmem:[%s302 + $0x130] sm:$0xff] %vm4951, %v4926
      %4991 = vst.msk [vmem:[%s302 + $0x138] sm:$0xff] %vm4951, %v4927
      %4992 = vst.msk [vmem:[%s302 + $0x140] sm:$0xff] %vm4951, %v4928
      %4993 = vst.msk [vmem:[%s302 + $0x148] sm:$0xff] %vm4951, %v4929
      %4994 = vst.msk [vmem:[%s302 + $0x150] sm:$0xff] %vm4951, %v4930
      %4995 = vst.msk [vmem:[%s302 + $0x158] sm:$0xff] %vm4951, %v4931
      %4996 = vst.msk [vmem:[%s302 + $0x160] sm:$0xff] %vm4951, %v4932
      %4997 = vst.msk [vmem:[%s302 + $0x168] sm:$0xff] %vm4951, %v4933
      %4998 = vst.msk [vmem:[%s302 + $0x170] sm:$0xff] %vm4951, %v4934
      %4999 = vst.msk [vmem:[%s302 + $0x178] sm:$0xff] %vm4951, %v4935
      %5000 = vst.msk [vmem:[%s302 + $0x180] sm:$0xff] %vm4951, %v4936
      %5001 = vst.msk [vmem:[%s302 + $0x188] sm:$0xff] %vm4951, %v4937
      %5002 = vst.msk [vmem:[%s302 + $0x190] sm:$0xff] %vm4951, %v4938
      %5003 = vst.msk [vmem:[%s302 + $0x198] sm:$0xff] %vm4951, %v4939
      %5004 = vst.msk [vmem:[%s302 + $0x1a0] sm:$0xff] %vm4951, %v4940
      %5005 = vst.msk [vmem:[%s302 + $0x1a8] sm:$0xff] %vm4951, %v4941
      %5006 = vst.msk [vmem:[%s302 + $0x1b0] sm:$0xff] %vm4951, %v4942
      %5007 = vst.msk [vmem:[%s302 + $0x1b8] sm:$0xff] %vm4951, %v4943
      %5008 = vst.msk [vmem:[%s302 + $0x1c0] sm:$0xff] %vm4951, %v4944
      %5009 = vst.msk [vmem:[%s302 + $0x1c8] sm:$0xff] %vm4951, %v4945
      %5010 = vst.msk [vmem:[%s302 + $0x1d0] sm:$0xff] %vm4951, %v4946
      %5011 = vst.msk [vmem:[%s302 + $0x1d8] sm:$0xff] %vm4951, %v4947
      %5012 = vst.msk [vmem:[%s302 + $0x1e0] sm:$0xff] %vm4951, %v4948
      %5013 = vst.msk [vmem:[%s302 + $0x1e8] sm:$0xff] %vm4951, %v4949
      %5014 = vst.msk [vmem:[%s302 + $0x1f0] sm:$0xff] %vm4951, %v4950
      %s5015 = smul.u32 63, %s18
      %p5016 = scmp.lt.s32.totalorder %s5015, 125
      %s5017 = scalar_select %p5016, %s5015, 125
      %s5018 = smul.addr %s5017, 8
      %s5019 = scalar_lea.vmem %s7, %s5018
      // Predicated region
      $region49: #{stock_encoder.1} parent=47 // pred_check
        %p5020 = pneg %p193
      $region50: #{stock_encoder.1} parent=47 // pred_check_branch
        %5022 = sbr.rel (%p5020) target = $region52
      $region51: #{stock_encoder.1} parent=47 // pred_region
        %s5023 = smul.u32 63, %s18
      $region52: #{stock_encoder.1} parent=47 // pred_fallthru
        _
    $region48: #{stock_encoder.1} parent=5 // pred_fallthru
      _
    %p5024 = scmp.le.s32.totalorder 2, %s13
    // Predicated region
    $region53: #{stock_encoder.1} parent=5 // pred_check
      %p5025 = pneg %p5024
    $region54: #{stock_encoder.1} parent=5 // pred_check_branch
      %5027 = sbr.rel (%p5025) target = $region56
    $region55: #{stock_encoder.1} parent=5 // pred_region
      %s5028 = ssub.s32 %s13, 2
      // Predicated region
      $region57: #{stock_encoder.1} parent=55 // pred_check
        %p5029 = pneg %p199
      $region58: #{stock_encoder.1} parent=55 // pred_check_branch
        %5031 = sbr.rel (%p5029) target = $region60
      $region59: #{stock_encoder.1} parent=55 // pred_region
        %s5032 = smul.u32 63, %s19
        %p5033 = scmp.lt.s32.totalorder %s5032, 125
        %s5034 = scalar_select %p5033, %s5032, 125
        %s5035 = smul.addr %s5034, 8
        %s5036 = scalar_lea.vmem %s7, %s5035
      $region60: #{stock_encoder.1} parent=55 // pred_fallthru
        _
    $region56: #{stock_encoder.1} parent=5 // pred_fallthru
      _
  $region6: #{stock_encoder.1} parent=0 // loop_footer
    %s17 = sadd.s32 1, %s13
  $region7: #{stock_encoder.1} parent=0 // loop_footer_branch
    %12 = sbr.rel target = $region3
  $region8: #{stock_encoder.1} parent=0 // loop_exit
    _

</llo_original>
